<compile_context>
chip_gen: v5e
topology: v5e:2x2
jax: 0.10.0
libtpu: 0.0.40
codegen_flags: <defaults>
</compile_context>

<pallas_src>
import functools
import math

import jax
import jax.numpy as jnp
from jax import lax
from jax.experimental import pallas as pl
from jax.experimental.pallas import tpu as pltpu

LN_EPS = 1e-5


# ----------------------------------------------------------------------------
# In-kernel helpers (operate on VMEM-resident register values)
# ----------------------------------------------------------------------------
def _layer_norm(x, g, b):
    mu = jnp.mean(x, axis=-1, keepdims=True)
    xc = x - mu
    var = jnp.mean(xc * xc, axis=-1, keepdims=True)
    return xc * lax.rsqrt(var + LN_EPS) * g + b


def _mha(q, k, v, num_heads, score_mask):
    """Multi-head attention core (scores / softmax / weighted values), f32.

    q: [Sq, D], k/v: [Skv, D]; score_mask: [Sq, Skv] bool (True = attend).
    Returns the concatenated head outputs [Sq, D]; the caller applies the
    single bf16 output projection.
    """
    sq, d = q.shape
    dh = d // num_heads
    scale = 1.0 / math.sqrt(dh)
    outs = []
    for h in range(num_heads):
        sl = slice(h * dh, (h + 1) * dh)
        s = lax.dot_general(
            q[:, sl], k[:, sl],
            (((1,), (1,)), ((), ())),
            preferred_element_type=jnp.float32,
        ) * scale                                                   # [Sq, Skv]
        s = jnp.where(score_mask, s, jnp.float32(-1e30))
        m = jnp.max(s, axis=-1, keepdims=True)
        p = jnp.exp(s - m)
        p = p * pl.reciprocal(jnp.sum(p, axis=-1, keepdims=True), approx=True)
        outs.append(jnp.dot(p, v[:, sl], preferred_element_type=jnp.float32))
    return jnp.concatenate(outs, axis=1)                            # [Sq, D]


def _decoding_layer(x, e_bf16, refs, num_heads, causal_mask, kv_mask):
    """One DecodingLayer on VMEM-resident values.  x: [S,D] f32, e: [T,D] bf16."""
    (w_qkv_s, b_qkv_s, w_o_s, b_o_s, ln1_g, ln1_b,
     w_q_c, b_q_c, w_kv_c, b_kv_c, w_o_c, b_o_c, ln2_g, ln2_b,
     w_ff1, b_ff1, w_ff2, b_ff2, ln3_g, ln3_b) = refs
    d = x.shape[-1]

    # ---- masked (causal) self-attention, fused QKV projection ----
    qkv = (jnp.dot(x.astype(jnp.bfloat16), w_qkv_s[...],
                   preferred_element_type=jnp.float32) + b_qkv_s[...])     # [S,3D]
    a = _mha(qkv[:, :d], qkv[:, d:2 * d], qkv[:, 2 * d:], num_heads, causal_mask)
    a = (jnp.dot(a.astype(jnp.bfloat16), w_o_s[...],
                 preferred_element_type=jnp.float32) + b_o_s[...])
    x = _layer_norm(x + a, ln1_g[...], ln1_b[...])

    # ---- cross-attention over encoder states (key-padding masked) ----
    q = (jnp.dot(x.astype(jnp.bfloat16), w_q_c[...],
                 preferred_element_type=jnp.float32) + b_q_c[...])         # [S,D]
    kv = (jnp.dot(e_bf16, w_kv_c[...],
                  preferred_element_type=jnp.float32) + b_kv_c[...])       # [T,2D]
    a = _mha(q, kv[:, :d], kv[:, d:], num_heads, kv_mask)
    a = (jnp.dot(a.astype(jnp.bfloat16), w_o_c[...],
                 preferred_element_type=jnp.float32) + b_o_c[...])
    x = _layer_norm(x + a, ln2_g[...], ln2_b[...])

    # ---- position-wise feed-forward ----
    h = (jnp.dot(x.astype(jnp.bfloat16), w_ff1[...],
                 preferred_element_type=jnp.float32) + b_ff1[...])
    h = jnp.maximum(h, 0.0)
    h = (jnp.dot(h.astype(jnp.bfloat16), w_ff2[...],
                 preferred_element_type=jnp.float32) + b_ff2[...])
    return _layer_norm(x + h, ln3_g[...], ln3_b[...])


# ----------------------------------------------------------------------------
# Fully fused decoder kernel: one grid step per batch element
# ----------------------------------------------------------------------------
def _decoder_kernel(
    len_ref,                     # SMEM scalar prefetch: [B] int32
    ids_ref,                     # [1, S, 1] int32 token ids
    e_ref,                       # [1, T, D] bf16 encoder states
    emb_ref,                     # [V, D]    bf16 embedding table
    *rest,                       # 20 layer1 refs + 20 layer2 refs + w_out + b_out + o_ref
    num_heads,
):
    l1 = rest[0:20]
    l2 = rest[20:40]
    w_out_ref, b_out_ref, o_ref = rest[40], rest[41], rest[42]

    b = pl.program_id(0)
    enc_len = len_ref[b]

    ids = ids_ref[0]                                   # [S, 1] int32
    e = e_ref[0]                                       # [T, D] bf16
    s_len = ids.shape[0]
    t_len, d = e.shape
    vocab = emb_ref.shape[0]

    # Embedding lookup fused in-kernel as an exact one-hot @ table MXU matmul.
    vocab_iota = lax.broadcasted_iota(jnp.int32, (s_len, vocab), 1)
    onehot = jnp.where(ids == vocab_iota, 1.0, 0.0).astype(jnp.bfloat16)   # [S, V]
    x = jnp.dot(onehot, emb_ref[...], preferred_element_type=jnp.float32)  # [S, D] f32

    # Masks (shared by both layers).  apply_mask's zeroing of encoder rows
    # t >= len_list[b] is realized as a key-padding mask in cross-attention
    # (exactly-zero softmax weight for those positions).
    row = lax.broadcasted_iota(jnp.int32, (s_len, s_len), 0)
    col = lax.broadcasted_iota(jnp.int32, (s_len, s_len), 1)
    causal = col <= row
    kv_valid = lax.broadcasted_iota(jnp.int32, (s_len, t_len), 1) < enc_len

    x = _decoding_layer(x, e, l1, num_heads, causal, kv_valid)
    x = _decoding_layer(x, e, l2, num_heads, causal, kv_valid)

    # Vocab projection (lane-dense: vocab padded to a multiple of 128).
    logits = (jnp.dot(x.astype(jnp.bfloat16), w_out_ref[...],
                      preferred_element_type=jnp.float32) + b_out_ref[...])
    o_ref[0] = logits.astype(o_ref.dtype)


_LAYER_WEIGHT_NAMES = (
    "w_qkv_s", "b_qkv_s", "w_o_s", "b_o_s", "ln1_g", "ln1_b",
    "w_q_c", "b_q_c", "w_kv_c", "b_kv_c", "w_o_c", "b_o_c", "ln2_g", "ln2_b",
    "w_ff1", "b_ff1", "w_ff2", "b_ff2", "ln3_g", "ln3_b",
)


# ----------------------------------------------------------------------------
# Decoder forward: one pallas_call for the entire module
# ----------------------------------------------------------------------------
def decoder_forward(params, encoded, len_list, decoded_ids, num_heads, vocab_size):
    B, S = decoded_ids.shape
    T, D = encoded.shape[1], encoded.shape[2]
    vpad = params["w_out_pad"].shape[1]

    ids = decoded_ids.astype(jnp.int32).reshape(B, S, 1)
    enc_bf16 = encoded.astype(jnp.bfloat16)        # bf16 MXU operand, half DMA bytes
    len_list = len_list.astype(jnp.int32)

    weights = ([params["embedding"]]
               + [params["layer1"][n] for n in _LAYER_WEIGHT_NAMES]
               + [params["layer2"][n] for n in _LAYER_WEIGHT_NAMES]
               + [params["w_out_pad"], params["b_out_pad"]])

    const2d = lambda b, lens: (0, 0)
    in_specs = ([pl.BlockSpec((1, S, 1), lambda b, lens: (b, 0, 0)),   # ids (per batch)
                 pl.BlockSpec((1, T, D), lambda b, lens: (b, 0, 0))]   # encoder states
                + [pl.BlockSpec(w.shape, const2d) for w in weights])
    out_specs = pl.BlockSpec((1, S, vpad), lambda b, lens: (b, 0, 0))

    kernel = functools.partial(_decoder_kernel, num_heads=num_heads)

    logits_pad = pl.pallas_call(
        kernel,
        out_shape=jax.ShapeDtypeStruct((B, S, vpad), jnp.float32),
        grid_spec=pltpu.PrefetchScalarGridSpec(
            num_scalar_prefetch=1,          # len_list -> SMEM
            grid=(B,),
            in_specs=in_specs,
            out_specs=out_specs,
        ),
        compiler_params=pltpu.CompilerParams(
            dimension_semantics=("parallel",),   # both v7x TCs get a batch each
        ),
    )(len_list, ids, enc_bf16, *weights)
    return logits_pad[:, :, :vocab_size]


# ----------------------------------------------------------------------------
# Deterministic parameter init (matmul weights stored bf16, LN/bias f32)
# ----------------------------------------------------------------------------
def _init_linear(key, fan_in, fan_out):
    kw, kb = jax.random.split(key)
    scale = 1.0 / math.sqrt(fan_in)
    w = jax.random.uniform(kw, (fan_in, fan_out), jnp.float32, -scale, scale)
    b = jax.random.uniform(kb, (1, fan_out), jnp.float32, -scale, scale)
    return w.astype(jnp.bfloat16), b


def _init_decoding_layer(key, d, ffn):
    ks = jax.random.split(key, 7)
    p = {}
    p["w_qkv_s"], p["b_qkv_s"] = _init_linear(ks[0], d, 3 * d)
    p["w_o_s"], p["b_o_s"] = _init_linear(ks[1], d, d)
    p["w_q_c"], p["b_q_c"] = _init_linear(ks[2], d, d)
    p["w_kv_c"], p["b_kv_c"] = _init_linear(ks[3], d, 2 * d)
    p["w_o_c"], p["b_o_c"] = _init_linear(ks[4], d, d)
    p["w_ff1"], p["b_ff1"] = _init_linear(ks[5], d, ffn)
    p["w_ff2"], p["b_ff2"] = _init_linear(ks[6], ffn, d)
    for i in (1, 2, 3):
        p[f"ln{i}_g"] = jnp.ones((1, d), jnp.float32)
        p[f"ln{i}_b"] = jnp.zeros((1, d), jnp.float32)
    return p


def init_decoder(key, model_dim, vocab_size, ffn_dim):
    k_emb, k1, k2, k_out = jax.random.split(key, 4)
    kw, kb = jax.random.split(k_out)
    scale = 1.0 / math.sqrt(model_dim)
    w_out = jax.random.uniform(kw, (model_dim, vocab_size), jnp.float32, -scale, scale)
    b_out = jax.random.uniform(kb, (1, vocab_size), jnp.float32, -scale, scale)
    vpad = ((vocab_size + 127) // 128) * 128     # lane-dense vocab projection
    w_out_pad = jnp.zeros((model_dim, vpad), jnp.float32).at[:, :vocab_size].set(w_out)
    b_out_pad = jnp.zeros((1, vpad), jnp.float32).at[:, :vocab_size].set(b_out)
    return {
        "embedding": jax.random.normal(
            k_emb, (vocab_size, model_dim), jnp.float32).astype(jnp.bfloat16),
        "layer1": _init_decoding_layer(k1, model_dim, ffn_dim),
        "layer2": _init_decoding_layer(k2, model_dim, ffn_dim),
        "w_out_pad": w_out_pad.astype(jnp.bfloat16),
        "b_out_pad": b_out_pad,
    }


# ----------------------------------------------------------------------------
if __name__ == "__main__":
    MODEL_DIM = 32
    NUM_HEADS = 4
    VOCAB = 16
    FFN = 4 * MODEL_DIM
    B, T_ENC, S_DEC = 2, 8, 8

    key = jax.random.PRNGKey(0)
    k_p, k_enc, k_len, k_dec = jax.random.split(key, 4)

    params = init_decoder(k_p, MODEL_DIM, VOCAB, FFN)
    encoded = jax.random.normal(k_enc, (B, T_ENC, MODEL_DIM), jnp.float32)
    len_list = jax.random.randint(k_len, (B,), 3, T_ENC + 1)   # >=1 valid key per batch
    decoded_ids = jax.random.randint(k_dec, (B, S_DEC), 0, VOCAB)

    fwd = jax.jit(functools.partial(
        decoder_forward, num_heads=NUM_HEADS, vocab_size=VOCAB))
    logits = fwd(params, encoded, len_list, decoded_ids)
    jax.block_until_ready(logits)

    assert logits.shape == (B, S_DEC, VOCAB), logits.shape
    print("KERNEL_OK")
</pallas_src>

<mosaic_0001>
module attributes {stable_mosaic.version = 11 : i64} {
  func.func @_decoder_kernel(%arg0: i32, %arg1: memref<2xi32, #tpu.memory_space<smem>>, %arg2: memref<1x8x1xi32, #tpu.memory_space<vmem>>, %arg3: memref<1x8x32xbf16, #tpu.memory_space<vmem>>, %arg4: memref<16x32xbf16, #tpu.memory_space<vmem>>, %arg5: memref<32x96xbf16, #tpu.memory_space<vmem>>, %arg6: memref<1x96xf32, #tpu.memory_space<vmem>>, %arg7: memref<32x32xbf16, #tpu.memory_space<vmem>>, %arg8: memref<1x32xf32, #tpu.memory_space<vmem>>, %arg9: memref<1x32xf32, #tpu.memory_space<vmem>>, %arg10: memref<1x32xf32, #tpu.memory_space<vmem>>, %arg11: memref<32x32xbf16, #tpu.memory_space<vmem>>, %arg12: memref<1x32xf32, #tpu.memory_space<vmem>>, %arg13: memref<32x64xbf16, #tpu.memory_space<vmem>>, %arg14: memref<1x64xf32, #tpu.memory_space<vmem>>, %arg15: memref<32x32xbf16, #tpu.memory_space<vmem>>, %arg16: memref<1x32xf32, #tpu.memory_space<vmem>>, %arg17: memref<1x32xf32, #tpu.memory_space<vmem>>, %arg18: memref<1x32xf32, #tpu.memory_space<vmem>>, %arg19: memref<32x128xbf16, #tpu.memory_space<vmem>>, %arg20: memref<1x128xf32, #tpu.memory_space<vmem>>, %arg21: memref<128x32xbf16, #tpu.memory_space<vmem>>, %arg22: memref<1x32xf32, #tpu.memory_space<vmem>>, %arg23: memref<1x32xf32, #tpu.memory_space<vmem>>, %arg24: memref<1x32xf32, #tpu.memory_space<vmem>>, %arg25: memref<32x96xbf16, #tpu.memory_space<vmem>>, %arg26: memref<1x96xf32, #tpu.memory_space<vmem>>, %arg27: memref<32x32xbf16, #tpu.memory_space<vmem>>, %arg28: memref<1x32xf32, #tpu.memory_space<vmem>>, %arg29: memref<1x32xf32, #tpu.memory_space<vmem>>, %arg30: memref<1x32xf32, #tpu.memory_space<vmem>>, %arg31: memref<32x32xbf16, #tpu.memory_space<vmem>>, %arg32: memref<1x32xf32, #tpu.memory_space<vmem>>, %arg33: memref<32x64xbf16, #tpu.memory_space<vmem>>, %arg34: memref<1x64xf32, #tpu.memory_space<vmem>>, %arg35: memref<32x32xbf16, #tpu.memory_space<vmem>>, %arg36: memref<1x32xf32, #tpu.memory_space<vmem>>, %arg37: memref<1x32xf32, #tpu.memory_space<vmem>>, %arg38: memref<1x32xf32, #tpu.memory_space<vmem>>, %arg39: memref<32x128xbf16, #tpu.memory_space<vmem>>, %arg40: memref<1x128xf32, #tpu.memory_space<vmem>>, %arg41: memref<128x32xbf16, #tpu.memory_space<vmem>>, %arg42: memref<1x32xf32, #tpu.memory_space<vmem>>, %arg43: memref<1x32xf32, #tpu.memory_space<vmem>>, %arg44: memref<1x32xf32, #tpu.memory_space<vmem>>, %arg45: memref<32x128xbf16, #tpu.memory_space<vmem>>, %arg46: memref<1x128xf32, #tpu.memory_space<vmem>>, %arg47: memref<1x8x128xf32, #tpu.memory_space<vmem>>) attributes {dimension_semantics = [#tpu.dimension_semantics<parallel>], iteration_bounds = array<i64: 2>, scalar_prefetch = 1 : i64, scratch_operands = 0 : i64, tpu.core_type = #tpu.core_type<tc>, window_params = [{transform_indices = @transform_0, window_bounds = array<i64: 1, 8, 1>}, {transform_indices = @transform_1, window_bounds = array<i64: 1, 8, 32>}, {pipeline_mode = #tpu.pipeline_mode<synchronous>, transform_indices = @transform_2, window_bounds = array<i64: 16, 32>}, {pipeline_mode = #tpu.pipeline_mode<synchronous>, transform_indices = @transform_3, window_bounds = array<i64: 32, 96>}, {pipeline_mode = #tpu.pipeline_mode<synchronous>, transform_indices = @transform_4, window_bounds = array<i64: 1, 96>}, {pipeline_mode = #tpu.pipeline_mode<synchronous>, transform_indices = @transform_5, window_bounds = array<i64: 32, 32>}, {pipeline_mode = #tpu.pipeline_mode<synchronous>, transform_indices = @transform_6, window_bounds = array<i64: 1, 32>}, {pipeline_mode = #tpu.pipeline_mode<synchronous>, transform_indices = @transform_7, window_bounds = array<i64: 1, 32>}, {pipeline_mode = #tpu.pipeline_mode<synchronous>, transform_indices = @transform_8, window_bounds = array<i64: 1, 32>}, {pipeline_mode = #tpu.pipeline_mode<synchronous>, transform_indices = @transform_9, window_bounds = array<i64: 32, 32>}, {pipeline_mode = #tpu.pipeline_mode<synchronous>, transform_indices = @transform_10, window_bounds = array<i64: 1, 32>}, {pipeline_mode = #tpu.pipeline_mode<synchronous>, transform_indices = @transform_11, window_bounds = array<i64: 32, 64>}, {pipeline_mode = #tpu.pipeline_mode<synchronous>, transform_indices = @transform_12, window_bounds = array<i64: 1, 64>}, {pipeline_mode = #tpu.pipeline_mode<synchronous>, transform_indices = @transform_13, window_bounds = array<i64: 32, 32>}, {pipeline_mode = #tpu.pipeline_mode<synchronous>, transform_indices = @transform_14, window_bounds = array<i64: 1, 32>}, {pipeline_mode = #tpu.pipeline_mode<synchronous>, transform_indices = @transform_15, window_bounds = array<i64: 1, 32>}, {pipeline_mode = #tpu.pipeline_mode<synchronous>, transform_indices = @transform_16, window_bounds = array<i64: 1, 32>}, {pipeline_mode = #tpu.pipeline_mode<synchronous>, transform_indices = @transform_17, window_bounds = array<i64: 32, 128>}, {pipeline_mode = #tpu.pipeline_mode<synchronous>, transform_indices = @transform_18, window_bounds = array<i64: 1, 128>}, {pipeline_mode = #tpu.pipeline_mode<synchronous>, transform_indices = @transform_19, window_bounds = array<i64: 128, 32>}, {pipeline_mode = #tpu.pipeline_mode<synchronous>, transform_indices = @transform_20, window_bounds = array<i64: 1, 32>}, {pipeline_mode = #tpu.pipeline_mode<synchronous>, transform_indices = @transform_21, window_bounds = array<i64: 1, 32>}, {pipeline_mode = #tpu.pipeline_mode<synchronous>, transform_indices = @transform_22, window_bounds = array<i64: 1, 32>}, {pipeline_mode = #tpu.pipeline_mode<synchronous>, transform_indices = @transform_23, window_bounds = array<i64: 32, 96>}, {pipeline_mode = #tpu.pipeline_mode<synchronous>, transform_indices = @transform_24, window_bounds = array<i64: 1, 96>}, {pipeline_mode = #tpu.pipeline_mode<synchronous>, transform_indices = @transform_25, window_bounds = array<i64: 32, 32>}, {pipeline_mode = #tpu.pipeline_mode<synchronous>, transform_indices = @transform_26, window_bounds = array<i64: 1, 32>}, {pipeline_mode = #tpu.pipeline_mode<synchronous>, transform_indices = @transform_27, window_bounds = array<i64: 1, 32>}, {pipeline_mode = #tpu.pipeline_mode<synchronous>, transform_indices = @transform_28, window_bounds = array<i64: 1, 32>}, {pipeline_mode = #tpu.pipeline_mode<synchronous>, transform_indices = @transform_29, window_bounds = array<i64: 32, 32>}, {pipeline_mode = #tpu.pipeline_mode<synchronous>, transform_indices = @transform_30, window_bounds = array<i64: 1, 32>}, {pipeline_mode = #tpu.pipeline_mode<synchronous>, transform_indices = @transform_31, window_bounds = array<i64: 32, 64>}, {pipeline_mode = #tpu.pipeline_mode<synchronous>, transform_indices = @transform_32, window_bounds = array<i64: 1, 64>}, {pipeline_mode = #tpu.pipeline_mode<synchronous>, transform_indices = @transform_33, window_bounds = array<i64: 32, 32>}, {pipeline_mode = #tpu.pipeline_mode<synchronous>, transform_indices = @transform_34, window_bounds = array<i64: 1, 32>}, {pipeline_mode = #tpu.pipeline_mode<synchronous>, transform_indices = @transform_35, window_bounds = array<i64: 1, 32>}, {pipeline_mode = #tpu.pipeline_mode<synchronous>, transform_indices = @transform_36, window_bounds = array<i64: 1, 32>}, {pipeline_mode = #tpu.pipeline_mode<synchronous>, transform_indices = @transform_37, window_bounds = array<i64: 32, 128>}, {pipeline_mode = #tpu.pipeline_mode<synchronous>, transform_indices = @transform_38, window_bounds = array<i64: 1, 128>}, {pipeline_mode = #tpu.pipeline_mode<synchronous>, transform_indices = @transform_39, window_bounds = array<i64: 128, 32>}, {pipeline_mode = #tpu.pipeline_mode<synchronous>, transform_indices = @transform_40, window_bounds = array<i64: 1, 32>}, {pipeline_mode = #tpu.pipeline_mode<synchronous>, transform_indices = @transform_41, window_bounds = array<i64: 1, 32>}, {pipeline_mode = #tpu.pipeline_mode<synchronous>, transform_indices = @transform_42, window_bounds = array<i64: 1, 32>}, {pipeline_mode = #tpu.pipeline_mode<synchronous>, transform_indices = @transform_43, window_bounds = array<i64: 32, 128>}, {pipeline_mode = #tpu.pipeline_mode<synchronous>, transform_indices = @transform_44, window_bounds = array<i64: 1, 128>}, {transform_indices = @transform_45, window_bounds = array<i64: 1, 8, 128>}]} {
    %0 = arith.index_cast %arg0 : i32 to index
    %1 = memref.load %arg1[%0] : memref<2xi32, #tpu.memory_space<smem>>
    %c0 = arith.constant 0 : index
    %c0_0 = arith.constant 0 : index
    %c0_1 = arith.constant 0 : index
    %2 = vector.load %arg2[%c0, %c0_0, %c0_1] : memref<1x8x1xi32, #tpu.memory_space<vmem>>, vector<1x8x1xi32>
    %3 = vector.shape_cast %2 : vector<1x8x1xi32> to vector<8x1xi32>
    %c0_2 = arith.constant 0 : index
    %c0_3 = arith.constant 0 : index
    %c0_4 = arith.constant 0 : index
    %4 = vector.load %arg3[%c0_2, %c0_3, %c0_4] : memref<1x8x32xbf16, #tpu.memory_space<vmem>>, vector<1x8x32xbf16>
    %5 = vector.shape_cast %4 : vector<1x8x32xbf16> to vector<8x32xbf16>
    %6 = tpu.iota {dimensions = array<i32: 1>} : vector<8x16xi32>
    %7 = vector.broadcast %3 : vector<8x1xi32> to vector<8x16xi32>
    %8 = arith.cmpi eq, %7, %6 : vector<8x16xi32>
    %cst = arith.constant 1.000000e+00 : f32
    %cst_5 = arith.constant 0.000000e+00 : f32
    %9 = vector.broadcast %cst : f32 to vector<8x16xf32>
    %10 = vector.broadcast %cst_5 : f32 to vector<8x16xf32>
    %11 = arith.select %8, %9, %10 : vector<8x16xi1>, vector<8x16xf32>
    %12 = arith.truncf %11 : vector<8x16xf32> to vector<8x16xbf16>
    %c0_6 = arith.constant 0 : index
    %c0_7 = arith.constant 0 : index
    %13 = vector.load %arg4[%c0_6, %c0_7] : memref<16x32xbf16, #tpu.memory_space<vmem>>, vector<16x32xbf16>
    %cst_8 = arith.constant dense<0.000000e+00> : vector<8x32xf32>
    %14 = tpu.matmul %12, %13, %cst_8 {dimension_numbers = #tpu.dot_dimension_numbers<[1], [0], [0], [1], [0, 0, 1, 1], [], []>} : vector<8x16xbf16>, vector<16x32xbf16>, vector<8x32xf32> -> vector<8x32xf32>
    %15 = tpu.iota {dimensions = array<i32: 0>} : vector<8x8xi32>
    %16 = tpu.iota {dimensions = array<i32: 1>} : vector<8x8xi32>
    %17 = arith.cmpi sle, %16, %15 : vector<8x8xi32>
    %18 = tpu.iota {dimensions = array<i32: 1>} : vector<8x8xi32>
    %19 = vector.broadcast %1 : i32 to vector<8x8xi32>
    %20 = arith.cmpi slt, %18, %19 : vector<8x8xi32>
    %21 = arith.truncf %14 : vector<8x32xf32> to vector<8x32xbf16>
    %c0_9 = arith.constant 0 : index
    %c0_10 = arith.constant 0 : index
    %22 = vector.load %arg5[%c0_9, %c0_10] : memref<32x96xbf16, #tpu.memory_space<vmem>>, vector<32x96xbf16>
    %cst_11 = arith.constant dense<0.000000e+00> : vector<8x96xf32>
    %23 = tpu.matmul %21, %22, %cst_11 {dimension_numbers = #tpu.dot_dimension_numbers<[1], [0], [0], [1], [0, 0, 1, 1], [], []>} : vector<8x32xbf16>, vector<32x96xbf16>, vector<8x96xf32> -> vector<8x96xf32>
    %c0_12 = arith.constant 0 : index
    %c0_13 = arith.constant 0 : index
    %24 = vector.load %arg6[%c0_12, %c0_13] : memref<1x96xf32, #tpu.memory_space<vmem>>, vector<1x96xf32>
    %25 = vector.broadcast %24 : vector<1x96xf32> to vector<8x96xf32>
    %26 = arith.addf %23, %25 : vector<8x96xf32>
    %27 = vector.extract_strided_slice %26 {offsets = [0, 0], sizes = [8, 32], strides = [1, 1]} : vector<8x96xf32> to vector<8x32xf32>
    %28 = vector.extract_strided_slice %26 {offsets = [0, 32], sizes = [8, 32], strides = [1, 1]} : vector<8x96xf32> to vector<8x32xf32>
    %29 = vector.extract_strided_slice %26 {offsets = [0, 64], sizes = [8, 32], strides = [1, 1]} : vector<8x96xf32> to vector<8x32xf32>
    %30 = vector.extract_strided_slice %27 {offsets = [0, 0], sizes = [8, 8], strides = [1, 1]} : vector<8x32xf32> to vector<8x8xf32>
    %31 = vector.extract_strided_slice %28 {offsets = [0, 0], sizes = [8, 8], strides = [1, 1]} : vector<8x32xf32> to vector<8x8xf32>
    %cst_14 = arith.constant dense<0.000000e+00> : vector<8x8xf32>
    %32 = tpu.matmul %30, %31, %cst_14 {dimension_numbers = #tpu.dot_dimension_numbers<[1], [1], [0], [0], [0, 0, 1, 0], [], []>} : vector<8x8xf32>, vector<8x8xf32>, vector<8x8xf32> -> vector<8x8xf32>
    %cst_15 = arith.constant 0.353553385 : f32
    %33 = vector.broadcast %cst_15 : f32 to vector<8x8xf32>
    %34 = arith.mulf %32, %33 : vector<8x8xf32>
    %cst_16 = arith.constant -1.000000e+30 : f32
    %35 = vector.broadcast %cst_16 : f32 to vector<8x8xf32>
    %36 = arith.select %17, %34, %35 : vector<8x8xi1>, vector<8x8xf32>
    %cst_17 = arith.constant dense<0xFF800000> : vector<8xf32>
    %37 = vector.multi_reduction <maximumf>, %36, %cst_17 [1] : vector<8x8xf32> to vector<8xf32>
    %38 = vector.shape_cast %37 : vector<8xf32> to vector<8x1xf32>
    %39 = vector.broadcast %38 : vector<8x1xf32> to vector<8x8xf32>
    %40 = arith.subf %36, %39 : vector<8x8xf32>
    %41 = math.exp %40 : vector<8x8xf32>
    %cst_18 = arith.constant dense<0.000000e+00> : vector<8xf32>
    %42 = vector.multi_reduction <add>, %41, %cst_18 [1] : vector<8x8xf32> to vector<8xf32>
    %43 = vector.shape_cast %42 : vector<8xf32> to vector<8x1xf32>
    %44 = tpu.reciprocal %43 {approx = true} : vector<8x1xf32> -> vector<8x1xf32>
    %45 = vector.broadcast %44 : vector<8x1xf32> to vector<8x8xf32>
    %46 = arith.mulf %41, %45 : vector<8x8xf32>
    %47 = vector.extract_strided_slice %29 {offsets = [0, 0], sizes = [8, 8], strides = [1, 1]} : vector<8x32xf32> to vector<8x8xf32>
    %cst_19 = arith.constant dense<0.000000e+00> : vector<8x8xf32>
    %48 = tpu.matmul %46, %47, %cst_19 {dimension_numbers = #tpu.dot_dimension_numbers<[1], [0], [0], [1], [0, 0, 1, 1], [], []>} : vector<8x8xf32>, vector<8x8xf32>, vector<8x8xf32> -> vector<8x8xf32>
    %49 = vector.extract_strided_slice %27 {offsets = [0, 8], sizes = [8, 8], strides = [1, 1]} : vector<8x32xf32> to vector<8x8xf32>
    %50 = vector.extract_strided_slice %28 {offsets = [0, 8], sizes = [8, 8], strides = [1, 1]} : vector<8x32xf32> to vector<8x8xf32>
    %cst_20 = arith.constant dense<0.000000e+00> : vector<8x8xf32>
    %51 = tpu.matmul %49, %50, %cst_20 {dimension_numbers = #tpu.dot_dimension_numbers<[1], [1], [0], [0], [0, 0, 1, 0], [], []>} : vector<8x8xf32>, vector<8x8xf32>, vector<8x8xf32> -> vector<8x8xf32>
    %cst_21 = arith.constant 0.353553385 : f32
    %52 = vector.broadcast %cst_21 : f32 to vector<8x8xf32>
    %53 = arith.mulf %51, %52 : vector<8x8xf32>
    %cst_22 = arith.constant -1.000000e+30 : f32
    %54 = vector.broadcast %cst_22 : f32 to vector<8x8xf32>
    %55 = arith.select %17, %53, %54 : vector<8x8xi1>, vector<8x8xf32>
    %cst_23 = arith.constant dense<0xFF800000> : vector<8xf32>
    %56 = vector.multi_reduction <maximumf>, %55, %cst_23 [1] : vector<8x8xf32> to vector<8xf32>
    %57 = vector.shape_cast %56 : vector<8xf32> to vector<8x1xf32>
    %58 = vector.broadcast %57 : vector<8x1xf32> to vector<8x8xf32>
    %59 = arith.subf %55, %58 : vector<8x8xf32>
    %60 = math.exp %59 : vector<8x8xf32>
    %cst_24 = arith.constant dense<0.000000e+00> : vector<8xf32>
    %61 = vector.multi_reduction <add>, %60, %cst_24 [1] : vector<8x8xf32> to vector<8xf32>
    %62 = vector.shape_cast %61 : vector<8xf32> to vector<8x1xf32>
    %63 = tpu.reciprocal %62 {approx = true} : vector<8x1xf32> -> vector<8x1xf32>
    %64 = vector.broadcast %63 : vector<8x1xf32> to vector<8x8xf32>
    %65 = arith.mulf %60, %64 : vector<8x8xf32>
    %66 = vector.extract_strided_slice %29 {offsets = [0, 8], sizes = [8, 8], strides = [1, 1]} : vector<8x32xf32> to vector<8x8xf32>
    %cst_25 = arith.constant dense<0.000000e+00> : vector<8x8xf32>
    %67 = tpu.matmul %65, %66, %cst_25 {dimension_numbers = #tpu.dot_dimension_numbers<[1], [0], [0], [1], [0, 0, 1, 1], [], []>} : vector<8x8xf32>, vector<8x8xf32>, vector<8x8xf32> -> vector<8x8xf32>
    %68 = vector.extract_strided_slice %27 {offsets = [0, 16], sizes = [8, 8], strides = [1, 1]} : vector<8x32xf32> to vector<8x8xf32>
    %69 = vector.extract_strided_slice %28 {offsets = [0, 16], sizes = [8, 8], strides = [1, 1]} : vector<8x32xf32> to vector<8x8xf32>
    %cst_26 = arith.constant dense<0.000000e+00> : vector<8x8xf32>
    %70 = tpu.matmul %68, %69, %cst_26 {dimension_numbers = #tpu.dot_dimension_numbers<[1], [1], [0], [0], [0, 0, 1, 0], [], []>} : vector<8x8xf32>, vector<8x8xf32>, vector<8x8xf32> -> vector<8x8xf32>
    %cst_27 = arith.constant 0.353553385 : f32
    %71 = vector.broadcast %cst_27 : f32 to vector<8x8xf32>
    %72 = arith.mulf %70, %71 : vector<8x8xf32>
    %cst_28 = arith.constant -1.000000e+30 : f32
    %73 = vector.broadcast %cst_28 : f32 to vector<8x8xf32>
    %74 = arith.select %17, %72, %73 : vector<8x8xi1>, vector<8x8xf32>
    %cst_29 = arith.constant dense<0xFF800000> : vector<8xf32>
    %75 = vector.multi_reduction <maximumf>, %74, %cst_29 [1] : vector<8x8xf32> to vector<8xf32>
    %76 = vector.shape_cast %75 : vector<8xf32> to vector<8x1xf32>
    %77 = vector.broadcast %76 : vector<8x1xf32> to vector<8x8xf32>
    %78 = arith.subf %74, %77 : vector<8x8xf32>
    %79 = math.exp %78 : vector<8x8xf32>
    %cst_30 = arith.constant dense<0.000000e+00> : vector<8xf32>
    %80 = vector.multi_reduction <add>, %79, %cst_30 [1] : vector<8x8xf32> to vector<8xf32>
    %81 = vector.shape_cast %80 : vector<8xf32> to vector<8x1xf32>
    %82 = tpu.reciprocal %81 {approx = true} : vector<8x1xf32> -> vector<8x1xf32>
    %83 = vector.broadcast %82 : vector<8x1xf32> to vector<8x8xf32>
    %84 = arith.mulf %79, %83 : vector<8x8xf32>
    %85 = vector.extract_strided_slice %29 {offsets = [0, 16], sizes = [8, 8], strides = [1, 1]} : vector<8x32xf32> to vector<8x8xf32>
    %cst_31 = arith.constant dense<0.000000e+00> : vector<8x8xf32>
    %86 = tpu.matmul %84, %85, %cst_31 {dimension_numbers = #tpu.dot_dimension_numbers<[1], [0], [0], [1], [0, 0, 1, 1], [], []>} : vector<8x8xf32>, vector<8x8xf32>, vector<8x8xf32> -> vector<8x8xf32>
    %87 = vector.extract_strided_slice %27 {offsets = [0, 24], sizes = [8, 8], strides = [1, 1]} : vector<8x32xf32> to vector<8x8xf32>
    %88 = vector.extract_strided_slice %28 {offsets = [0, 24], sizes = [8, 8], strides = [1, 1]} : vector<8x32xf32> to vector<8x8xf32>
    %cst_32 = arith.constant dense<0.000000e+00> : vector<8x8xf32>
    %89 = tpu.matmul %87, %88, %cst_32 {dimension_numbers = #tpu.dot_dimension_numbers<[1], [1], [0], [0], [0, 0, 1, 0], [], []>} : vector<8x8xf32>, vector<8x8xf32>, vector<8x8xf32> -> vector<8x8xf32>
    %cst_33 = arith.constant 0.353553385 : f32
    %90 = vector.broadcast %cst_33 : f32 to vector<8x8xf32>
    %91 = arith.mulf %89, %90 : vector<8x8xf32>
    %cst_34 = arith.constant -1.000000e+30 : f32
    %92 = vector.broadcast %cst_34 : f32 to vector<8x8xf32>
    %93 = arith.select %17, %91, %92 : vector<8x8xi1>, vector<8x8xf32>
    %cst_35 = arith.constant dense<0xFF800000> : vector<8xf32>
    %94 = vector.multi_reduction <maximumf>, %93, %cst_35 [1] : vector<8x8xf32> to vector<8xf32>
    %95 = vector.shape_cast %94 : vector<8xf32> to vector<8x1xf32>
    %96 = vector.broadcast %95 : vector<8x1xf32> to vector<8x8xf32>
    %97 = arith.subf %93, %96 : vector<8x8xf32>
    %98 = math.exp %97 : vector<8x8xf32>
    %cst_36 = arith.constant dense<0.000000e+00> : vector<8xf32>
    %99 = vector.multi_reduction <add>, %98, %cst_36 [1] : vector<8x8xf32> to vector<8xf32>
    %100 = vector.shape_cast %99 : vector<8xf32> to vector<8x1xf32>
    %101 = tpu.reciprocal %100 {approx = true} : vector<8x1xf32> -> vector<8x1xf32>
    %102 = vector.broadcast %101 : vector<8x1xf32> to vector<8x8xf32>
    %103 = arith.mulf %98, %102 : vector<8x8xf32>
    %104 = vector.extract_strided_slice %29 {offsets = [0, 24], sizes = [8, 8], strides = [1, 1]} : vector<8x32xf32> to vector<8x8xf32>
    %cst_37 = arith.constant dense<0.000000e+00> : vector<8x8xf32>
    %105 = tpu.matmul %103, %104, %cst_37 {dimension_numbers = #tpu.dot_dimension_numbers<[1], [0], [0], [1], [0, 0, 1, 1], [], []>} : vector<8x8xf32>, vector<8x8xf32>, vector<8x8xf32> -> vector<8x8xf32>
    %106 = tpu.concatenate %48, %67, %86, %105 in 1 : vector<8x8xf32>, vector<8x8xf32>, vector<8x8xf32>, vector<8x8xf32> -> vector<8x32xf32>
    %107 = arith.truncf %106 : vector<8x32xf32> to vector<8x32xbf16>
    %c0_38 = arith.constant 0 : index
    %c0_39 = arith.constant 0 : index
    %108 = vector.load %arg7[%c0_38, %c0_39] : memref<32x32xbf16, #tpu.memory_space<vmem>>, vector<32x32xbf16>
    %cst_40 = arith.constant dense<0.000000e+00> : vector<8x32xf32>
    %109 = tpu.matmul %107, %108, %cst_40 {dimension_numbers = #tpu.dot_dimension_numbers<[1], [0], [0], [1], [0, 0, 1, 1], [], []>} : vector<8x32xbf16>, vector<32x32xbf16>, vector<8x32xf32> -> vector<8x32xf32>
    %c0_41 = arith.constant 0 : index
    %c0_42 = arith.constant 0 : index
    %110 = vector.load %arg8[%c0_41, %c0_42] : memref<1x32xf32, #tpu.memory_space<vmem>>, vector<1x32xf32>
    %111 = vector.broadcast %110 : vector<1x32xf32> to vector<8x32xf32>
    %112 = arith.addf %109, %111 : vector<8x32xf32>
    %113 = arith.addf %14, %112 : vector<8x32xf32>
    %c0_43 = arith.constant 0 : index
    %c0_44 = arith.constant 0 : index
    %114 = vector.load %arg9[%c0_43, %c0_44] : memref<1x32xf32, #tpu.memory_space<vmem>>, vector<1x32xf32>
    %c0_45 = arith.constant 0 : index
    %c0_46 = arith.constant 0 : index
    %115 = vector.load %arg10[%c0_45, %c0_46] : memref<1x32xf32, #tpu.memory_space<vmem>>, vector<1x32xf32>
    %cst_47 = arith.constant dense<0.000000e+00> : vector<8xf32>
    %116 = vector.multi_reduction <add>, %113, %cst_47 [1] : vector<8x32xf32> to vector<8xf32>
    %117 = vector.shape_cast %116 : vector<8xf32> to vector<8x1xf32>
    %cst_48 = arith.constant 3.200000e+01 : f32
    %118 = vector.broadcast %cst_48 : f32 to vector<8x1xf32>
    %119 = arith.divf %117, %118 : vector<8x1xf32>
    %120 = vector.broadcast %119 : vector<8x1xf32> to vector<8x32xf32>
    %121 = arith.subf %113, %120 : vector<8x32xf32>
    %122 = arith.mulf %121, %121 : vector<8x32xf32>
    %cst_49 = arith.constant dense<0.000000e+00> : vector<8xf32>
    %123 = vector.multi_reduction <add>, %122, %cst_49 [1] : vector<8x32xf32> to vector<8xf32>
    %124 = vector.shape_cast %123 : vector<8xf32> to vector<8x1xf32>
    %cst_50 = arith.constant 3.200000e+01 : f32
    %125 = vector.broadcast %cst_50 : f32 to vector<8x1xf32>
    %126 = arith.divf %124, %125 : vector<8x1xf32>
    %cst_51 = arith.constant 9.99999974E-6 : f32
    %127 = vector.broadcast %cst_51 : f32 to vector<8x1xf32>
    %128 = arith.addf %126, %127 : vector<8x1xf32>
    %129 = math.rsqrt %128 : vector<8x1xf32>
    %130 = vector.broadcast %129 : vector<8x1xf32> to vector<8x32xf32>
    %131 = arith.mulf %121, %130 : vector<8x32xf32>
    %132 = vector.broadcast %114 : vector<1x32xf32> to vector<8x32xf32>
    %133 = arith.mulf %131, %132 : vector<8x32xf32>
    %134 = vector.broadcast %115 : vector<1x32xf32> to vector<8x32xf32>
    %135 = arith.addf %133, %134 : vector<8x32xf32>
    %136 = arith.truncf %135 : vector<8x32xf32> to vector<8x32xbf16>
    %c0_52 = arith.constant 0 : index
    %c0_53 = arith.constant 0 : index
    %137 = vector.load %arg11[%c0_52, %c0_53] : memref<32x32xbf16, #tpu.memory_space<vmem>>, vector<32x32xbf16>
    %cst_54 = arith.constant dense<0.000000e+00> : vector<8x32xf32>
    %138 = tpu.matmul %136, %137, %cst_54 {dimension_numbers = #tpu.dot_dimension_numbers<[1], [0], [0], [1], [0, 0, 1, 1], [], []>} : vector<8x32xbf16>, vector<32x32xbf16>, vector<8x32xf32> -> vector<8x32xf32>
    %c0_55 = arith.constant 0 : index
    %c0_56 = arith.constant 0 : index
    %139 = vector.load %arg12[%c0_55, %c0_56] : memref<1x32xf32, #tpu.memory_space<vmem>>, vector<1x32xf32>
    %140 = vector.broadcast %139 : vector<1x32xf32> to vector<8x32xf32>
    %141 = arith.addf %138, %140 : vector<8x32xf32>
    %c0_57 = arith.constant 0 : index
    %c0_58 = arith.constant 0 : index
    %142 = vector.load %arg13[%c0_57, %c0_58] : memref<32x64xbf16, #tpu.memory_space<vmem>>, vector<32x64xbf16>
    %cst_59 = arith.constant dense<0.000000e+00> : vector<8x64xf32>
    %143 = tpu.matmul %5, %142, %cst_59 {dimension_numbers = #tpu.dot_dimension_numbers<[1], [0], [0], [1], [0, 0, 1, 1], [], []>} : vector<8x32xbf16>, vector<32x64xbf16>, vector<8x64xf32> -> vector<8x64xf32>
    %c0_60 = arith.constant 0 : index
    %c0_61 = arith.constant 0 : index
    %144 = vector.load %arg14[%c0_60, %c0_61] : memref<1x64xf32, #tpu.memory_space<vmem>>, vector<1x64xf32>
    %145 = vector.broadcast %144 : vector<1x64xf32> to vector<8x64xf32>
    %146 = arith.addf %143, %145 : vector<8x64xf32>
    %147 = vector.extract_strided_slice %146 {offsets = [0, 0], sizes = [8, 32], strides = [1, 1]} : vector<8x64xf32> to vector<8x32xf32>
    %148 = vector.extract_strided_slice %146 {offsets = [0, 32], sizes = [8, 32], strides = [1, 1]} : vector<8x64xf32> to vector<8x32xf32>
    %149 = vector.extract_strided_slice %141 {offsets = [0, 0], sizes = [8, 8], strides = [1, 1]} : vector<8x32xf32> to vector<8x8xf32>
    %150 = vector.extract_strided_slice %147 {offsets = [0, 0], sizes = [8, 8], strides = [1, 1]} : vector<8x32xf32> to vector<8x8xf32>
    %cst_62 = arith.constant dense<0.000000e+00> : vector<8x8xf32>
    %151 = tpu.matmul %149, %150, %cst_62 {dimension_numbers = #tpu.dot_dimension_numbers<[1], [1], [0], [0], [0, 0, 1, 0], [], []>} : vector<8x8xf32>, vector<8x8xf32>, vector<8x8xf32> -> vector<8x8xf32>
    %cst_63 = arith.constant 0.353553385 : f32
    %152 = vector.broadcast %cst_63 : f32 to vector<8x8xf32>
    %153 = arith.mulf %151, %152 : vector<8x8xf32>
    %cst_64 = arith.constant -1.000000e+30 : f32
    %154 = vector.broadcast %cst_64 : f32 to vector<8x8xf32>
    %155 = arith.select %20, %153, %154 : vector<8x8xi1>, vector<8x8xf32>
    %cst_65 = arith.constant dense<0xFF800000> : vector<8xf32>
    %156 = vector.multi_reduction <maximumf>, %155, %cst_65 [1] : vector<8x8xf32> to vector<8xf32>
    %157 = vector.shape_cast %156 : vector<8xf32> to vector<8x1xf32>
    %158 = vector.broadcast %157 : vector<8x1xf32> to vector<8x8xf32>
    %159 = arith.subf %155, %158 : vector<8x8xf32>
    %160 = math.exp %159 : vector<8x8xf32>
    %cst_66 = arith.constant dense<0.000000e+00> : vector<8xf32>
    %161 = vector.multi_reduction <add>, %160, %cst_66 [1] : vector<8x8xf32> to vector<8xf32>
    %162 = vector.shape_cast %161 : vector<8xf32> to vector<8x1xf32>
    %163 = tpu.reciprocal %162 {approx = true} : vector<8x1xf32> -> vector<8x1xf32>
    %164 = vector.broadcast %163 : vector<8x1xf32> to vector<8x8xf32>
    %165 = arith.mulf %160, %164 : vector<8x8xf32>
    %166 = vector.extract_strided_slice %148 {offsets = [0, 0], sizes = [8, 8], strides = [1, 1]} : vector<8x32xf32> to vector<8x8xf32>
    %cst_67 = arith.constant dense<0.000000e+00> : vector<8x8xf32>
    %167 = tpu.matmul %165, %166, %cst_67 {dimension_numbers = #tpu.dot_dimension_numbers<[1], [0], [0], [1], [0, 0, 1, 1], [], []>} : vector<8x8xf32>, vector<8x8xf32>, vector<8x8xf32> -> vector<8x8xf32>
    %168 = vector.extract_strided_slice %141 {offsets = [0, 8], sizes = [8, 8], strides = [1, 1]} : vector<8x32xf32> to vector<8x8xf32>
    %169 = vector.extract_strided_slice %147 {offsets = [0, 8], sizes = [8, 8], strides = [1, 1]} : vector<8x32xf32> to vector<8x8xf32>
    %cst_68 = arith.constant dense<0.000000e+00> : vector<8x8xf32>
    %170 = tpu.matmul %168, %169, %cst_68 {dimension_numbers = #tpu.dot_dimension_numbers<[1], [1], [0], [0], [0, 0, 1, 0], [], []>} : vector<8x8xf32>, vector<8x8xf32>, vector<8x8xf32> -> vector<8x8xf32>
    %cst_69 = arith.constant 0.353553385 : f32
    %171 = vector.broadcast %cst_69 : f32 to vector<8x8xf32>
    %172 = arith.mulf %170, %171 : vector<8x8xf32>
    %cst_70 = arith.constant -1.000000e+30 : f32
    %173 = vector.broadcast %cst_70 : f32 to vector<8x8xf32>
    %174 = arith.select %20, %172, %173 : vector<8x8xi1>, vector<8x8xf32>
    %cst_71 = arith.constant dense<0xFF800000> : vector<8xf32>
    %175 = vector.multi_reduction <maximumf>, %174, %cst_71 [1] : vector<8x8xf32> to vector<8xf32>
    %176 = vector.shape_cast %175 : vector<8xf32> to vector<8x1xf32>
    %177 = vector.broadcast %176 : vector<8x1xf32> to vector<8x8xf32>
    %178 = arith.subf %174, %177 : vector<8x8xf32>
    %179 = math.exp %178 : vector<8x8xf32>
    %cst_72 = arith.constant dense<0.000000e+00> : vector<8xf32>
    %180 = vector.multi_reduction <add>, %179, %cst_72 [1] : vector<8x8xf32> to vector<8xf32>
    %181 = vector.shape_cast %180 : vector<8xf32> to vector<8x1xf32>
    %182 = tpu.reciprocal %181 {approx = true} : vector<8x1xf32> -> vector<8x1xf32>
    %183 = vector.broadcast %182 : vector<8x1xf32> to vector<8x8xf32>
    %184 = arith.mulf %179, %183 : vector<8x8xf32>
    %185 = vector.extract_strided_slice %148 {offsets = [0, 8], sizes = [8, 8], strides = [1, 1]} : vector<8x32xf32> to vector<8x8xf32>
    %cst_73 = arith.constant dense<0.000000e+00> : vector<8x8xf32>
    %186 = tpu.matmul %184, %185, %cst_73 {dimension_numbers = #tpu.dot_dimension_numbers<[1], [0], [0], [1], [0, 0, 1, 1], [], []>} : vector<8x8xf32>, vector<8x8xf32>, vector<8x8xf32> -> vector<8x8xf32>
    %187 = vector.extract_strided_slice %141 {offsets = [0, 16], sizes = [8, 8], strides = [1, 1]} : vector<8x32xf32> to vector<8x8xf32>
    %188 = vector.extract_strided_slice %147 {offsets = [0, 16], sizes = [8, 8], strides = [1, 1]} : vector<8x32xf32> to vector<8x8xf32>
    %cst_74 = arith.constant dense<0.000000e+00> : vector<8x8xf32>
    %189 = tpu.matmul %187, %188, %cst_74 {dimension_numbers = #tpu.dot_dimension_numbers<[1], [1], [0], [0], [0, 0, 1, 0], [], []>} : vector<8x8xf32>, vector<8x8xf32>, vector<8x8xf32> -> vector<8x8xf32>
    %cst_75 = arith.constant 0.353553385 : f32
    %190 = vector.broadcast %cst_75 : f32 to vector<8x8xf32>
    %191 = arith.mulf %189, %190 : vector<8x8xf32>
    %cst_76 = arith.constant -1.000000e+30 : f32
    %192 = vector.broadcast %cst_76 : f32 to vector<8x8xf32>
    %193 = arith.select %20, %191, %192 : vector<8x8xi1>, vector<8x8xf32>
    %cst_77 = arith.constant dense<0xFF800000> : vector<8xf32>
    %194 = vector.multi_reduction <maximumf>, %193, %cst_77 [1] : vector<8x8xf32> to vector<8xf32>
    %195 = vector.shape_cast %194 : vector<8xf32> to vector<8x1xf32>
    %196 = vector.broadcast %195 : vector<8x1xf32> to vector<8x8xf32>
    %197 = arith.subf %193, %196 : vector<8x8xf32>
    %198 = math.exp %197 : vector<8x8xf32>
    %cst_78 = arith.constant dense<0.000000e+00> : vector<8xf32>
    %199 = vector.multi_reduction <add>, %198, %cst_78 [1] : vector<8x8xf32> to vector<8xf32>
    %200 = vector.shape_cast %199 : vector<8xf32> to vector<8x1xf32>
    %201 = tpu.reciprocal %200 {approx = true} : vector<8x1xf32> -> vector<8x1xf32>
    %202 = vector.broadcast %201 : vector<8x1xf32> to vector<8x8xf32>
    %203 = arith.mulf %198, %202 : vector<8x8xf32>
    %204 = vector.extract_strided_slice %148 {offsets = [0, 16], sizes = [8, 8], strides = [1, 1]} : vector<8x32xf32> to vector<8x8xf32>
    %cst_79 = arith.constant dense<0.000000e+00> : vector<8x8xf32>
    %205 = tpu.matmul %203, %204, %cst_79 {dimension_numbers = #tpu.dot_dimension_numbers<[1], [0], [0], [1], [0, 0, 1, 1], [], []>} : vector<8x8xf32>, vector<8x8xf32>, vector<8x8xf32> -> vector<8x8xf32>
    %206 = vector.extract_strided_slice %141 {offsets = [0, 24], sizes = [8, 8], strides = [1, 1]} : vector<8x32xf32> to vector<8x8xf32>
    %207 = vector.extract_strided_slice %147 {offsets = [0, 24], sizes = [8, 8], strides = [1, 1]} : vector<8x32xf32> to vector<8x8xf32>
    %cst_80 = arith.constant dense<0.000000e+00> : vector<8x8xf32>
    %208 = tpu.matmul %206, %207, %cst_80 {dimension_numbers = #tpu.dot_dimension_numbers<[1], [1], [0], [0], [0, 0, 1, 0], [], []>} : vector<8x8xf32>, vector<8x8xf32>, vector<8x8xf32> -> vector<8x8xf32>
    %cst_81 = arith.constant 0.353553385 : f32
    %209 = vector.broadcast %cst_81 : f32 to vector<8x8xf32>
    %210 = arith.mulf %208, %209 : vector<8x8xf32>
    %cst_82 = arith.constant -1.000000e+30 : f32
    %211 = vector.broadcast %cst_82 : f32 to vector<8x8xf32>
    %212 = arith.select %20, %210, %211 : vector<8x8xi1>, vector<8x8xf32>
    %cst_83 = arith.constant dense<0xFF800000> : vector<8xf32>
    %213 = vector.multi_reduction <maximumf>, %212, %cst_83 [1] : vector<8x8xf32> to vector<8xf32>
    %214 = vector.shape_cast %213 : vector<8xf32> to vector<8x1xf32>
    %215 = vector.broadcast %214 : vector<8x1xf32> to vector<8x8xf32>
    %216 = arith.subf %212, %215 : vector<8x8xf32>
    %217 = math.exp %216 : vector<8x8xf32>
    %cst_84 = arith.constant dense<0.000000e+00> : vector<8xf32>
    %218 = vector.multi_reduction <add>, %217, %cst_84 [1] : vector<8x8xf32> to vector<8xf32>
    %219 = vector.shape_cast %218 : vector<8xf32> to vector<8x1xf32>
    %220 = tpu.reciprocal %219 {approx = true} : vector<8x1xf32> -> vector<8x1xf32>
    %221 = vector.broadcast %220 : vector<8x1xf32> to vector<8x8xf32>
    %222 = arith.mulf %217, %221 : vector<8x8xf32>
    %223 = vector.extract_strided_slice %148 {offsets = [0, 24], sizes = [8, 8], strides = [1, 1]} : vector<8x32xf32> to vector<8x8xf32>
    %cst_85 = arith.constant dense<0.000000e+00> : vector<8x8xf32>
    %224 = tpu.matmul %222, %223, %cst_85 {dimension_numbers = #tpu.dot_dimension_numbers<[1], [0], [0], [1], [0, 0, 1, 1], [], []>} : vector<8x8xf32>, vector<8x8xf32>, vector<8x8xf32> -> vector<8x8xf32>
    %225 = tpu.concatenate %167, %186, %205, %224 in 1 : vector<8x8xf32>, vector<8x8xf32>, vector<8x8xf32>, vector<8x8xf32> -> vector<8x32xf32>
    %226 = arith.truncf %225 : vector<8x32xf32> to vector<8x32xbf16>
    %c0_86 = arith.constant 0 : index
    %c0_87 = arith.constant 0 : index
    %227 = vector.load %arg15[%c0_86, %c0_87] : memref<32x32xbf16, #tpu.memory_space<vmem>>, vector<32x32xbf16>
    %cst_88 = arith.constant dense<0.000000e+00> : vector<8x32xf32>
    %228 = tpu.matmul %226, %227, %cst_88 {dimension_numbers = #tpu.dot_dimension_numbers<[1], [0], [0], [1], [0, 0, 1, 1], [], []>} : vector<8x32xbf16>, vector<32x32xbf16>, vector<8x32xf32> -> vector<8x32xf32>
    %c0_89 = arith.constant 0 : index
    %c0_90 = arith.constant 0 : index
    %229 = vector.load %arg16[%c0_89, %c0_90] : memref<1x32xf32, #tpu.memory_space<vmem>>, vector<1x32xf32>
    %230 = vector.broadcast %229 : vector<1x32xf32> to vector<8x32xf32>
    %231 = arith.addf %228, %230 : vector<8x32xf32>
    %232 = arith.addf %135, %231 : vector<8x32xf32>
    %c0_91 = arith.constant 0 : index
    %c0_92 = arith.constant 0 : index
    %233 = vector.load %arg17[%c0_91, %c0_92] : memref<1x32xf32, #tpu.memory_space<vmem>>, vector<1x32xf32>
    %c0_93 = arith.constant 0 : index
    %c0_94 = arith.constant 0 : index
    %234 = vector.load %arg18[%c0_93, %c0_94] : memref<1x32xf32, #tpu.memory_space<vmem>>, vector<1x32xf32>
    %cst_95 = arith.constant dense<0.000000e+00> : vector<8xf32>
    %235 = vector.multi_reduction <add>, %232, %cst_95 [1] : vector<8x32xf32> to vector<8xf32>
    %236 = vector.shape_cast %235 : vector<8xf32> to vector<8x1xf32>
    %cst_96 = arith.constant 3.200000e+01 : f32
    %237 = vector.broadcast %cst_96 : f32 to vector<8x1xf32>
    %238 = arith.divf %236, %237 : vector<8x1xf32>
    %239 = vector.broadcast %238 : vector<8x1xf32> to vector<8x32xf32>
    %240 = arith.subf %232, %239 : vector<8x32xf32>
    %241 = arith.mulf %240, %240 : vector<8x32xf32>
    %cst_97 = arith.constant dense<0.000000e+00> : vector<8xf32>
    %242 = vector.multi_reduction <add>, %241, %cst_97 [1] : vector<8x32xf32> to vector<8xf32>
    %243 = vector.shape_cast %242 : vector<8xf32> to vector<8x1xf32>
    %cst_98 = arith.constant 3.200000e+01 : f32
    %244 = vector.broadcast %cst_98 : f32 to vector<8x1xf32>
    %245 = arith.divf %243, %244 : vector<8x1xf32>
    %cst_99 = arith.constant 9.99999974E-6 : f32
    %246 = vector.broadcast %cst_99 : f32 to vector<8x1xf32>
    %247 = arith.addf %245, %246 : vector<8x1xf32>
    %248 = math.rsqrt %247 : vector<8x1xf32>
    %249 = vector.broadcast %248 : vector<8x1xf32> to vector<8x32xf32>
    %250 = arith.mulf %240, %249 : vector<8x32xf32>
    %251 = vector.broadcast %233 : vector<1x32xf32> to vector<8x32xf32>
    %252 = arith.mulf %250, %251 : vector<8x32xf32>
    %253 = vector.broadcast %234 : vector<1x32xf32> to vector<8x32xf32>
    %254 = arith.addf %252, %253 : vector<8x32xf32>
    %255 = arith.truncf %254 : vector<8x32xf32> to vector<8x32xbf16>
    %c0_100 = arith.constant 0 : index
    %c0_101 = arith.constant 0 : index
    %256 = vector.load %arg19[%c0_100, %c0_101] : memref<32x128xbf16, #tpu.memory_space<vmem>>, vector<32x128xbf16>
    %cst_102 = arith.constant dense<0.000000e+00> : vector<8x128xf32>
    %257 = tpu.matmul %255, %256, %cst_102 {dimension_numbers = #tpu.dot_dimension_numbers<[1], [0], [0], [1], [0, 0, 1, 1], [], []>} : vector<8x32xbf16>, vector<32x128xbf16>, vector<8x128xf32> -> vector<8x128xf32>
    %c0_103 = arith.constant 0 : index
    %c0_104 = arith.constant 0 : index
    %258 = vector.load %arg20[%c0_103, %c0_104] : memref<1x128xf32, #tpu.memory_space<vmem>>, vector<1x128xf32>
    %259 = vector.broadcast %258 : vector<1x128xf32> to vector<8x128xf32>
    %260 = arith.addf %257, %259 : vector<8x128xf32>
    %cst_105 = arith.constant 0.000000e+00 : f32
    %261 = vector.broadcast %cst_105 : f32 to vector<8x128xf32>
    %262 = arith.maximumf %260, %261 : vector<8x128xf32>
    %263 = arith.truncf %262 : vector<8x128xf32> to vector<8x128xbf16>
    %c0_106 = arith.constant 0 : index
    %c0_107 = arith.constant 0 : index
    %264 = vector.load %arg21[%c0_106, %c0_107] : memref<128x32xbf16, #tpu.memory_space<vmem>>, vector<128x32xbf16>
    %cst_108 = arith.constant dense<0.000000e+00> : vector<8x32xf32>
    %265 = tpu.matmul %263, %264, %cst_108 {dimension_numbers = #tpu.dot_dimension_numbers<[1], [0], [0], [1], [0, 0, 1, 1], [], []>} : vector<8x128xbf16>, vector<128x32xbf16>, vector<8x32xf32> -> vector<8x32xf32>
    %c0_109 = arith.constant 0 : index
    %c0_110 = arith.constant 0 : index
    %266 = vector.load %arg22[%c0_109, %c0_110] : memref<1x32xf32, #tpu.memory_space<vmem>>, vector<1x32xf32>
    %267 = vector.broadcast %266 : vector<1x32xf32> to vector<8x32xf32>
    %268 = arith.addf %265, %267 : vector<8x32xf32>
    %269 = arith.addf %254, %268 : vector<8x32xf32>
    %c0_111 = arith.constant 0 : index
    %c0_112 = arith.constant 0 : index
    %270 = vector.load %arg23[%c0_111, %c0_112] : memref<1x32xf32, #tpu.memory_space<vmem>>, vector<1x32xf32>
    %c0_113 = arith.constant 0 : index
    %c0_114 = arith.constant 0 : index
    %271 = vector.load %arg24[%c0_113, %c0_114] : memref<1x32xf32, #tpu.memory_space<vmem>>, vector<1x32xf32>
    %cst_115 = arith.constant dense<0.000000e+00> : vector<8xf32>
    %272 = vector.multi_reduction <add>, %269, %cst_115 [1] : vector<8x32xf32> to vector<8xf32>
    %273 = vector.shape_cast %272 : vector<8xf32> to vector<8x1xf32>
    %cst_116 = arith.constant 3.200000e+01 : f32
    %274 = vector.broadcast %cst_116 : f32 to vector<8x1xf32>
    %275 = arith.divf %273, %274 : vector<8x1xf32>
    %276 = vector.broadcast %275 : vector<8x1xf32> to vector<8x32xf32>
    %277 = arith.subf %269, %276 : vector<8x32xf32>
    %278 = arith.mulf %277, %277 : vector<8x32xf32>
    %cst_117 = arith.constant dense<0.000000e+00> : vector<8xf32>
    %279 = vector.multi_reduction <add>, %278, %cst_117 [1] : vector<8x32xf32> to vector<8xf32>
    %280 = vector.shape_cast %279 : vector<8xf32> to vector<8x1xf32>
    %cst_118 = arith.constant 3.200000e+01 : f32
    %281 = vector.broadcast %cst_118 : f32 to vector<8x1xf32>
    %282 = arith.divf %280, %281 : vector<8x1xf32>
    %cst_119 = arith.constant 9.99999974E-6 : f32
    %283 = vector.broadcast %cst_119 : f32 to vector<8x1xf32>
    %284 = arith.addf %282, %283 : vector<8x1xf32>
    %285 = math.rsqrt %284 : vector<8x1xf32>
    %286 = vector.broadcast %285 : vector<8x1xf32> to vector<8x32xf32>
    %287 = arith.mulf %277, %286 : vector<8x32xf32>
    %288 = vector.broadcast %270 : vector<1x32xf32> to vector<8x32xf32>
    %289 = arith.mulf %287, %288 : vector<8x32xf32>
    %290 = vector.broadcast %271 : vector<1x32xf32> to vector<8x32xf32>
    %291 = arith.addf %289, %290 : vector<8x32xf32>
    %292 = arith.truncf %291 : vector<8x32xf32> to vector<8x32xbf16>
    %c0_120 = arith.constant 0 : index
    %c0_121 = arith.constant 0 : index
    %293 = vector.load %arg25[%c0_120, %c0_121] : memref<32x96xbf16, #tpu.memory_space<vmem>>, vector<32x96xbf16>
    %cst_122 = arith.constant dense<0.000000e+00> : vector<8x96xf32>
    %294 = tpu.matmul %292, %293, %cst_122 {dimension_numbers = #tpu.dot_dimension_numbers<[1], [0], [0], [1], [0, 0, 1, 1], [], []>} : vector<8x32xbf16>, vector<32x96xbf16>, vector<8x96xf32> -> vector<8x96xf32>
    %c0_123 = arith.constant 0 : index
    %c0_124 = arith.constant 0 : index
    %295 = vector.load %arg26[%c0_123, %c0_124] : memref<1x96xf32, #tpu.memory_space<vmem>>, vector<1x96xf32>
    %296 = vector.broadcast %295 : vector<1x96xf32> to vector<8x96xf32>
    %297 = arith.addf %294, %296 : vector<8x96xf32>
    %298 = vector.extract_strided_slice %297 {offsets = [0, 0], sizes = [8, 32], strides = [1, 1]} : vector<8x96xf32> to vector<8x32xf32>
    %299 = vector.extract_strided_slice %297 {offsets = [0, 32], sizes = [8, 32], strides = [1, 1]} : vector<8x96xf32> to vector<8x32xf32>
    %300 = vector.extract_strided_slice %297 {offsets = [0, 64], sizes = [8, 32], strides = [1, 1]} : vector<8x96xf32> to vector<8x32xf32>
    %301 = vector.extract_strided_slice %298 {offsets = [0, 0], sizes = [8, 8], strides = [1, 1]} : vector<8x32xf32> to vector<8x8xf32>
    %302 = vector.extract_strided_slice %299 {offsets = [0, 0], sizes = [8, 8], strides = [1, 1]} : vector<8x32xf32> to vector<8x8xf32>
    %cst_125 = arith.constant dense<0.000000e+00> : vector<8x8xf32>
    %303 = tpu.matmul %301, %302, %cst_125 {dimension_numbers = #tpu.dot_dimension_numbers<[1], [1], [0], [0], [0, 0, 1, 0], [], []>} : vector<8x8xf32>, vector<8x8xf32>, vector<8x8xf32> -> vector<8x8xf32>
    %cst_126 = arith.constant 0.353553385 : f32
    %304 = vector.broadcast %cst_126 : f32 to vector<8x8xf32>
    %305 = arith.mulf %303, %304 : vector<8x8xf32>
    %cst_127 = arith.constant -1.000000e+30 : f32
    %306 = vector.broadcast %cst_127 : f32 to vector<8x8xf32>
    %307 = arith.select %17, %305, %306 : vector<8x8xi1>, vector<8x8xf32>
    %cst_128 = arith.constant dense<0xFF800000> : vector<8xf32>
    %308 = vector.multi_reduction <maximumf>, %307, %cst_128 [1] : vector<8x8xf32> to vector<8xf32>
    %309 = vector.shape_cast %308 : vector<8xf32> to vector<8x1xf32>
    %310 = vector.broadcast %309 : vector<8x1xf32> to vector<8x8xf32>
    %311 = arith.subf %307, %310 : vector<8x8xf32>
    %312 = math.exp %311 : vector<8x8xf32>
    %cst_129 = arith.constant dense<0.000000e+00> : vector<8xf32>
    %313 = vector.multi_reduction <add>, %312, %cst_129 [1] : vector<8x8xf32> to vector<8xf32>
    %314 = vector.shape_cast %313 : vector<8xf32> to vector<8x1xf32>
    %315 = tpu.reciprocal %314 {approx = true} : vector<8x1xf32> -> vector<8x1xf32>
    %316 = vector.broadcast %315 : vector<8x1xf32> to vector<8x8xf32>
    %317 = arith.mulf %312, %316 : vector<8x8xf32>
    %318 = vector.extract_strided_slice %300 {offsets = [0, 0], sizes = [8, 8], strides = [1, 1]} : vector<8x32xf32> to vector<8x8xf32>
    %cst_130 = arith.constant dense<0.000000e+00> : vector<8x8xf32>
    %319 = tpu.matmul %317, %318, %cst_130 {dimension_numbers = #tpu.dot_dimension_numbers<[1], [0], [0], [1], [0, 0, 1, 1], [], []>} : vector<8x8xf32>, vector<8x8xf32>, vector<8x8xf32> -> vector<8x8xf32>
    %320 = vector.extract_strided_slice %298 {offsets = [0, 8], sizes = [8, 8], strides = [1, 1]} : vector<8x32xf32> to vector<8x8xf32>
    %321 = vector.extract_strided_slice %299 {offsets = [0, 8], sizes = [8, 8], strides = [1, 1]} : vector<8x32xf32> to vector<8x8xf32>
    %cst_131 = arith.constant dense<0.000000e+00> : vector<8x8xf32>
    %322 = tpu.matmul %320, %321, %cst_131 {dimension_numbers = #tpu.dot_dimension_numbers<[1], [1], [0], [0], [0, 0, 1, 0], [], []>} : vector<8x8xf32>, vector<8x8xf32>, vector<8x8xf32> -> vector<8x8xf32>
    %cst_132 = arith.constant 0.353553385 : f32
    %323 = vector.broadcast %cst_132 : f32 to vector<8x8xf32>
    %324 = arith.mulf %322, %323 : vector<8x8xf32>
    %cst_133 = arith.constant -1.000000e+30 : f32
    %325 = vector.broadcast %cst_133 : f32 to vector<8x8xf32>
    %326 = arith.select %17, %324, %325 : vector<8x8xi1>, vector<8x8xf32>
    %cst_134 = arith.constant dense<0xFF800000> : vector<8xf32>
    %327 = vector.multi_reduction <maximumf>, %326, %cst_134 [1] : vector<8x8xf32> to vector<8xf32>
    %328 = vector.shape_cast %327 : vector<8xf32> to vector<8x1xf32>
    %329 = vector.broadcast %328 : vector<8x1xf32> to vector<8x8xf32>
    %330 = arith.subf %326, %329 : vector<8x8xf32>
    %331 = math.exp %330 : vector<8x8xf32>
    %cst_135 = arith.constant dense<0.000000e+00> : vector<8xf32>
    %332 = vector.multi_reduction <add>, %331, %cst_135 [1] : vector<8x8xf32> to vector<8xf32>
    %333 = vector.shape_cast %332 : vector<8xf32> to vector<8x1xf32>
    %334 = tpu.reciprocal %333 {approx = true} : vector<8x1xf32> -> vector<8x1xf32>
    %335 = vector.broadcast %334 : vector<8x1xf32> to vector<8x8xf32>
    %336 = arith.mulf %331, %335 : vector<8x8xf32>
    %337 = vector.extract_strided_slice %300 {offsets = [0, 8], sizes = [8, 8], strides = [1, 1]} : vector<8x32xf32> to vector<8x8xf32>
    %cst_136 = arith.constant dense<0.000000e+00> : vector<8x8xf32>
    %338 = tpu.matmul %336, %337, %cst_136 {dimension_numbers = #tpu.dot_dimension_numbers<[1], [0], [0], [1], [0, 0, 1, 1], [], []>} : vector<8x8xf32>, vector<8x8xf32>, vector<8x8xf32> -> vector<8x8xf32>
    %339 = vector.extract_strided_slice %298 {offsets = [0, 16], sizes = [8, 8], strides = [1, 1]} : vector<8x32xf32> to vector<8x8xf32>
    %340 = vector.extract_strided_slice %299 {offsets = [0, 16], sizes = [8, 8], strides = [1, 1]} : vector<8x32xf32> to vector<8x8xf32>
    %cst_137 = arith.constant dense<0.000000e+00> : vector<8x8xf32>
    %341 = tpu.matmul %339, %340, %cst_137 {dimension_numbers = #tpu.dot_dimension_numbers<[1], [1], [0], [0], [0, 0, 1, 0], [], []>} : vector<8x8xf32>, vector<8x8xf32>, vector<8x8xf32> -> vector<8x8xf32>
    %cst_138 = arith.constant 0.353553385 : f32
    %342 = vector.broadcast %cst_138 : f32 to vector<8x8xf32>
    %343 = arith.mulf %341, %342 : vector<8x8xf32>
    %cst_139 = arith.constant -1.000000e+30 : f32
    %344 = vector.broadcast %cst_139 : f32 to vector<8x8xf32>
    %345 = arith.select %17, %343, %344 : vector<8x8xi1>, vector<8x8xf32>
    %cst_140 = arith.constant dense<0xFF800000> : vector<8xf32>
    %346 = vector.multi_reduction <maximumf>, %345, %cst_140 [1] : vector<8x8xf32> to vector<8xf32>
    %347 = vector.shape_cast %346 : vector<8xf32> to vector<8x1xf32>
    %348 = vector.broadcast %347 : vector<8x1xf32> to vector<8x8xf32>
    %349 = arith.subf %345, %348 : vector<8x8xf32>
    %350 = math.exp %349 : vector<8x8xf32>
    %cst_141 = arith.constant dense<0.000000e+00> : vector<8xf32>
    %351 = vector.multi_reduction <add>, %350, %cst_141 [1] : vector<8x8xf32> to vector<8xf32>
    %352 = vector.shape_cast %351 : vector<8xf32> to vector<8x1xf32>
    %353 = tpu.reciprocal %352 {approx = true} : vector<8x1xf32> -> vector<8x1xf32>
    %354 = vector.broadcast %353 : vector<8x1xf32> to vector<8x8xf32>
    %355 = arith.mulf %350, %354 : vector<8x8xf32>
    %356 = vector.extract_strided_slice %300 {offsets = [0, 16], sizes = [8, 8], strides = [1, 1]} : vector<8x32xf32> to vector<8x8xf32>
    %cst_142 = arith.constant dense<0.000000e+00> : vector<8x8xf32>
    %357 = tpu.matmul %355, %356, %cst_142 {dimension_numbers = #tpu.dot_dimension_numbers<[1], [0], [0], [1], [0, 0, 1, 1], [], []>} : vector<8x8xf32>, vector<8x8xf32>, vector<8x8xf32> -> vector<8x8xf32>
    %358 = vector.extract_strided_slice %298 {offsets = [0, 24], sizes = [8, 8], strides = [1, 1]} : vector<8x32xf32> to vector<8x8xf32>
    %359 = vector.extract_strided_slice %299 {offsets = [0, 24], sizes = [8, 8], strides = [1, 1]} : vector<8x32xf32> to vector<8x8xf32>
    %cst_143 = arith.constant dense<0.000000e+00> : vector<8x8xf32>
    %360 = tpu.matmul %358, %359, %cst_143 {dimension_numbers = #tpu.dot_dimension_numbers<[1], [1], [0], [0], [0, 0, 1, 0], [], []>} : vector<8x8xf32>, vector<8x8xf32>, vector<8x8xf32> -> vector<8x8xf32>
    %cst_144 = arith.constant 0.353553385 : f32
    %361 = vector.broadcast %cst_144 : f32 to vector<8x8xf32>
    %362 = arith.mulf %360, %361 : vector<8x8xf32>
    %cst_145 = arith.constant -1.000000e+30 : f32
    %363 = vector.broadcast %cst_145 : f32 to vector<8x8xf32>
    %364 = arith.select %17, %362, %363 : vector<8x8xi1>, vector<8x8xf32>
    %cst_146 = arith.constant dense<0xFF800000> : vector<8xf32>
    %365 = vector.multi_reduction <maximumf>, %364, %cst_146 [1] : vector<8x8xf32> to vector<8xf32>
    %366 = vector.shape_cast %365 : vector<8xf32> to vector<8x1xf32>
    %367 = vector.broadcast %366 : vector<8x1xf32> to vector<8x8xf32>
    %368 = arith.subf %364, %367 : vector<8x8xf32>
    %369 = math.exp %368 : vector<8x8xf32>
    %cst_147 = arith.constant dense<0.000000e+00> : vector<8xf32>
    %370 = vector.multi_reduction <add>, %369, %cst_147 [1] : vector<8x8xf32> to vector<8xf32>
    %371 = vector.shape_cast %370 : vector<8xf32> to vector<8x1xf32>
    %372 = tpu.reciprocal %371 {approx = true} : vector<8x1xf32> -> vector<8x1xf32>
    %373 = vector.broadcast %372 : vector<8x1xf32> to vector<8x8xf32>
    %374 = arith.mulf %369, %373 : vector<8x8xf32>
    %375 = vector.extract_strided_slice %300 {offsets = [0, 24], sizes = [8, 8], strides = [1, 1]} : vector<8x32xf32> to vector<8x8xf32>
    %cst_148 = arith.constant dense<0.000000e+00> : vector<8x8xf32>
    %376 = tpu.matmul %374, %375, %cst_148 {dimension_numbers = #tpu.dot_dimension_numbers<[1], [0], [0], [1], [0, 0, 1, 1], [], []>} : vector<8x8xf32>, vector<8x8xf32>, vector<8x8xf32> -> vector<8x8xf32>
    %377 = tpu.concatenate %319, %338, %357, %376 in 1 : vector<8x8xf32>, vector<8x8xf32>, vector<8x8xf32>, vector<8x8xf32> -> vector<8x32xf32>
    %378 = arith.truncf %377 : vector<8x32xf32> to vector<8x32xbf16>
    %c0_149 = arith.constant 0 : index
    %c0_150 = arith.constant 0 : index
    %379 = vector.load %arg27[%c0_149, %c0_150] : memref<32x32xbf16, #tpu.memory_space<vmem>>, vector<32x32xbf16>
    %cst_151 = arith.constant dense<0.000000e+00> : vector<8x32xf32>
    %380 = tpu.matmul %378, %379, %cst_151 {dimension_numbers = #tpu.dot_dimension_numbers<[1], [0], [0], [1], [0, 0, 1, 1], [], []>} : vector<8x32xbf16>, vector<32x32xbf16>, vector<8x32xf32> -> vector<8x32xf32>
    %c0_152 = arith.constant 0 : index
    %c0_153 = arith.constant 0 : index
    %381 = vector.load %arg28[%c0_152, %c0_153] : memref<1x32xf32, #tpu.memory_space<vmem>>, vector<1x32xf32>
    %382 = vector.broadcast %381 : vector<1x32xf32> to vector<8x32xf32>
    %383 = arith.addf %380, %382 : vector<8x32xf32>
    %384 = arith.addf %291, %383 : vector<8x32xf32>
    %c0_154 = arith.constant 0 : index
    %c0_155 = arith.constant 0 : index
    %385 = vector.load %arg29[%c0_154, %c0_155] : memref<1x32xf32, #tpu.memory_space<vmem>>, vector<1x32xf32>
    %c0_156 = arith.constant 0 : index
    %c0_157 = arith.constant 0 : index
    %386 = vector.load %arg30[%c0_156, %c0_157] : memref<1x32xf32, #tpu.memory_space<vmem>>, vector<1x32xf32>
    %cst_158 = arith.constant dense<0.000000e+00> : vector<8xf32>
    %387 = vector.multi_reduction <add>, %384, %cst_158 [1] : vector<8x32xf32> to vector<8xf32>
    %388 = vector.shape_cast %387 : vector<8xf32> to vector<8x1xf32>
    %cst_159 = arith.constant 3.200000e+01 : f32
    %389 = vector.broadcast %cst_159 : f32 to vector<8x1xf32>
    %390 = arith.divf %388, %389 : vector<8x1xf32>
    %391 = vector.broadcast %390 : vector<8x1xf32> to vector<8x32xf32>
    %392 = arith.subf %384, %391 : vector<8x32xf32>
    %393 = arith.mulf %392, %392 : vector<8x32xf32>
    %cst_160 = arith.constant dense<0.000000e+00> : vector<8xf32>
    %394 = vector.multi_reduction <add>, %393, %cst_160 [1] : vector<8x32xf32> to vector<8xf32>
    %395 = vector.shape_cast %394 : vector<8xf32> to vector<8x1xf32>
    %cst_161 = arith.constant 3.200000e+01 : f32
    %396 = vector.broadcast %cst_161 : f32 to vector<8x1xf32>
    %397 = arith.divf %395, %396 : vector<8x1xf32>
    %cst_162 = arith.constant 9.99999974E-6 : f32
    %398 = vector.broadcast %cst_162 : f32 to vector<8x1xf32>
    %399 = arith.addf %397, %398 : vector<8x1xf32>
    %400 = math.rsqrt %399 : vector<8x1xf32>
    %401 = vector.broadcast %400 : vector<8x1xf32> to vector<8x32xf32>
    %402 = arith.mulf %392, %401 : vector<8x32xf32>
    %403 = vector.broadcast %385 : vector<1x32xf32> to vector<8x32xf32>
    %404 = arith.mulf %402, %403 : vector<8x32xf32>
    %405 = vector.broadcast %386 : vector<1x32xf32> to vector<8x32xf32>
    %406 = arith.addf %404, %405 : vector<8x32xf32>
    %407 = arith.truncf %406 : vector<8x32xf32> to vector<8x32xbf16>
    %c0_163 = arith.constant 0 : index
    %c0_164 = arith.constant 0 : index
    %408 = vector.load %arg31[%c0_163, %c0_164] : memref<32x32xbf16, #tpu.memory_space<vmem>>, vector<32x32xbf16>
    %cst_165 = arith.constant dense<0.000000e+00> : vector<8x32xf32>
    %409 = tpu.matmul %407, %408, %cst_165 {dimension_numbers = #tpu.dot_dimension_numbers<[1], [0], [0], [1], [0, 0, 1, 1], [], []>} : vector<8x32xbf16>, vector<32x32xbf16>, vector<8x32xf32> -> vector<8x32xf32>
    %c0_166 = arith.constant 0 : index
    %c0_167 = arith.constant 0 : index
    %410 = vector.load %arg32[%c0_166, %c0_167] : memref<1x32xf32, #tpu.memory_space<vmem>>, vector<1x32xf32>
    %411 = vector.broadcast %410 : vector<1x32xf32> to vector<8x32xf32>
    %412 = arith.addf %409, %411 : vector<8x32xf32>
    %c0_168 = arith.constant 0 : index
    %c0_169 = arith.constant 0 : index
    %413 = vector.load %arg33[%c0_168, %c0_169] : memref<32x64xbf16, #tpu.memory_space<vmem>>, vector<32x64xbf16>
    %cst_170 = arith.constant dense<0.000000e+00> : vector<8x64xf32>
    %414 = tpu.matmul %5, %413, %cst_170 {dimension_numbers = #tpu.dot_dimension_numbers<[1], [0], [0], [1], [0, 0, 1, 1], [], []>} : vector<8x32xbf16>, vector<32x64xbf16>, vector<8x64xf32> -> vector<8x64xf32>
    %c0_171 = arith.constant 0 : index
    %c0_172 = arith.constant 0 : index
    %415 = vector.load %arg34[%c0_171, %c0_172] : memref<1x64xf32, #tpu.memory_space<vmem>>, vector<1x64xf32>
    %416 = vector.broadcast %415 : vector<1x64xf32> to vector<8x64xf32>
    %417 = arith.addf %414, %416 : vector<8x64xf32>
    %418 = vector.extract_strided_slice %417 {offsets = [0, 0], sizes = [8, 32], strides = [1, 1]} : vector<8x64xf32> to vector<8x32xf32>
    %419 = vector.extract_strided_slice %417 {offsets = [0, 32], sizes = [8, 32], strides = [1, 1]} : vector<8x64xf32> to vector<8x32xf32>
    %420 = vector.extract_strided_slice %412 {offsets = [0, 0], sizes = [8, 8], strides = [1, 1]} : vector<8x32xf32> to vector<8x8xf32>
    %421 = vector.extract_strided_slice %418 {offsets = [0, 0], sizes = [8, 8], strides = [1, 1]} : vector<8x32xf32> to vector<8x8xf32>
    %cst_173 = arith.constant dense<0.000000e+00> : vector<8x8xf32>
    %422 = tpu.matmul %420, %421, %cst_173 {dimension_numbers = #tpu.dot_dimension_numbers<[1], [1], [0], [0], [0, 0, 1, 0], [], []>} : vector<8x8xf32>, vector<8x8xf32>, vector<8x8xf32> -> vector<8x8xf32>
    %cst_174 = arith.constant 0.353553385 : f32
    %423 = vector.broadcast %cst_174 : f32 to vector<8x8xf32>
    %424 = arith.mulf %422, %423 : vector<8x8xf32>
    %cst_175 = arith.constant -1.000000e+30 : f32
    %425 = vector.broadcast %cst_175 : f32 to vector<8x8xf32>
    %426 = arith.select %20, %424, %425 : vector<8x8xi1>, vector<8x8xf32>
    %cst_176 = arith.constant dense<0xFF800000> : vector<8xf32>
    %427 = vector.multi_reduction <maximumf>, %426, %cst_176 [1] : vector<8x8xf32> to vector<8xf32>
    %428 = vector.shape_cast %427 : vector<8xf32> to vector<8x1xf32>
    %429 = vector.broadcast %428 : vector<8x1xf32> to vector<8x8xf32>
    %430 = arith.subf %426, %429 : vector<8x8xf32>
    %431 = math.exp %430 : vector<8x8xf32>
    %cst_177 = arith.constant dense<0.000000e+00> : vector<8xf32>
    %432 = vector.multi_reduction <add>, %431, %cst_177 [1] : vector<8x8xf32> to vector<8xf32>
    %433 = vector.shape_cast %432 : vector<8xf32> to vector<8x1xf32>
    %434 = tpu.reciprocal %433 {approx = true} : vector<8x1xf32> -> vector<8x1xf32>
    %435 = vector.broadcast %434 : vector<8x1xf32> to vector<8x8xf32>
    %436 = arith.mulf %431, %435 : vector<8x8xf32>
    %437 = vector.extract_strided_slice %419 {offsets = [0, 0], sizes = [8, 8], strides = [1, 1]} : vector<8x32xf32> to vector<8x8xf32>
    %cst_178 = arith.constant dense<0.000000e+00> : vector<8x8xf32>
    %438 = tpu.matmul %436, %437, %cst_178 {dimension_numbers = #tpu.dot_dimension_numbers<[1], [0], [0], [1], [0, 0, 1, 1], [], []>} : vector<8x8xf32>, vector<8x8xf32>, vector<8x8xf32> -> vector<8x8xf32>
    %439 = vector.extract_strided_slice %412 {offsets = [0, 8], sizes = [8, 8], strides = [1, 1]} : vector<8x32xf32> to vector<8x8xf32>
    %440 = vector.extract_strided_slice %418 {offsets = [0, 8], sizes = [8, 8], strides = [1, 1]} : vector<8x32xf32> to vector<8x8xf32>
    %cst_179 = arith.constant dense<0.000000e+00> : vector<8x8xf32>
    %441 = tpu.matmul %439, %440, %cst_179 {dimension_numbers = #tpu.dot_dimension_numbers<[1], [1], [0], [0], [0, 0, 1, 0], [], []>} : vector<8x8xf32>, vector<8x8xf32>, vector<8x8xf32> -> vector<8x8xf32>
    %cst_180 = arith.constant 0.353553385 : f32
    %442 = vector.broadcast %cst_180 : f32 to vector<8x8xf32>
    %443 = arith.mulf %441, %442 : vector<8x8xf32>
    %cst_181 = arith.constant -1.000000e+30 : f32
    %444 = vector.broadcast %cst_181 : f32 to vector<8x8xf32>
    %445 = arith.select %20, %443, %444 : vector<8x8xi1>, vector<8x8xf32>
    %cst_182 = arith.constant dense<0xFF800000> : vector<8xf32>
    %446 = vector.multi_reduction <maximumf>, %445, %cst_182 [1] : vector<8x8xf32> to vector<8xf32>
    %447 = vector.shape_cast %446 : vector<8xf32> to vector<8x1xf32>
    %448 = vector.broadcast %447 : vector<8x1xf32> to vector<8x8xf32>
    %449 = arith.subf %445, %448 : vector<8x8xf32>
    %450 = math.exp %449 : vector<8x8xf32>
    %cst_183 = arith.constant dense<0.000000e+00> : vector<8xf32>
    %451 = vector.multi_reduction <add>, %450, %cst_183 [1] : vector<8x8xf32> to vector<8xf32>
    %452 = vector.shape_cast %451 : vector<8xf32> to vector<8x1xf32>
    %453 = tpu.reciprocal %452 {approx = true} : vector<8x1xf32> -> vector<8x1xf32>
    %454 = vector.broadcast %453 : vector<8x1xf32> to vector<8x8xf32>
    %455 = arith.mulf %450, %454 : vector<8x8xf32>
    %456 = vector.extract_strided_slice %419 {offsets = [0, 8], sizes = [8, 8], strides = [1, 1]} : vector<8x32xf32> to vector<8x8xf32>
    %cst_184 = arith.constant dense<0.000000e+00> : vector<8x8xf32>
    %457 = tpu.matmul %455, %456, %cst_184 {dimension_numbers = #tpu.dot_dimension_numbers<[1], [0], [0], [1], [0, 0, 1, 1], [], []>} : vector<8x8xf32>, vector<8x8xf32>, vector<8x8xf32> -> vector<8x8xf32>
    %458 = vector.extract_strided_slice %412 {offsets = [0, 16], sizes = [8, 8], strides = [1, 1]} : vector<8x32xf32> to vector<8x8xf32>
    %459 = vector.extract_strided_slice %418 {offsets = [0, 16], sizes = [8, 8], strides = [1, 1]} : vector<8x32xf32> to vector<8x8xf32>
    %cst_185 = arith.constant dense<0.000000e+00> : vector<8x8xf32>
    %460 = tpu.matmul %458, %459, %cst_185 {dimension_numbers = #tpu.dot_dimension_numbers<[1], [1], [0], [0], [0, 0, 1, 0], [], []>} : vector<8x8xf32>, vector<8x8xf32>, vector<8x8xf32> -> vector<8x8xf32>
    %cst_186 = arith.constant 0.353553385 : f32
    %461 = vector.broadcast %cst_186 : f32 to vector<8x8xf32>
    %462 = arith.mulf %460, %461 : vector<8x8xf32>
    %cst_187 = arith.constant -1.000000e+30 : f32
    %463 = vector.broadcast %cst_187 : f32 to vector<8x8xf32>
    %464 = arith.select %20, %462, %463 : vector<8x8xi1>, vector<8x8xf32>
    %cst_188 = arith.constant dense<0xFF800000> : vector<8xf32>
    %465 = vector.multi_reduction <maximumf>, %464, %cst_188 [1] : vector<8x8xf32> to vector<8xf32>
    %466 = vector.shape_cast %465 : vector<8xf32> to vector<8x1xf32>
    %467 = vector.broadcast %466 : vector<8x1xf32> to vector<8x8xf32>
    %468 = arith.subf %464, %467 : vector<8x8xf32>
    %469 = math.exp %468 : vector<8x8xf32>
    %cst_189 = arith.constant dense<0.000000e+00> : vector<8xf32>
    %470 = vector.multi_reduction <add>, %469, %cst_189 [1] : vector<8x8xf32> to vector<8xf32>
    %471 = vector.shape_cast %470 : vector<8xf32> to vector<8x1xf32>
    %472 = tpu.reciprocal %471 {approx = true} : vector<8x1xf32> -> vector<8x1xf32>
    %473 = vector.broadcast %472 : vector<8x1xf32> to vector<8x8xf32>
    %474 = arith.mulf %469, %473 : vector<8x8xf32>
    %475 = vector.extract_strided_slice %419 {offsets = [0, 16], sizes = [8, 8], strides = [1, 1]} : vector<8x32xf32> to vector<8x8xf32>
    %cst_190 = arith.constant dense<0.000000e+00> : vector<8x8xf32>
    %476 = tpu.matmul %474, %475, %cst_190 {dimension_numbers = #tpu.dot_dimension_numbers<[1], [0], [0], [1], [0, 0, 1, 1], [], []>} : vector<8x8xf32>, vector<8x8xf32>, vector<8x8xf32> -> vector<8x8xf32>
    %477 = vector.extract_strided_slice %412 {offsets = [0, 24], sizes = [8, 8], strides = [1, 1]} : vector<8x32xf32> to vector<8x8xf32>
    %478 = vector.extract_strided_slice %418 {offsets = [0, 24], sizes = [8, 8], strides = [1, 1]} : vector<8x32xf32> to vector<8x8xf32>
    %cst_191 = arith.constant dense<0.000000e+00> : vector<8x8xf32>
    %479 = tpu.matmul %477, %478, %cst_191 {dimension_numbers = #tpu.dot_dimension_numbers<[1], [1], [0], [0], [0, 0, 1, 0], [], []>} : vector<8x8xf32>, vector<8x8xf32>, vector<8x8xf32> -> vector<8x8xf32>
    %cst_192 = arith.constant 0.353553385 : f32
    %480 = vector.broadcast %cst_192 : f32 to vector<8x8xf32>
    %481 = arith.mulf %479, %480 : vector<8x8xf32>
    %cst_193 = arith.constant -1.000000e+30 : f32
    %482 = vector.broadcast %cst_193 : f32 to vector<8x8xf32>
    %483 = arith.select %20, %481, %482 : vector<8x8xi1>, vector<8x8xf32>
    %cst_194 = arith.constant dense<0xFF800000> : vector<8xf32>
    %484 = vector.multi_reduction <maximumf>, %483, %cst_194 [1] : vector<8x8xf32> to vector<8xf32>
    %485 = vector.shape_cast %484 : vector<8xf32> to vector<8x1xf32>
    %486 = vector.broadcast %485 : vector<8x1xf32> to vector<8x8xf32>
    %487 = arith.subf %483, %486 : vector<8x8xf32>
    %488 = math.exp %487 : vector<8x8xf32>
    %cst_195 = arith.constant dense<0.000000e+00> : vector<8xf32>
    %489 = vector.multi_reduction <add>, %488, %cst_195 [1] : vector<8x8xf32> to vector<8xf32>
    %490 = vector.shape_cast %489 : vector<8xf32> to vector<8x1xf32>
    %491 = tpu.reciprocal %490 {approx = true} : vector<8x1xf32> -> vector<8x1xf32>
    %492 = vector.broadcast %491 : vector<8x1xf32> to vector<8x8xf32>
    %493 = arith.mulf %488, %492 : vector<8x8xf32>
    %494 = vector.extract_strided_slice %419 {offsets = [0, 24], sizes = [8, 8], strides = [1, 1]} : vector<8x32xf32> to vector<8x8xf32>
    %cst_196 = arith.constant dense<0.000000e+00> : vector<8x8xf32>
    %495 = tpu.matmul %493, %494, %cst_196 {dimension_numbers = #tpu.dot_dimension_numbers<[1], [0], [0], [1], [0, 0, 1, 1], [], []>} : vector<8x8xf32>, vector<8x8xf32>, vector<8x8xf32> -> vector<8x8xf32>
    %496 = tpu.concatenate %438, %457, %476, %495 in 1 : vector<8x8xf32>, vector<8x8xf32>, vector<8x8xf32>, vector<8x8xf32> -> vector<8x32xf32>
    %497 = arith.truncf %496 : vector<8x32xf32> to vector<8x32xbf16>
    %c0_197 = arith.constant 0 : index
    %c0_198 = arith.constant 0 : index
    %498 = vector.load %arg35[%c0_197, %c0_198] : memref<32x32xbf16, #tpu.memory_space<vmem>>, vector<32x32xbf16>
    %cst_199 = arith.constant dense<0.000000e+00> : vector<8x32xf32>
    %499 = tpu.matmul %497, %498, %cst_199 {dimension_numbers = #tpu.dot_dimension_numbers<[1], [0], [0], [1], [0, 0, 1, 1], [], []>} : vector<8x32xbf16>, vector<32x32xbf16>, vector<8x32xf32> -> vector<8x32xf32>
    %c0_200 = arith.constant 0 : index
    %c0_201 = arith.constant 0 : index
    %500 = vector.load %arg36[%c0_200, %c0_201] : memref<1x32xf32, #tpu.memory_space<vmem>>, vector<1x32xf32>
    %501 = vector.broadcast %500 : vector<1x32xf32> to vector<8x32xf32>
    %502 = arith.addf %499, %501 : vector<8x32xf32>
    %503 = arith.addf %406, %502 : vector<8x32xf32>
    %c0_202 = arith.constant 0 : index
    %c0_203 = arith.constant 0 : index
    %504 = vector.load %arg37[%c0_202, %c0_203] : memref<1x32xf32, #tpu.memory_space<vmem>>, vector<1x32xf32>
    %c0_204 = arith.constant 0 : index
    %c0_205 = arith.constant 0 : index
    %505 = vector.load %arg38[%c0_204, %c0_205] : memref<1x32xf32, #tpu.memory_space<vmem>>, vector<1x32xf32>
    %cst_206 = arith.constant dense<0.000000e+00> : vector<8xf32>
    %506 = vector.multi_reduction <add>, %503, %cst_206 [1] : vector<8x32xf32> to vector<8xf32>
    %507 = vector.shape_cast %506 : vector<8xf32> to vector<8x1xf32>
    %cst_207 = arith.constant 3.200000e+01 : f32
    %508 = vector.broadcast %cst_207 : f32 to vector<8x1xf32>
    %509 = arith.divf %507, %508 : vector<8x1xf32>
    %510 = vector.broadcast %509 : vector<8x1xf32> to vector<8x32xf32>
    %511 = arith.subf %503, %510 : vector<8x32xf32>
    %512 = arith.mulf %511, %511 : vector<8x32xf32>
    %cst_208 = arith.constant dense<0.000000e+00> : vector<8xf32>
    %513 = vector.multi_reduction <add>, %512, %cst_208 [1] : vector<8x32xf32> to vector<8xf32>
    %514 = vector.shape_cast %513 : vector<8xf32> to vector<8x1xf32>
    %cst_209 = arith.constant 3.200000e+01 : f32
    %515 = vector.broadcast %cst_209 : f32 to vector<8x1xf32>
    %516 = arith.divf %514, %515 : vector<8x1xf32>
    %cst_210 = arith.constant 9.99999974E-6 : f32
    %517 = vector.broadcast %cst_210 : f32 to vector<8x1xf32>
    %518 = arith.addf %516, %517 : vector<8x1xf32>
    %519 = math.rsqrt %518 : vector<8x1xf32>
    %520 = vector.broadcast %519 : vector<8x1xf32> to vector<8x32xf32>
    %521 = arith.mulf %511, %520 : vector<8x32xf32>
    %522 = vector.broadcast %504 : vector<1x32xf32> to vector<8x32xf32>
    %523 = arith.mulf %521, %522 : vector<8x32xf32>
    %524 = vector.broadcast %505 : vector<1x32xf32> to vector<8x32xf32>
    %525 = arith.addf %523, %524 : vector<8x32xf32>
    %526 = arith.truncf %525 : vector<8x32xf32> to vector<8x32xbf16>
    %c0_211 = arith.constant 0 : index
    %c0_212 = arith.constant 0 : index
    %527 = vector.load %arg39[%c0_211, %c0_212] : memref<32x128xbf16, #tpu.memory_space<vmem>>, vector<32x128xbf16>
    %cst_213 = arith.constant dense<0.000000e+00> : vector<8x128xf32>
    %528 = tpu.matmul %526, %527, %cst_213 {dimension_numbers = #tpu.dot_dimension_numbers<[1], [0], [0], [1], [0, 0, 1, 1], [], []>} : vector<8x32xbf16>, vector<32x128xbf16>, vector<8x128xf32> -> vector<8x128xf32>
    %c0_214 = arith.constant 0 : index
    %c0_215 = arith.constant 0 : index
    %529 = vector.load %arg40[%c0_214, %c0_215] : memref<1x128xf32, #tpu.memory_space<vmem>>, vector<1x128xf32>
    %530 = vector.broadcast %529 : vector<1x128xf32> to vector<8x128xf32>
    %531 = arith.addf %528, %530 : vector<8x128xf32>
    %cst_216 = arith.constant 0.000000e+00 : f32
    %532 = vector.broadcast %cst_216 : f32 to vector<8x128xf32>
    %533 = arith.maximumf %531, %532 : vector<8x128xf32>
    %534 = arith.truncf %533 : vector<8x128xf32> to vector<8x128xbf16>
    %c0_217 = arith.constant 0 : index
    %c0_218 = arith.constant 0 : index
    %535 = vector.load %arg41[%c0_217, %c0_218] : memref<128x32xbf16, #tpu.memory_space<vmem>>, vector<128x32xbf16>
    %cst_219 = arith.constant dense<0.000000e+00> : vector<8x32xf32>
    %536 = tpu.matmul %534, %535, %cst_219 {dimension_numbers = #tpu.dot_dimension_numbers<[1], [0], [0], [1], [0, 0, 1, 1], [], []>} : vector<8x128xbf16>, vector<128x32xbf16>, vector<8x32xf32> -> vector<8x32xf32>
    %c0_220 = arith.constant 0 : index
    %c0_221 = arith.constant 0 : index
    %537 = vector.load %arg42[%c0_220, %c0_221] : memref<1x32xf32, #tpu.memory_space<vmem>>, vector<1x32xf32>
    %538 = vector.broadcast %537 : vector<1x32xf32> to vector<8x32xf32>
    %539 = arith.addf %536, %538 : vector<8x32xf32>
    %540 = arith.addf %525, %539 : vector<8x32xf32>
    %c0_222 = arith.constant 0 : index
    %c0_223 = arith.constant 0 : index
    %541 = vector.load %arg43[%c0_222, %c0_223] : memref<1x32xf32, #tpu.memory_space<vmem>>, vector<1x32xf32>
    %c0_224 = arith.constant 0 : index
    %c0_225 = arith.constant 0 : index
    %542 = vector.load %arg44[%c0_224, %c0_225] : memref<1x32xf32, #tpu.memory_space<vmem>>, vector<1x32xf32>
    %cst_226 = arith.constant dense<0.000000e+00> : vector<8xf32>
    %543 = vector.multi_reduction <add>, %540, %cst_226 [1] : vector<8x32xf32> to vector<8xf32>
    %544 = vector.shape_cast %543 : vector<8xf32> to vector<8x1xf32>
    %cst_227 = arith.constant 3.200000e+01 : f32
    %545 = vector.broadcast %cst_227 : f32 to vector<8x1xf32>
    %546 = arith.divf %544, %545 : vector<8x1xf32>
    %547 = vector.broadcast %546 : vector<8x1xf32> to vector<8x32xf32>
    %548 = arith.subf %540, %547 : vector<8x32xf32>
    %549 = arith.mulf %548, %548 : vector<8x32xf32>
    %cst_228 = arith.constant dense<0.000000e+00> : vector<8xf32>
    %550 = vector.multi_reduction <add>, %549, %cst_228 [1] : vector<8x32xf32> to vector<8xf32>
    %551 = vector.shape_cast %550 : vector<8xf32> to vector<8x1xf32>
    %cst_229 = arith.constant 3.200000e+01 : f32
    %552 = vector.broadcast %cst_229 : f32 to vector<8x1xf32>
    %553 = arith.divf %551, %552 : vector<8x1xf32>
    %cst_230 = arith.constant 9.99999974E-6 : f32
    %554 = vector.broadcast %cst_230 : f32 to vector<8x1xf32>
    %555 = arith.addf %553, %554 : vector<8x1xf32>
    %556 = math.rsqrt %555 : vector<8x1xf32>
    %557 = vector.broadcast %556 : vector<8x1xf32> to vector<8x32xf32>
    %558 = arith.mulf %548, %557 : vector<8x32xf32>
    %559 = vector.broadcast %541 : vector<1x32xf32> to vector<8x32xf32>
    %560 = arith.mulf %558, %559 : vector<8x32xf32>
    %561 = vector.broadcast %542 : vector<1x32xf32> to vector<8x32xf32>
    %562 = arith.addf %560, %561 : vector<8x32xf32>
    %563 = arith.truncf %562 : vector<8x32xf32> to vector<8x32xbf16>
    %c0_231 = arith.constant 0 : index
    %c0_232 = arith.constant 0 : index
    %564 = vector.load %arg45[%c0_231, %c0_232] : memref<32x128xbf16, #tpu.memory_space<vmem>>, vector<32x128xbf16>
    %cst_233 = arith.constant dense<0.000000e+00> : vector<8x128xf32>
    %565 = tpu.matmul %563, %564, %cst_233 {dimension_numbers = #tpu.dot_dimension_numbers<[1], [0], [0], [1], [0, 0, 1, 1], [], []>} : vector<8x32xbf16>, vector<32x128xbf16>, vector<8x128xf32> -> vector<8x128xf32>
    %c0_234 = arith.constant 0 : index
    %c0_235 = arith.constant 0 : index
    %566 = vector.load %arg46[%c0_234, %c0_235] : memref<1x128xf32, #tpu.memory_space<vmem>>, vector<1x128xf32>
    %567 = vector.broadcast %566 : vector<1x128xf32> to vector<8x128xf32>
    %568 = arith.addf %565, %567 : vector<8x128xf32>
    %c0_236 = arith.constant 0 : index
    %c0_237 = arith.constant 0 : index
    %c0_238 = arith.constant 0 : index
    %569 = vector.load %arg47[%c0_236, %c0_237, %c0_238] : memref<1x8x128xf32, #tpu.memory_space<vmem>>, vector<1x8x128xf32>
    %570 = vector.shape_cast %569 : vector<1x8x128xf32> to vector<8x128xf32>
    %571 = vector.shape_cast %568 : vector<8x128xf32> to vector<1x8x128xf32>
    tpu.vector_store %arg47[%c0_236, %c0_237, %c0_238], %571 {strides = array<i32>} : memref<1x8x128xf32, #tpu.memory_space<vmem>>, vector<1x8x128xf32>,
    return
  }
  func.func @transform_0(%arg0: i32, %arg1: memref<2xi32, #tpu.memory_space<smem>>) -> (i32, i32, i32) {
    %c0_i32 = arith.constant 0 : i32
    %c0_i32_0 = arith.constant 0 : i32
    %c0_i32_1 = arith.constant 0 : i32
    return %arg0, %c0_i32, %c0_i32_0 : i32, i32, i32
  }
  func.func @transform_1(%arg0: i32, %arg1: memref<2xi32, #tpu.memory_space<smem>>) -> (i32, i32, i32) {
    %c0_i32 = arith.constant 0 : i32
    %c0_i32_0 = arith.constant 0 : i32
    %c0_i32_1 = arith.constant 0 : i32
    return %arg0, %c0_i32, %c0_i32_0 : i32, i32, i32
  }
  func.func @transform_2(%arg0: i32, %arg1: memref<2xi32, #tpu.memory_space<smem>>) -> (i32, i32) {
    %c0_i32 = arith.constant 0 : i32
    %c0_i32_0 = arith.constant 0 : i32
    %c0_i32_1 = arith.constant 0 : i32
    return %c0_i32, %c0_i32_0 : i32, i32
  }
  func.func @transform_3(%arg0: i32, %arg1: memref<2xi32, #tpu.memory_space<smem>>) -> (i32, i32) {
    %c0_i32 = arith.constant 0 : i32
    %c0_i32_0 = arith.constant 0 : i32
    %c0_i32_1 = arith.constant 0 : i32
    return %c0_i32, %c0_i32_0 : i32, i32
  }
  func.func @transform_4(%arg0: i32, %arg1: memref<2xi32, #tpu.memory_space<smem>>) -> (i32, i32) {
    %c0_i32 = arith.constant 0 : i32
    %c0_i32_0 = arith.constant 0 : i32
    %c0_i32_1 = arith.constant 0 : i32
    return %c0_i32, %c0_i32_0 : i32, i32
  }
  func.func @transform_5(%arg0: i32, %arg1: memref<2xi32, #tpu.memory_space<smem>>) -> (i32, i32) {
    %c0_i32 = arith.constant 0 : i32
    %c0_i32_0 = arith.constant 0 : i32
    %c0_i32_1 = arith.constant 0 : i32
    return %c0_i32, %c0_i32_0 : i32, i32
  }
  func.func @transform_6(%arg0: i32, %arg1: memref<2xi32, #tpu.memory_space<smem>>) -> (i32, i32) {
    %c0_i32 = arith.constant 0 : i32
    %c0_i32_0 = arith.constant 0 : i32
    %c0_i32_1 = arith.constant 0 : i32
    return %c0_i32, %c0_i32_0 : i32, i32
  }
  func.func @transform_7(%arg0: i32, %arg1: memref<2xi32, #tpu.memory_space<smem>>) -> (i32, i32) {
    %c0_i32 = arith.constant 0 : i32
    %c0_i32_0 = arith.constant 0 : i32
    %c0_i32_1 = arith.constant 0 : i32
    return %c0_i32, %c0_i32_0 : i32, i32
  }
  func.func @transform_8(%arg0: i32, %arg1: memref<2xi32, #tpu.memory_space<smem>>) -> (i32, i32) {
    %c0_i32 = arith.constant 0 : i32
    %c0_i32_0 = arith.constant 0 : i32
    %c0_i32_1 = arith.constant 0 : i32
    return %c0_i32, %c0_i32_0 : i32, i32
  }
  func.func @transform_9(%arg0: i32, %arg1: memref<2xi32, #tpu.memory_space<smem>>) -> (i32, i32) {
    %c0_i32 = arith.constant 0 : i32
    %c0_i32_0 = arith.constant 0 : i32
    %c0_i32_1 = arith.constant 0 : i32
    return %c0_i32, %c0_i32_0 : i32, i32
  }
  func.func @transform_10(%arg0: i32, %arg1: memref<2xi32, #tpu.memory_space<smem>>) -> (i32, i32) {
    %c0_i32 = arith.constant 0 : i32
    %c0_i32_0 = arith.constant 0 : i32
    %c0_i32_1 = arith.constant 0 : i32
    return %c0_i32, %c0_i32_0 : i32, i32
  }
  func.func @transform_11(%arg0: i32, %arg1: memref<2xi32, #tpu.memory_space<smem>>) -> (i32, i32) {
    %c0_i32 = arith.constant 0 : i32
    %c0_i32_0 = arith.constant 0 : i32
    %c0_i32_1 = arith.constant 0 : i32
    return %c0_i32, %c0_i32_0 : i32, i32
  }
  func.func @transform_12(%arg0: i32, %arg1: memref<2xi32, #tpu.memory_space<smem>>) -> (i32, i32) {
    %c0_i32 = arith.constant 0 : i32
    %c0_i32_0 = arith.constant 0 : i32
    %c0_i32_1 = arith.constant 0 : i32
    return %c0_i32, %c0_i32_0 : i32, i32
  }
  func.func @transform_13(%arg0: i32, %arg1: memref<2xi32, #tpu.memory_space<smem>>) -> (i32, i32) {
    %c0_i32 = arith.constant 0 : i32
    %c0_i32_0 = arith.constant 0 : i32
    %c0_i32_1 = arith.constant 0 : i32
    return %c0_i32, %c0_i32_0 : i32, i32
  }
  func.func @transform_14(%arg0: i32, %arg1: memref<2xi32, #tpu.memory_space<smem>>) -> (i32, i32) {
    %c0_i32 = arith.constant 0 : i32
    %c0_i32_0 = arith.constant 0 : i32
    %c0_i32_1 = arith.constant 0 : i32
    return %c0_i32, %c0_i32_0 : i32, i32
  }
  func.func @transform_15(%arg0: i32, %arg1: memref<2xi32, #tpu.memory_space<smem>>) -> (i32, i32) {
    %c0_i32 = arith.constant 0 : i32
    %c0_i32_0 = arith.constant 0 : i32
    %c0_i32_1 = arith.constant 0 : i32
    return %c0_i32, %c0_i32_0 : i32, i32
  }
  func.func @transform_16(%arg0: i32, %arg1: memref<2xi32, #tpu.memory_space<smem>>) -> (i32, i32) {
    %c0_i32 = arith.constant 0 : i32
    %c0_i32_0 = arith.constant 0 : i32
    %c0_i32_1 = arith.constant 0 : i32
    return %c0_i32, %c0_i32_0 : i32, i32
  }
  func.func @transform_17(%arg0: i32, %arg1: memref<2xi32, #tpu.memory_space<smem>>) -> (i32, i32) {
    %c0_i32 = arith.constant 0 : i32
    %c0_i32_0 = arith.constant 0 : i32
    %c0_i32_1 = arith.constant 0 : i32
    return %c0_i32, %c0_i32_0 : i32, i32
  }
  func.func @transform_18(%arg0: i32, %arg1: memref<2xi32, #tpu.memory_space<smem>>) -> (i32, i32) {
    %c0_i32 = arith.constant 0 : i32
    %c0_i32_0 = arith.constant 0 : i32
    %c0_i32_1 = arith.constant 0 : i32
    return %c0_i32, %c0_i32_0 : i32, i32
  }
  func.func @transform_19(%arg0: i32, %arg1: memref<2xi32, #tpu.memory_space<smem>>) -> (i32, i32) {
    %c0_i32 = arith.constant 0 : i32
    %c0_i32_0 = arith.constant 0 : i32
    %c0_i32_1 = arith.constant 0 : i32
    return %c0_i32, %c0_i32_0 : i32, i32
  }
  func.func @transform_20(%arg0: i32, %arg1: memref<2xi32, #tpu.memory_space<smem>>) -> (i32, i32) {
    %c0_i32 = arith.constant 0 : i32
    %c0_i32_0 = arith.constant 0 : i32
    %c0_i32_1 = arith.constant 0 : i32
    return %c0_i32, %c0_i32_0 : i32, i32
  }
  func.func @transform_21(%arg0: i32, %arg1: memref<2xi32, #tpu.memory_space<smem>>) -> (i32, i32) {
    %c0_i32 = arith.constant 0 : i32
    %c0_i32_0 = arith.constant 0 : i32
    %c0_i32_1 = arith.constant 0 : i32
    return %c0_i32, %c0_i32_0 : i32, i32
  }
  func.func @transform_22(%arg0: i32, %arg1: memref<2xi32, #tpu.memory_space<smem>>) -> (i32, i32) {
    %c0_i32 = arith.constant 0 : i32
    %c0_i32_0 = arith.constant 0 : i32
    %c0_i32_1 = arith.constant 0 : i32
    return %c0_i32, %c0_i32_0 : i32, i32
  }
  func.func @transform_23(%arg0: i32, %arg1: memref<2xi32, #tpu.memory_space<smem>>) -> (i32, i32) {
    %c0_i32 = arith.constant 0 : i32
    %c0_i32_0 = arith.constant 0 : i32
    %c0_i32_1 = arith.constant 0 : i32
    return %c0_i32, %c0_i32_0 : i32, i32
  }
  func.func @transform_24(%arg0: i32, %arg1: memref<2xi32, #tpu.memory_space<smem>>) -> (i32, i32) {
    %c0_i32 = arith.constant 0 : i32
    %c0_i32_0 = arith.constant 0 : i32
    %c0_i32_1 = arith.constant 0 : i32
    return %c0_i32, %c0_i32_0 : i32, i32
  }
  func.func @transform_25(%arg0: i32, %arg1: memref<2xi32, #tpu.memory_space<smem>>) -> (i32, i32) {
    %c0_i32 = arith.constant 0 : i32
    %c0_i32_0 = arith.constant 0 : i32
    %c0_i32_1 = arith.constant 0 : i32
    return %c0_i32, %c0_i32_0 : i32, i32
  }
  func.func @transform_26(%arg0: i32, %arg1: memref<2xi32, #tpu.memory_space<smem>>) -> (i32, i32) {
    %c0_i32 = arith.constant 0 : i32
    %c0_i32_0 = arith.constant 0 : i32
    %c0_i32_1 = arith.constant 0 : i32
    return %c0_i32, %c0_i32_0 : i32, i32
  }
  func.func @transform_27(%arg0: i32, %arg1: memref<2xi32, #tpu.memory_space<smem>>) -> (i32, i32) {
    %c0_i32 = arith.constant 0 : i32
    %c0_i32_0 = arith.constant 0 : i32
    %c0_i32_1 = arith.constant 0 : i32
    return %c0_i32, %c0_i32_0 : i32, i32
  }
  func.func @transform_28(%arg0: i32, %arg1: memref<2xi32, #tpu.memory_space<smem>>) -> (i32, i32) {
    %c0_i32 = arith.constant 0 : i32
    %c0_i32_0 = arith.constant 0 : i32
    %c0_i32_1 = arith.constant 0 : i32
    return %c0_i32, %c0_i32_0 : i32, i32
  }
  func.func @transform_29(%arg0: i32, %arg1: memref<2xi32, #tpu.memory_space<smem>>) -> (i32, i32) {
    %c0_i32 = arith.constant 0 : i32
    %c0_i32_0 = arith.constant 0 : i32
    %c0_i32_1 = arith.constant 0 : i32
    return %c0_i32, %c0_i32_0 : i32, i32
  }
  func.func @transform_30(%arg0: i32, %arg1: memref<2xi32, #tpu.memory_space<smem>>) -> (i32, i32) {
    %c0_i32 = arith.constant 0 : i32
    %c0_i32_0 = arith.constant 0 : i32
    %c0_i32_1 = arith.constant 0 : i32
    return %c0_i32, %c0_i32_0 : i32, i32
  }
  func.func @transform_31(%arg0: i32, %arg1: memref<2xi32, #tpu.memory_space<smem>>) -> (i32, i32) {
    %c0_i32 = arith.constant 0 : i32
    %c0_i32_0 = arith.constant 0 : i32
    %c0_i32_1 = arith.constant 0 : i32
    return %c0_i32, %c0_i32_0 : i32, i32
  }
  func.func @transform_32(%arg0: i32, %arg1: memref<2xi32, #tpu.memory_space<smem>>) -> (i32, i32) {
    %c0_i32 = arith.constant 0 : i32
    %c0_i32_0 = arith.constant 0 : i32
    %c0_i32_1 = arith.constant 0 : i32
    return %c0_i32, %c0_i32_0 : i32, i32
  }
  func.func @transform_33(%arg0: i32, %arg1: memref<2xi32, #tpu.memory_space<smem>>) -> (i32, i32) {
    %c0_i32 = arith.constant 0 : i32
    %c0_i32_0 = arith.constant 0 : i32
    %c0_i32_1 = arith.constant 0 : i32
    return %c0_i32, %c0_i32_0 : i32, i32
  }
  func.func @transform_34(%arg0: i32, %arg1: memref<2xi32, #tpu.memory_space<smem>>) -> (i32, i32) {
    %c0_i32 = arith.constant 0 : i32
    %c0_i32_0 = arith.constant 0 : i32
    %c0_i32_1 = arith.constant 0 : i32
    return %c0_i32, %c0_i32_0 : i32, i32
  }
  func.func @transform_35(%arg0: i32, %arg1: memref<2xi32, #tpu.memory_space<smem>>) -> (i32, i32) {
    %c0_i32 = arith.constant 0 : i32
    %c0_i32_0 = arith.constant 0 : i32
    %c0_i32_1 = arith.constant 0 : i32
    return %c0_i32, %c0_i32_0 : i32, i32
  }
  func.func @transform_36(%arg0: i32, %arg1: memref<2xi32, #tpu.memory_space<smem>>) -> (i32, i32) {
    %c0_i32 = arith.constant 0 : i32
    %c0_i32_0 = arith.constant 0 : i32
    %c0_i32_1 = arith.constant 0 : i32
    return %c0_i32, %c0_i32_0 : i32, i32
  }
  func.func @transform_37(%arg0: i32, %arg1: memref<2xi32, #tpu.memory_space<smem>>) -> (i32, i32) {
    %c0_i32 = arith.constant 0 : i32
    %c0_i32_0 = arith.constant 0 : i32
    %c0_i32_1 = arith.constant 0 : i32
    return %c0_i32, %c0_i32_0 : i32, i32
  }
  func.func @transform_38(%arg0: i32, %arg1: memref<2xi32, #tpu.memory_space<smem>>) -> (i32, i32) {
    %c0_i32 = arith.constant 0 : i32
    %c0_i32_0 = arith.constant 0 : i32
    %c0_i32_1 = arith.constant 0 : i32
    return %c0_i32, %c0_i32_0 : i32, i32
  }
  func.func @transform_39(%arg0: i32, %arg1: memref<2xi32, #tpu.memory_space<smem>>) -> (i32, i32) {
    %c0_i32 = arith.constant 0 : i32
    %c0_i32_0 = arith.constant 0 : i32
    %c0_i32_1 = arith.constant 0 : i32
    return %c0_i32, %c0_i32_0 : i32, i32
  }
  func.func @transform_40(%arg0: i32, %arg1: memref<2xi32, #tpu.memory_space<smem>>) -> (i32, i32) {
    %c0_i32 = arith.constant 0 : i32
    %c0_i32_0 = arith.constant 0 : i32
    %c0_i32_1 = arith.constant 0 : i32
    return %c0_i32, %c0_i32_0 : i32, i32
  }
  func.func @transform_41(%arg0: i32, %arg1: memref<2xi32, #tpu.memory_space<smem>>) -> (i32, i32) {
    %c0_i32 = arith.constant 0 : i32
    %c0_i32_0 = arith.constant 0 : i32
    %c0_i32_1 = arith.constant 0 : i32
    return %c0_i32, %c0_i32_0 : i32, i32
  }
  func.func @transform_42(%arg0: i32, %arg1: memref<2xi32, #tpu.memory_space<smem>>) -> (i32, i32) {
    %c0_i32 = arith.constant 0 : i32
    %c0_i32_0 = arith.constant 0 : i32
    %c0_i32_1 = arith.constant 0 : i32
    return %c0_i32, %c0_i32_0 : i32, i32
  }
  func.func @transform_43(%arg0: i32, %arg1: memref<2xi32, #tpu.memory_space<smem>>) -> (i32, i32) {
    %c0_i32 = arith.constant 0 : i32
    %c0_i32_0 = arith.constant 0 : i32
    %c0_i32_1 = arith.constant 0 : i32
    return %c0_i32, %c0_i32_0 : i32, i32
  }
  func.func @transform_44(%arg0: i32, %arg1: memref<2xi32, #tpu.memory_space<smem>>) -> (i32, i32) {
    %c0_i32 = arith.constant 0 : i32
    %c0_i32_0 = arith.constant 0 : i32
    %c0_i32_1 = arith.constant 0 : i32
    return %c0_i32, %c0_i32_0 : i32, i32
  }
  func.func @transform_45(%arg0: i32, %arg1: memref<2xi32, #tpu.memory_space<smem>>) -> (i32, i32, i32) {
    %c0_i32 = arith.constant 0 : i32
    %c0_i32_0 = arith.constant 0 : i32
    %c0_i32_1 = arith.constant 0 : i32
    return %arg0, %c0_i32, %c0_i32_0 : i32, i32, i32
  }
}

</mosaic_0001>

<llo_original>
// kernel: decoder_forward.1
$region0: #{decoder_forward.1}
  #allocation0 [shape = 'u32[]', space=smem, size = 0x4, offset = 0x4, fixed_abs, tag = 'smem constant byte address 0x4 - core index']
  #allocation1 [shape = 'u32[72,128]{1,0:T(1,128)}', space=vmem, size = 0x9000, scoped, tag = 'internal scratch']
  #allocation2 [shape = 's32[1]{0}', space=sflag, size = 0x4, scoped, tag = 'scoped memory for decoder_forward.1']
  #allocation3 [shape = 'u8[512]{0}', space=smem, size = 0x200, scoped, tag = 'prefetched SMEM operand 0']
  %s0 = inlined_call_operand.smem [shape: u32[47], index: -1, kind: input, shape index: {}]
  %s1 = sld [smem:[%s0]]
  %s2 = scalar_lea.smem %s0, 1
  %s3 = sld [smem:[%s2]]
  %s4 = scalar_lea.smem %s0, 2
  %s5 = sld [smem:[%s4]]
  %s6 = scalar_lea.smem %s0, 3
  %s7 = sld [smem:[%s6]]
  %s8 = scalar_lea.smem %s0, 4
  %s9 = sld [smem:[%s8]]
  %s10 = scalar_lea.smem %s0, 5
  %s11 = sld [smem:[%s10]]
  %s12 = scalar_lea.smem %s0, 6
  %s13 = sld [smem:[%s12]]
  %s14 = scalar_lea.smem %s0, 7
  %s15 = sld [smem:[%s14]]
  %s16 = scalar_lea.smem %s0, 8
  %s17 = sld [smem:[%s16]]
  %s18 = scalar_lea.smem %s0, 9
  %s19 = sld [smem:[%s18]]
  %s20 = scalar_lea.smem %s0, 10
  %s21 = sld [smem:[%s20]]
  %s22 = scalar_lea.smem %s0, 11
  %s23 = sld [smem:[%s22]]
  %s24 = scalar_lea.smem %s0, 12
  %s25 = sld [smem:[%s24]]
  %s26 = scalar_lea.smem %s0, 13
  %s27 = sld [smem:[%s26]]
  %s28 = scalar_lea.smem %s0, 14
  %s29 = sld [smem:[%s28]]
  %s30 = scalar_lea.smem %s0, 15
  %s31 = sld [smem:[%s30]]
  %s32 = scalar_lea.smem %s0, 16
  %s33 = sld [smem:[%s32]]
  %s34 = scalar_lea.smem %s0, 17
  %s35 = sld [smem:[%s34]]
  %s36 = scalar_lea.smem %s0, 18
  %s37 = sld [smem:[%s36]]
  %s38 = scalar_lea.smem %s0, 19
  %s39 = sld [smem:[%s38]]
  %s40 = scalar_lea.smem %s0, 20
  %s41 = sld [smem:[%s40]]
  %s42 = scalar_lea.smem %s0, 21
  %s43 = sld [smem:[%s42]]
  %s44 = scalar_lea.smem %s0, 22
  %s45 = sld [smem:[%s44]]
  %s46 = scalar_lea.smem %s0, 23
  %s47 = sld [smem:[%s46]]
  %s48 = scalar_lea.smem %s0, 24
  %s49 = sld [smem:[%s48]]
  %s50 = scalar_lea.smem %s0, 25
  %s51 = sld [smem:[%s50]]
  %s52 = scalar_lea.smem %s0, 26
  %s53 = sld [smem:[%s52]]
  %s54 = scalar_lea.smem %s0, 27
  %s55 = sld [smem:[%s54]]
  %s56 = scalar_lea.smem %s0, 28
  %s57 = sld [smem:[%s56]]
  %s58 = scalar_lea.smem %s0, 29
  %s59 = sld [smem:[%s58]]
  %s60 = scalar_lea.smem %s0, 30
  %s61 = sld [smem:[%s60]]
  %s62 = scalar_lea.smem %s0, 31
  %s63 = sld [smem:[%s62]]
  %s64 = scalar_lea.smem %s0, 32
  %s65 = sld [smem:[%s64]]
  %s66 = scalar_lea.smem %s0, 33
  %s67 = sld [smem:[%s66]]
  %s68 = scalar_lea.smem %s0, 34
  %s69 = sld [smem:[%s68]]
  %s70 = scalar_lea.smem %s0, 35
  %s71 = sld [smem:[%s70]]
  %s72 = scalar_lea.smem %s0, 36
  %s73 = sld [smem:[%s72]]
  %s74 = scalar_lea.smem %s0, 37
  %s75 = sld [smem:[%s74]]
  %s76 = scalar_lea.smem %s0, 38
  %s77 = sld [smem:[%s76]]
  %s78 = scalar_lea.smem %s0, 39
  %s79 = sld [smem:[%s78]]
  %s80 = scalar_lea.smem %s0, 40
  %s81 = sld [smem:[%s80]]
  %s82 = scalar_lea.smem %s0, 41
  %s83 = sld [smem:[%s82]]
  %s84 = scalar_lea.smem %s0, 42
  %s85 = sld [smem:[%s84]]
  %s86 = scalar_lea.smem %s0, 43
  %s87 = sld [smem:[%s86]]
  %s88 = scalar_lea.smem %s0, 44
  %s89 = sld [smem:[%s88]]
  %s90 = scalar_lea.smem %s0, 45
  %s91 = sld [smem:[%s90]]
  %s92 = scalar_lea.smem %s0, 46
  %s93 = sld [smem:[%s92]]
  %s94 = sld [smem:[#allocation0]]
  $region309: #{decoder_forward.1} parent=0
    _
  %s96 = ssub.s32 1, %s94
  %s97 = scalar_select 0, %s96, %s94
  %s99 = sshll.u32 %s1, 4
  %s100 = int_to_ptr.vmem [resolvable:$true] %s99
  %102 = dma.vmem_to_smem %s100, 16, [#allocation3], [#allocation2]
  %104 = dma.done [#allocation2], 16
  %105 = sfence
  $region1: #{decoder_forward.1} parent=0
    #allocation4 [shape = 'u8[4096]{0}', space=vmem, size = 0x1000, scoped, tag = 'input window, operand 3, single buffered']
    #allocation5 [shape = 's32[2]{0}', space=sflag, size = 0x8, scoped, tag = 'scoped memory for decoder_forward.1']
    #allocation6 [shape = 's32[2]{0}', space=sflag, size = 0x8, scoped, tag = 'scoped memory for decoder_forward.1']
    #allocation7 [shape = 'u8[512]{0}', space=vmem, size = 0x400, scoped, tag = 'input window, operand 8, single buffered']
    #allocation8 [shape = 's32[1]{0}', space=sflag, size = 0x4, scoped, tag = 'scoped memory for decoder_forward.1']
    #allocation9 [shape = 'u8[512]{0}', space=vmem, size = 0x400, scoped, tag = 'input window, operand 9, single buffered']
    #allocation10 [shape = 'u8[512]{0}', space=vmem, size = 0x400, scoped, tag = 'input window, operand 11, single buffered']
    #allocation11 [shape = 's32[1]{0}', space=sflag, size = 0x4, scoped, tag = 'scoped memory for decoder_forward.1']
    #allocation12 [shape = 'u8[512]{0}', space=vmem, size = 0x400, scoped, tag = 'input window, operand 13, single buffered']
    #allocation13 [shape = 'u8[512]{0}', space=vmem, size = 0x400, scoped, tag = 'input window, operand 15, single buffered']
    #allocation14 [shape = 's32[1]{0}', space=sflag, size = 0x4, scoped, tag = 'scoped memory for decoder_forward.1']
    #allocation15 [shape = 'u8[512]{0}', space=vmem, size = 0x400, scoped, tag = 'input window, operand 16, single buffered']
    #allocation16 [shape = 'u8[512]{0}', space=vmem, size = 0x400, scoped, tag = 'input window, operand 17, single buffered']
    #allocation17 [shape = 's32[1]{0}', space=sflag, size = 0x4, scoped, tag = 'scoped memory for decoder_forward.1']
    #allocation18 [shape = 'u8[512]{0}', space=vmem, size = 0x400, scoped, tag = 'input window, operand 19, single buffered']
    #allocation19 [shape = 'u8[512]{0}', space=vmem, size = 0x400, scoped, tag = 'input window, operand 21, single buffered']
    #allocation20 [shape = 's32[1]{0}', space=sflag, size = 0x4, scoped, tag = 'scoped memory for decoder_forward.1']
    #allocation21 [shape = 'u8[512]{0}', space=vmem, size = 0x400, scoped, tag = 'input window, operand 23, single buffered']
    #allocation22 [shape = 'u8[512]{0}', space=vmem, size = 0x400, scoped, tag = 'input window, operand 29, single buffered']
    #allocation23 [shape = 's32[1]{0}', space=sflag, size = 0x4, scoped, tag = 'scoped memory for decoder_forward.1']
    #allocation24 [shape = 'u8[512]{0}', space=vmem, size = 0x400, scoped, tag = 'input window, operand 31, single buffered']
    #allocation25 [shape = 'u8[512]{0}', space=vmem, size = 0x400, scoped, tag = 'input window, operand 33, single buffered']
    #allocation26 [shape = 's32[1]{0}', space=sflag, size = 0x4, scoped, tag = 'scoped memory for decoder_forward.1']
    #allocation27 [shape = 'u8[512]{0}', space=vmem, size = 0x400, scoped, tag = 'input window, operand 35, single buffered']
    #allocation28 [shape = 'u8[512]{0}', space=vmem, size = 0x400, scoped, tag = 'input window, operand 36, single buffered']
    #allocation29 [shape = 's32[1]{0}', space=sflag, size = 0x4, scoped, tag = 'scoped memory for decoder_forward.1']
    #allocation30 [shape = 'u8[512]{0}', space=vmem, size = 0x400, scoped, tag = 'input window, operand 37, single buffered']
    #allocation31 [shape = 'u8[8192]{0}', space=vmem, size = 0x2000, scoped, tag = 'input window, operand 38, single buffered']
    #allocation32 [shape = 's32[1]{0}', space=sflag, size = 0x4, scoped, tag = 'scoped memory for decoder_forward.1']
    #allocation33 [shape = 'u8[512]{0}', space=vmem, size = 0x400, scoped, tag = 'input window, operand 39, single buffered']
    #allocation34 [shape = 'u8[512]{0}', space=vmem, size = 0x400, scoped, tag = 'input window, operand 41, single buffered']
    #allocation35 [shape = 's32[1]{0}', space=sflag, size = 0x4, scoped, tag = 'scoped memory for decoder_forward.1']
    #allocation36 [shape = 'u8[512]{0}', space=vmem, size = 0x400, scoped, tag = 'input window, operand 42, single buffered']
    #allocation37 [shape = 'u8[512]{0}', space=vmem, size = 0x400, scoped, tag = 'input window, operand 43, single buffered']
    #allocation38 [shape = 's32[1]{0}', space=sflag, size = 0x4, scoped, tag = 'scoped memory for decoder_forward.1']
    #allocation39 [shape = 'u8[8192]{0}', space=vmem, size = 0x2000, scoped, tag = 'input window, operand 44, single buffered']
    #allocation40 [shape = 'u8[512]{0}', space=vmem, size = 0x400, scoped, tag = 'input window, operand 45, single buffered']
    #allocation41 [shape = 's32[1]{0}', space=sflag, size = 0x4, scoped, tag = 'scoped memory for decoder_forward.1']
    #allocation42 [shape = 'u8[8192]{0}', space=vmem, size = 0x2000, scoped, tag = 'output window, operand 0']
    %106 = vsyncpa [#allocation5], 0
    %107 = vsyncpa [#allocation8], 0
    %108 = vsyncpa [#allocation11], 0
    %109 = vsyncpa [#allocation14], 0
    %110 = vsyncpa [#allocation17], 0
    %111 = vsyncpa [#allocation20], 0
    %112 = vsyncpa [#allocation23], 0
    %113 = vsyncpa [#allocation26], 0
    %114 = vsyncpa [#allocation29], 0
    %115 = vsyncpa [#allocation32], 0
    %116 = vsyncpa [#allocation35], 0
    %117 = vsyncpa [#allocation38], 0
    %118 = vsyncpa [#allocation41], 0
    %119 = vsyncpa [#allocation6], 0
    %s120 = scalar_lea.sflag [#allocation6], 1
    %121 = vsyncpa %s120, 0
    loop: start=0, step=1, limit=4
    $region2: #{decoder_forward.1} parent=1 // loop_pre_header
      _
    $region3: #{decoder_forward.1} parent=1 // loop_header
      %s123 = sphi 0, %s127
      %p124 = scmp.ge.s32.totalorder %s123, 4
      %s133 = sphi 0, %s135
      %s136 = sphi 0, %s133
      %s137 = sphi 0, %s136
      %s153 = sphi 0, %s137
      %s159 = sphi 0, %s161
      %s162 = sphi 0, %s159
      %s163 = sphi 0, %s162
      %s179 = sphi 0, %s163
      %s183 = sphi 0, %s183
      %s185 = sphi 0, %s183
      %s186 = sphi 0, %s185
      %s200 = sphi 0, %s186
      %s204 = sphi 0, %s204
      %s206 = sphi 0, %s204
      %s207 = sphi 0, %s206
      %s221 = sphi 0, %s207
      %s225 = sphi 0, %s225
      %s227 = sphi 0, %s225
      %s228 = sphi 0, %s227
      %s242 = sphi 0, %s228
      %s246 = sphi 0, %s246
      %s248 = sphi 0, %s246
      %s249 = sphi 0, %s248
      %s263 = sphi 0, %s249
      %s267 = sphi 0, %s267
      %s269 = sphi 0, %s267
      %s270 = sphi 0, %s269
      %s284 = sphi 0, %s270
      %s288 = sphi 0, %s288
      %s290 = sphi 0, %s288
      %s291 = sphi 0, %s290
      %s305 = sphi 0, %s291
      %s309 = sphi 0, %s309
      %s311 = sphi 0, %s309
      %s312 = sphi 0, %s311
      %s326 = sphi 0, %s312
      %s330 = sphi 0, %s330
      %s332 = sphi 0, %s330
      %s333 = sphi 0, %s332
      %s347 = sphi 0, %s333
      %s351 = sphi 0, %s351
      %s353 = sphi 0, %s351
      %s354 = sphi 0, %s353
      %s368 = sphi 0, %s354
      %s372 = sphi 0, %s372
      %s374 = sphi 0, %s372
      %s375 = sphi 0, %s374
      %s389 = sphi 0, %s375
      %s393 = sphi 0, %s393
      %s395 = sphi 0, %s393
      %s396 = sphi 0, %s395
      %s410 = sphi 0, %s396
      %s414 = sphi 0, %s414
      %s416 = sphi 0, %s414
      %s417 = sphi 0, %s416
      %s431 = sphi 0, %s417
      %s435 = sphi 0, %s435
      %s437 = sphi 0, %s435
      %s438 = sphi 0, %s437
      %s452 = sphi 0, %s438
      %s456 = sphi 0, %s456
      %s458 = sphi 0, %s456
      %s459 = sphi 0, %s458
      %s473 = sphi 0, %s459
      %s477 = sphi 0, %s477
      %s479 = sphi 0, %s477
      %s480 = sphi 0, %s479
      %s494 = sphi 0, %s480
      %s498 = sphi 0, %s498
      %s500 = sphi 0, %s498
      %s501 = sphi 0, %s500
      %s515 = sphi 0, %s501
      %s519 = sphi 0, %s519
      %s521 = sphi 0, %s519
      %s522 = sphi 0, %s521
      %s536 = sphi 0, %s522
      %s540 = sphi 0, %s540
      %s542 = sphi 0, %s540
      %s543 = sphi 0, %s542
      %s557 = sphi 0, %s543
      %s561 = sphi 0, %s561
      %s563 = sphi 0, %s561
      %s564 = sphi 0, %s563
      %s578 = sphi 0, %s564
      %s582 = sphi 0, %s582
      %s584 = sphi 0, %s582
      %s585 = sphi 0, %s584
      %s599 = sphi 0, %s585
      %s603 = sphi 0, %s603
      %s605 = sphi 0, %s603
      %s606 = sphi 0, %s605
      %s620 = sphi 0, %s606
      %s624 = sphi 0, %s624
      %s626 = sphi 0, %s624
      %s627 = sphi 0, %s626
      %s641 = sphi 0, %s627
      %s645 = sphi 0, %s645
      %s647 = sphi 0, %s645
      %s648 = sphi 0, %s647
      %s662 = sphi 0, %s648
      %s666 = sphi 0, %s666
      %s668 = sphi 0, %s666
      %s669 = sphi 0, %s668
      %s683 = sphi 0, %s669
      %s687 = sphi 0, %s687
      %s689 = sphi 0, %s687
      %s690 = sphi 0, %s689
      %s704 = sphi 0, %s690
      %s708 = sphi 0, %s708
      %s710 = sphi 0, %s708
      %s711 = sphi 0, %s710
      %s725 = sphi 0, %s711
      %s729 = sphi 0, %s729
      %s731 = sphi 0, %s729
      %s732 = sphi 0, %s731
      %s746 = sphi 0, %s732
      %s750 = sphi 0, %s750
      %s752 = sphi 0, %s750
      %s753 = sphi 0, %s752
      %s767 = sphi 0, %s753
      %s771 = sphi 0, %s771
      %s773 = sphi 0, %s771
      %s774 = sphi 0, %s773
      %s788 = sphi 0, %s774
      %s792 = sphi 0, %s792
      %s794 = sphi 0, %s792
      %s795 = sphi 0, %s794
      %s809 = sphi 0, %s795
      %s813 = sphi 0, %s813
      %s815 = sphi 0, %s813
      %s816 = sphi 0, %s815
      %s830 = sphi 0, %s816
      %s834 = sphi 0, %s834
      %s836 = sphi 0, %s834
      %s837 = sphi 0, %s836
      %s851 = sphi 0, %s837
      %s855 = sphi 0, %s855
      %s857 = sphi 0, %s855
      %s858 = sphi 0, %s857
      %s872 = sphi 0, %s858
      %s876 = sphi 0, %s876
      %s878 = sphi 0, %s876
      %s879 = sphi 0, %s878
      %s893 = sphi 0, %s879
      %s897 = sphi 0, %s897
      %s899 = sphi 0, %s897
      %s900 = sphi 0, %s899
      %s914 = sphi 0, %s900
      %s918 = sphi 0, %s918
      %s920 = sphi 0, %s918
      %s921 = sphi 0, %s920
      %s935 = sphi 0, %s921
      %s939 = sphi 0, %s939
      %s941 = sphi 0, %s939
      %s942 = sphi 0, %s941
      %s956 = sphi 0, %s942
      %s960 = sphi 0, %s960
      %s962 = sphi 0, %s960
      %s963 = sphi 0, %s962
      %s977 = sphi 0, %s963
      %s981 = sphi 0, %s981
      %s983 = sphi 0, %s981
      %s984 = sphi 0, %s983
      %s998 = sphi 0, %s984
      %s1002 = sphi 0, %s1002
      %s1004 = sphi 0, %s1002
      %s1005 = sphi 0, %s1004
      %s1019 = sphi 0, %s1005
      %s1023 = sphi 0, %s1023
      %s1025 = sphi 0, %s1023
      %s1026 = sphi 0, %s1025
      %s1040 = sphi 0, %s1026
      %s1044 = sphi 0, %s1044
      %s1046 = sphi 0, %s1044
      %s1047 = sphi 0, %s1046
      %s1061 = sphi 0, %s1047
      %s1065 = sphi 0, %s1065
      %s1067 = sphi 0, %s1065
      %s1068 = sphi 0, %s1067
      %s1082 = sphi 0, %s1068
      %s1088 = sphi 0, %s1090
      %s1091 = sphi 0, %s1088
      %s1092 = sphi 0, %s1091
      %s1108 = sphi 0, %s1092
    $region4: #{decoder_forward.1} parent=1 // loop_header_branch
      %126 = sbr.rel (%p124) target = $region8
    $region5: #{decoder_forward.1} parent=1 // loop_body
      %s128 = ssub.s32 %s123, 1
      %s129 = ssub.s32 %s123, 2
      %s130 = sadd.s32 %s123, 1
      %s131 = ssub.s32 %s123, %s130
      %p132 = scmp.eq.s32.totalorder %s131, 0
      %s134 = sadd.s32 %s133, 1
      %s135 = scalar_select %p132, %s133, %s134
      %p138 = pneg %p132
      %p139 = scmp.eq.s32.totalorder %s123, 1
      %p140 = por %p138, %p139
      %p141 = scmp.ne.s32.totalorder %s133, %s136
      %p142 = scmp.eq.s32.totalorder %s123, 0
      %p143 = por %p141, %p142
      %p144 = scmp.ne.s32.totalorder %s133, %s136
      %p145 = scmp.eq.s32.totalorder %s128, 1
      %p146 = por %p144, %p145
      %p147 = scmp.ne.s32.totalorder %s136, %s137
      %p148 = scmp.eq.s32.totalorder %s128, 0
      %p149 = por %p147, %p148
      %p150 = scmp.ne.s32.totalorder %s136, %s137
      %p151 = scmp.eq.s32.totalorder %s129, 1
      %p152 = por %p150, %p151
      %p154 = scmp.ne.s32.totalorder %s137, %s153
      %p155 = scmp.eq.s32.totalorder %s129, 0
      %p156 = por %p154, %p155
      %s157 = ssub.s32 %s123, %s130
      %p158 = scmp.eq.s32.totalorder %s157, 0
      %s160 = sadd.s32 %s159, 1
      %s161 = scalar_select %p158, %s159, %s160
      %p164 = pneg %p158
      %p165 = scmp.eq.s32.totalorder %s123, 1
      %p166 = por %p164, %p165
      %p167 = scmp.ne.s32.totalorder %s159, %s162
      %p168 = scmp.eq.s32.totalorder %s123, 0
      %p169 = por %p167, %p168
      %p170 = scmp.ne.s32.totalorder %s159, %s162
      %p171 = scmp.eq.s32.totalorder %s128, 1
      %p172 = por %p170, %p171
      %p173 = scmp.ne.s32.totalorder %s162, %s163
      %p174 = scmp.eq.s32.totalorder %s128, 0
      %p175 = por %p173, %p174
      %p176 = scmp.ne.s32.totalorder %s162, %s163
      %p177 = scmp.eq.s32.totalorder %s129, 1
      %p178 = por %p176, %p177
      %p180 = scmp.ne.s32.totalorder %s163, %s179
      %p181 = scmp.eq.s32.totalorder %s129, 0
      %p182 = por %p180, %p181
      %s184 = sadd.s32 %s183, 1
      %p187 = scmp.eq.s32.totalorder %s123, 1
      %p188 = scmp.ne.s32.totalorder %s183, %s185
      %p189 = scmp.eq.s32.totalorder %s123, 0
      %p190 = por %p188, %p189
      %p191 = scmp.ne.s32.totalorder %s183, %s185
      %p192 = scmp.eq.s32.totalorder %s128, 1
      %p193 = por %p191, %p192
      %p194 = scmp.ne.s32.totalorder %s185, %s186
      %p195 = scmp.eq.s32.totalorder %s128, 0
      %p196 = por %p194, %p195
      %p197 = scmp.ne.s32.totalorder %s185, %s186
      %p198 = scmp.eq.s32.totalorder %s129, 1
      %p199 = por %p197, %p198
      %p201 = scmp.ne.s32.totalorder %s186, %s200
      %p202 = scmp.eq.s32.totalorder %s129, 0
      %p203 = por %p201, %p202
      %s205 = sadd.s32 %s204, 1
      %p208 = scmp.eq.s32.totalorder %s123, 1
      %p209 = scmp.ne.s32.totalorder %s204, %s206
      %p210 = scmp.eq.s32.totalorder %s123, 0
      %p211 = por %p209, %p210
      %p212 = scmp.ne.s32.totalorder %s204, %s206
      %p213 = scmp.eq.s32.totalorder %s128, 1
      %p214 = por %p212, %p213
      %p215 = scmp.ne.s32.totalorder %s206, %s207
      %p216 = scmp.eq.s32.totalorder %s128, 0
      %p217 = por %p215, %p216
      %p218 = scmp.ne.s32.totalorder %s206, %s207
      %p219 = scmp.eq.s32.totalorder %s129, 1
      %p220 = por %p218, %p219
      %p222 = scmp.ne.s32.totalorder %s207, %s221
      %p223 = scmp.eq.s32.totalorder %s129, 0
      %p224 = por %p222, %p223
      %s226 = sadd.s32 %s225, 1
      %p229 = scmp.eq.s32.totalorder %s123, 1
      %p230 = scmp.ne.s32.totalorder %s225, %s227
      %p231 = scmp.eq.s32.totalorder %s123, 0
      %p232 = por %p230, %p231
      %p233 = scmp.ne.s32.totalorder %s225, %s227
      %p234 = scmp.eq.s32.totalorder %s128, 1
      %p235 = por %p233, %p234
      %p236 = scmp.ne.s32.totalorder %s227, %s228
      %p237 = scmp.eq.s32.totalorder %s128, 0
      %p238 = por %p236, %p237
      %p239 = scmp.ne.s32.totalorder %s227, %s228
      %p240 = scmp.eq.s32.totalorder %s129, 1
      %p241 = por %p239, %p240
      %p243 = scmp.ne.s32.totalorder %s228, %s242
      %p244 = scmp.eq.s32.totalorder %s129, 0
      %p245 = por %p243, %p244
      %s247 = sadd.s32 %s246, 1
      %p250 = scmp.eq.s32.totalorder %s123, 1
      %p251 = scmp.ne.s32.totalorder %s246, %s248
      %p252 = scmp.eq.s32.totalorder %s123, 0
      %p253 = por %p251, %p252
      %p254 = scmp.ne.s32.totalorder %s246, %s248
      %p255 = scmp.eq.s32.totalorder %s128, 1
      %p256 = por %p254, %p255
      %p257 = scmp.ne.s32.totalorder %s248, %s249
      %p258 = scmp.eq.s32.totalorder %s128, 0
      %p259 = por %p257, %p258
      %p260 = scmp.ne.s32.totalorder %s248, %s249
      %p261 = scmp.eq.s32.totalorder %s129, 1
      %p262 = por %p260, %p261
      %p264 = scmp.ne.s32.totalorder %s249, %s263
      %p265 = scmp.eq.s32.totalorder %s129, 0
      %p266 = por %p264, %p265
      %s268 = sadd.s32 %s267, 1
      %p271 = scmp.eq.s32.totalorder %s123, 1
      %p272 = scmp.ne.s32.totalorder %s267, %s269
      %p273 = scmp.eq.s32.totalorder %s123, 0
      %p274 = por %p272, %p273
      %p275 = scmp.ne.s32.totalorder %s267, %s269
      %p276 = scmp.eq.s32.totalorder %s128, 1
      %p277 = por %p275, %p276
      %p278 = scmp.ne.s32.totalorder %s269, %s270
      %p279 = scmp.eq.s32.totalorder %s128, 0
      %p280 = por %p278, %p279
      %p281 = scmp.ne.s32.totalorder %s269, %s270
      %p282 = scmp.eq.s32.totalorder %s129, 1
      %p283 = por %p281, %p282
      %p285 = scmp.ne.s32.totalorder %s270, %s284
      %p286 = scmp.eq.s32.totalorder %s129, 0
      %p287 = por %p285, %p286
      %s289 = sadd.s32 %s288, 1
      %p292 = scmp.eq.s32.totalorder %s123, 1
      %p293 = scmp.ne.s32.totalorder %s288, %s290
      %p294 = scmp.eq.s32.totalorder %s123, 0
      %p295 = por %p293, %p294
      %p296 = scmp.ne.s32.totalorder %s288, %s290
      %p297 = scmp.eq.s32.totalorder %s128, 1
      %p298 = por %p296, %p297
      %p299 = scmp.ne.s32.totalorder %s290, %s291
      %p300 = scmp.eq.s32.totalorder %s128, 0
      %p301 = por %p299, %p300
      %p302 = scmp.ne.s32.totalorder %s290, %s291
      %p303 = scmp.eq.s32.totalorder %s129, 1
      %p304 = por %p302, %p303
      %p306 = scmp.ne.s32.totalorder %s291, %s305
      %p307 = scmp.eq.s32.totalorder %s129, 0
      %p308 = por %p306, %p307
      %s310 = sadd.s32 %s309, 1
      %p313 = scmp.eq.s32.totalorder %s123, 1
      %p314 = scmp.ne.s32.totalorder %s309, %s311
      %p315 = scmp.eq.s32.totalorder %s123, 0
      %p316 = por %p314, %p315
      %p317 = scmp.ne.s32.totalorder %s309, %s311
      %p318 = scmp.eq.s32.totalorder %s128, 1
      %p319 = por %p317, %p318
      %p320 = scmp.ne.s32.totalorder %s311, %s312
      %p321 = scmp.eq.s32.totalorder %s128, 0
      %p322 = por %p320, %p321
      %p323 = scmp.ne.s32.totalorder %s311, %s312
      %p324 = scmp.eq.s32.totalorder %s129, 1
      %p325 = por %p323, %p324
      %p327 = scmp.ne.s32.totalorder %s312, %s326
      %p328 = scmp.eq.s32.totalorder %s129, 0
      %p329 = por %p327, %p328
      %s331 = sadd.s32 %s330, 1
      %p334 = scmp.eq.s32.totalorder %s123, 1
      %p335 = scmp.ne.s32.totalorder %s330, %s332
      %p336 = scmp.eq.s32.totalorder %s123, 0
      %p337 = por %p335, %p336
      %p338 = scmp.ne.s32.totalorder %s330, %s332
      %p339 = scmp.eq.s32.totalorder %s128, 1
      %p340 = por %p338, %p339
      %p341 = scmp.ne.s32.totalorder %s332, %s333
      %p342 = scmp.eq.s32.totalorder %s128, 0
      %p343 = por %p341, %p342
      %p344 = scmp.ne.s32.totalorder %s332, %s333
      %p345 = scmp.eq.s32.totalorder %s129, 1
      %p346 = por %p344, %p345
      %p348 = scmp.ne.s32.totalorder %s333, %s347
      %p349 = scmp.eq.s32.totalorder %s129, 0
      %p350 = por %p348, %p349
      %s352 = sadd.s32 %s351, 1
      %p355 = scmp.eq.s32.totalorder %s123, 1
      %p356 = scmp.ne.s32.totalorder %s351, %s353
      %p357 = scmp.eq.s32.totalorder %s123, 0
      %p358 = por %p356, %p357
      %p359 = scmp.ne.s32.totalorder %s351, %s353
      %p360 = scmp.eq.s32.totalorder %s128, 1
      %p361 = por %p359, %p360
      %p362 = scmp.ne.s32.totalorder %s353, %s354
      %p363 = scmp.eq.s32.totalorder %s128, 0
      %p364 = por %p362, %p363
      %p365 = scmp.ne.s32.totalorder %s353, %s354
      %p366 = scmp.eq.s32.totalorder %s129, 1
      %p367 = por %p365, %p366
      %p369 = scmp.ne.s32.totalorder %s354, %s368
      %p370 = scmp.eq.s32.totalorder %s129, 0
      %p371 = por %p369, %p370
      %s373 = sadd.s32 %s372, 1
      %p376 = scmp.eq.s32.totalorder %s123, 1
      %p377 = scmp.ne.s32.totalorder %s372, %s374
      %p378 = scmp.eq.s32.totalorder %s123, 0
      %p379 = por %p377, %p378
      %p380 = scmp.ne.s32.totalorder %s372, %s374
      %p381 = scmp.eq.s32.totalorder %s128, 1
      %p382 = por %p380, %p381
      %p383 = scmp.ne.s32.totalorder %s374, %s375
      %p384 = scmp.eq.s32.totalorder %s128, 0
      %p385 = por %p383, %p384
      %p386 = scmp.ne.s32.totalorder %s374, %s375
      %p387 = scmp.eq.s32.totalorder %s129, 1
      %p388 = por %p386, %p387
      %p390 = scmp.ne.s32.totalorder %s375, %s389
      %p391 = scmp.eq.s32.totalorder %s129, 0
      %p392 = por %p390, %p391
      %s394 = sadd.s32 %s393, 1
      %p397 = scmp.eq.s32.totalorder %s123, 1
      %p398 = scmp.ne.s32.totalorder %s393, %s395
      %p399 = scmp.eq.s32.totalorder %s123, 0
      %p400 = por %p398, %p399
      %p401 = scmp.ne.s32.totalorder %s393, %s395
      %p402 = scmp.eq.s32.totalorder %s128, 1
      %p403 = por %p401, %p402
      %p404 = scmp.ne.s32.totalorder %s395, %s396
      %p405 = scmp.eq.s32.totalorder %s128, 0
      %p406 = por %p404, %p405
      %p407 = scmp.ne.s32.totalorder %s395, %s396
      %p408 = scmp.eq.s32.totalorder %s129, 1
      %p409 = por %p407, %p408
      %p411 = scmp.ne.s32.totalorder %s396, %s410
      %p412 = scmp.eq.s32.totalorder %s129, 0
      %p413 = por %p411, %p412
      %s415 = sadd.s32 %s414, 1
      %p418 = scmp.eq.s32.totalorder %s123, 1
      %p419 = scmp.ne.s32.totalorder %s414, %s416
      %p420 = scmp.eq.s32.totalorder %s123, 0
      %p421 = por %p419, %p420
      %p422 = scmp.ne.s32.totalorder %s414, %s416
      %p423 = scmp.eq.s32.totalorder %s128, 1
      %p424 = por %p422, %p423
      %p425 = scmp.ne.s32.totalorder %s416, %s417
      %p426 = scmp.eq.s32.totalorder %s128, 0
      %p427 = por %p425, %p426
      %p428 = scmp.ne.s32.totalorder %s416, %s417
      %p429 = scmp.eq.s32.totalorder %s129, 1
      %p430 = por %p428, %p429
      %p432 = scmp.ne.s32.totalorder %s417, %s431
      %p433 = scmp.eq.s32.totalorder %s129, 0
      %p434 = por %p432, %p433
      %s436 = sadd.s32 %s435, 1
      %p439 = scmp.eq.s32.totalorder %s123, 1
      %p440 = scmp.ne.s32.totalorder %s435, %s437
      %p441 = scmp.eq.s32.totalorder %s123, 0
      %p442 = por %p440, %p441
      %p443 = scmp.ne.s32.totalorder %s435, %s437
      %p444 = scmp.eq.s32.totalorder %s128, 1
      %p445 = por %p443, %p444
      %p446 = scmp.ne.s32.totalorder %s437, %s438
      %p447 = scmp.eq.s32.totalorder %s128, 0
      %p448 = por %p446, %p447
      %p449 = scmp.ne.s32.totalorder %s437, %s438
      %p450 = scmp.eq.s32.totalorder %s129, 1
      %p451 = por %p449, %p450
      %p453 = scmp.ne.s32.totalorder %s438, %s452
      %p454 = scmp.eq.s32.totalorder %s129, 0
      %p455 = por %p453, %p454
      %s457 = sadd.s32 %s456, 1
      %p460 = scmp.eq.s32.totalorder %s123, 1
      %p461 = scmp.ne.s32.totalorder %s456, %s458
      %p462 = scmp.eq.s32.totalorder %s123, 0
      %p463 = por %p461, %p462
      %p464 = scmp.ne.s32.totalorder %s456, %s458
      %p465 = scmp.eq.s32.totalorder %s128, 1
      %p466 = por %p464, %p465
      %p467 = scmp.ne.s32.totalorder %s458, %s459
      %p468 = scmp.eq.s32.totalorder %s128, 0
      %p469 = por %p467, %p468
      %p470 = scmp.ne.s32.totalorder %s458, %s459
      %p471 = scmp.eq.s32.totalorder %s129, 1
      %p472 = por %p470, %p471
      %p474 = scmp.ne.s32.totalorder %s459, %s473
      %p475 = scmp.eq.s32.totalorder %s129, 0
      %p476 = por %p474, %p475
      %s478 = sadd.s32 %s477, 1
      %p481 = scmp.eq.s32.totalorder %s123, 1
      %p482 = scmp.ne.s32.totalorder %s477, %s479
      %p483 = scmp.eq.s32.totalorder %s123, 0
      %p484 = por %p482, %p483
      %p485 = scmp.ne.s32.totalorder %s477, %s479
      %p486 = scmp.eq.s32.totalorder %s128, 1
      %p487 = por %p485, %p486
      %p488 = scmp.ne.s32.totalorder %s479, %s480
      %p489 = scmp.eq.s32.totalorder %s128, 0
      %p490 = por %p488, %p489
      %p491 = scmp.ne.s32.totalorder %s479, %s480
      %p492 = scmp.eq.s32.totalorder %s129, 1
      %p493 = por %p491, %p492
      %p495 = scmp.ne.s32.totalorder %s480, %s494
      %p496 = scmp.eq.s32.totalorder %s129, 0
      %p497 = por %p495, %p496
      %s499 = sadd.s32 %s498, 1
      %p502 = scmp.eq.s32.totalorder %s123, 1
      %p503 = scmp.ne.s32.totalorder %s498, %s500
      %p504 = scmp.eq.s32.totalorder %s123, 0
      %p505 = por %p503, %p504
      %p506 = scmp.ne.s32.totalorder %s498, %s500
      %p507 = scmp.eq.s32.totalorder %s128, 1
      %p508 = por %p506, %p507
      %p509 = scmp.ne.s32.totalorder %s500, %s501
      %p510 = scmp.eq.s32.totalorder %s128, 0
      %p511 = por %p509, %p510
      %p512 = scmp.ne.s32.totalorder %s500, %s501
      %p513 = scmp.eq.s32.totalorder %s129, 1
      %p514 = por %p512, %p513
      %p516 = scmp.ne.s32.totalorder %s501, %s515
      %p517 = scmp.eq.s32.totalorder %s129, 0
      %p518 = por %p516, %p517
      %s520 = sadd.s32 %s519, 1
      %p523 = scmp.eq.s32.totalorder %s123, 1
      %p524 = scmp.ne.s32.totalorder %s519, %s521
      %p525 = scmp.eq.s32.totalorder %s123, 0
      %p526 = por %p524, %p525
      %p527 = scmp.ne.s32.totalorder %s519, %s521
      %p528 = scmp.eq.s32.totalorder %s128, 1
      %p529 = por %p527, %p528
      %p530 = scmp.ne.s32.totalorder %s521, %s522
      %p531 = scmp.eq.s32.totalorder %s128, 0
      %p532 = por %p530, %p531
      %p533 = scmp.ne.s32.totalorder %s521, %s522
      %p534 = scmp.eq.s32.totalorder %s129, 1
      %p535 = por %p533, %p534
      %p537 = scmp.ne.s32.totalorder %s522, %s536
      %p538 = scmp.eq.s32.totalorder %s129, 0
      %p539 = por %p537, %p538
      %s541 = sadd.s32 %s540, 1
      %p544 = scmp.eq.s32.totalorder %s123, 1
      %p545 = scmp.ne.s32.totalorder %s540, %s542
      %p546 = scmp.eq.s32.totalorder %s123, 0
      %p547 = por %p545, %p546
      %p548 = scmp.ne.s32.totalorder %s540, %s542
      %p549 = scmp.eq.s32.totalorder %s128, 1
      %p550 = por %p548, %p549
      %p551 = scmp.ne.s32.totalorder %s542, %s543
      %p552 = scmp.eq.s32.totalorder %s128, 0
      %p553 = por %p551, %p552
      %p554 = scmp.ne.s32.totalorder %s542, %s543
      %p555 = scmp.eq.s32.totalorder %s129, 1
      %p556 = por %p554, %p555
      %p558 = scmp.ne.s32.totalorder %s543, %s557
      %p559 = scmp.eq.s32.totalorder %s129, 0
      %p560 = por %p558, %p559
      %s562 = sadd.s32 %s561, 1
      %p565 = scmp.eq.s32.totalorder %s123, 1
      %p566 = scmp.ne.s32.totalorder %s561, %s563
      %p567 = scmp.eq.s32.totalorder %s123, 0
      %p568 = por %p566, %p567
      %p569 = scmp.ne.s32.totalorder %s561, %s563
      %p570 = scmp.eq.s32.totalorder %s128, 1
      %p571 = por %p569, %p570
      %p572 = scmp.ne.s32.totalorder %s563, %s564
      %p573 = scmp.eq.s32.totalorder %s128, 0
      %p574 = por %p572, %p573
      %p575 = scmp.ne.s32.totalorder %s563, %s564
      %p576 = scmp.eq.s32.totalorder %s129, 1
      %p577 = por %p575, %p576
      %p579 = scmp.ne.s32.totalorder %s564, %s578
      %p580 = scmp.eq.s32.totalorder %s129, 0
      %p581 = por %p579, %p580
      %s583 = sadd.s32 %s582, 1
      %p586 = scmp.eq.s32.totalorder %s123, 1
      %p587 = scmp.ne.s32.totalorder %s582, %s584
      %p588 = scmp.eq.s32.totalorder %s123, 0
      %p589 = por %p587, %p588
      %p590 = scmp.ne.s32.totalorder %s582, %s584
      %p591 = scmp.eq.s32.totalorder %s128, 1
      %p592 = por %p590, %p591
      %p593 = scmp.ne.s32.totalorder %s584, %s585
      %p594 = scmp.eq.s32.totalorder %s128, 0
      %p595 = por %p593, %p594
      %p596 = scmp.ne.s32.totalorder %s584, %s585
      %p597 = scmp.eq.s32.totalorder %s129, 1
      %p598 = por %p596, %p597
      %p600 = scmp.ne.s32.totalorder %s585, %s599
      %p601 = scmp.eq.s32.totalorder %s129, 0
      %p602 = por %p600, %p601
      %s604 = sadd.s32 %s603, 1
      %p607 = scmp.eq.s32.totalorder %s123, 1
      %p608 = scmp.ne.s32.totalorder %s603, %s605
      %p609 = scmp.eq.s32.totalorder %s123, 0
      %p610 = por %p608, %p609
      %p611 = scmp.ne.s32.totalorder %s603, %s605
      %p612 = scmp.eq.s32.totalorder %s128, 1
      %p613 = por %p611, %p612
      %p614 = scmp.ne.s32.totalorder %s605, %s606
      %p615 = scmp.eq.s32.totalorder %s128, 0
      %p616 = por %p614, %p615
      %p617 = scmp.ne.s32.totalorder %s605, %s606
      %p618 = scmp.eq.s32.totalorder %s129, 1
      %p619 = por %p617, %p618
      %p621 = scmp.ne.s32.totalorder %s606, %s620
      %p622 = scmp.eq.s32.totalorder %s129, 0
      %p623 = por %p621, %p622
      %s625 = sadd.s32 %s624, 1
      %p628 = scmp.eq.s32.totalorder %s123, 1
      %p629 = scmp.ne.s32.totalorder %s624, %s626
      %p630 = scmp.eq.s32.totalorder %s123, 0
      %p631 = por %p629, %p630
      %p632 = scmp.ne.s32.totalorder %s624, %s626
      %p633 = scmp.eq.s32.totalorder %s128, 1
      %p634 = por %p632, %p633
      %p635 = scmp.ne.s32.totalorder %s626, %s627
      %p636 = scmp.eq.s32.totalorder %s128, 0
      %p637 = por %p635, %p636
      %p638 = scmp.ne.s32.totalorder %s626, %s627
      %p639 = scmp.eq.s32.totalorder %s129, 1
      %p640 = por %p638, %p639
      %p642 = scmp.ne.s32.totalorder %s627, %s641
      %p643 = scmp.eq.s32.totalorder %s129, 0
      %p644 = por %p642, %p643
      %s646 = sadd.s32 %s645, 1
      %p649 = scmp.eq.s32.totalorder %s123, 1
      %p650 = scmp.ne.s32.totalorder %s645, %s647
      %p651 = scmp.eq.s32.totalorder %s123, 0
      %p652 = por %p650, %p651
      %p653 = scmp.ne.s32.totalorder %s645, %s647
      %p654 = scmp.eq.s32.totalorder %s128, 1
      %p655 = por %p653, %p654
      %p656 = scmp.ne.s32.totalorder %s647, %s648
      %p657 = scmp.eq.s32.totalorder %s128, 0
      %p658 = por %p656, %p657
      %p659 = scmp.ne.s32.totalorder %s647, %s648
      %p660 = scmp.eq.s32.totalorder %s129, 1
      %p661 = por %p659, %p660
      %p663 = scmp.ne.s32.totalorder %s648, %s662
      %p664 = scmp.eq.s32.totalorder %s129, 0
      %p665 = por %p663, %p664
      %s667 = sadd.s32 %s666, 1
      %p670 = scmp.eq.s32.totalorder %s123, 1
      %p671 = scmp.ne.s32.totalorder %s666, %s668
      %p672 = scmp.eq.s32.totalorder %s123, 0
      %p673 = por %p671, %p672
      %p674 = scmp.ne.s32.totalorder %s666, %s668
      %p675 = scmp.eq.s32.totalorder %s128, 1
      %p676 = por %p674, %p675
      %p677 = scmp.ne.s32.totalorder %s668, %s669
      %p678 = scmp.eq.s32.totalorder %s128, 0
      %p679 = por %p677, %p678
      %p680 = scmp.ne.s32.totalorder %s668, %s669
      %p681 = scmp.eq.s32.totalorder %s129, 1
      %p682 = por %p680, %p681
      %p684 = scmp.ne.s32.totalorder %s669, %s683
      %p685 = scmp.eq.s32.totalorder %s129, 0
      %p686 = por %p684, %p685
      %s688 = sadd.s32 %s687, 1
      %p691 = scmp.eq.s32.totalorder %s123, 1
      %p692 = scmp.ne.s32.totalorder %s687, %s689
      %p693 = scmp.eq.s32.totalorder %s123, 0
      %p694 = por %p692, %p693
      %p695 = scmp.ne.s32.totalorder %s687, %s689
      %p696 = scmp.eq.s32.totalorder %s128, 1
      %p697 = por %p695, %p696
      %p698 = scmp.ne.s32.totalorder %s689, %s690
      %p699 = scmp.eq.s32.totalorder %s128, 0
      %p700 = por %p698, %p699
      %p701 = scmp.ne.s32.totalorder %s689, %s690
      %p702 = scmp.eq.s32.totalorder %s129, 1
      %p703 = por %p701, %p702
      %p705 = scmp.ne.s32.totalorder %s690, %s704
      %p706 = scmp.eq.s32.totalorder %s129, 0
      %p707 = por %p705, %p706
      %s709 = sadd.s32 %s708, 1
      %p712 = scmp.eq.s32.totalorder %s123, 1
      %p713 = scmp.ne.s32.totalorder %s708, %s710
      %p714 = scmp.eq.s32.totalorder %s123, 0
      %p715 = por %p713, %p714
      %p716 = scmp.ne.s32.totalorder %s708, %s710
      %p717 = scmp.eq.s32.totalorder %s128, 1
      %p718 = por %p716, %p717
      %p719 = scmp.ne.s32.totalorder %s710, %s711
      %p720 = scmp.eq.s32.totalorder %s128, 0
      %p721 = por %p719, %p720
      %p722 = scmp.ne.s32.totalorder %s710, %s711
      %p723 = scmp.eq.s32.totalorder %s129, 1
      %p724 = por %p722, %p723
      %p726 = scmp.ne.s32.totalorder %s711, %s725
      %p727 = scmp.eq.s32.totalorder %s129, 0
      %p728 = por %p726, %p727
      %s730 = sadd.s32 %s729, 1
      %p733 = scmp.eq.s32.totalorder %s123, 1
      %p734 = scmp.ne.s32.totalorder %s729, %s731
      %p735 = scmp.eq.s32.totalorder %s123, 0
      %p736 = por %p734, %p735
      %p737 = scmp.ne.s32.totalorder %s729, %s731
      %p738 = scmp.eq.s32.totalorder %s128, 1
      %p739 = por %p737, %p738
      %p740 = scmp.ne.s32.totalorder %s731, %s732
      %p741 = scmp.eq.s32.totalorder %s128, 0
      %p742 = por %p740, %p741
      %p743 = scmp.ne.s32.totalorder %s731, %s732
      %p744 = scmp.eq.s32.totalorder %s129, 1
      %p745 = por %p743, %p744
      %p747 = scmp.ne.s32.totalorder %s732, %s746
      %p748 = scmp.eq.s32.totalorder %s129, 0
      %p749 = por %p747, %p748
      %s751 = sadd.s32 %s750, 1
      %p754 = scmp.eq.s32.totalorder %s123, 1
      %p755 = scmp.ne.s32.totalorder %s750, %s752
      %p756 = scmp.eq.s32.totalorder %s123, 0
      %p757 = por %p755, %p756
      %p758 = scmp.ne.s32.totalorder %s750, %s752
      %p759 = scmp.eq.s32.totalorder %s128, 1
      %p760 = por %p758, %p759
      %p761 = scmp.ne.s32.totalorder %s752, %s753
      %p762 = scmp.eq.s32.totalorder %s128, 0
      %p763 = por %p761, %p762
      %p764 = scmp.ne.s32.totalorder %s752, %s753
      %p765 = scmp.eq.s32.totalorder %s129, 1
      %p766 = por %p764, %p765
      %p768 = scmp.ne.s32.totalorder %s753, %s767
      %p769 = scmp.eq.s32.totalorder %s129, 0
      %p770 = por %p768, %p769
      %s772 = sadd.s32 %s771, 1
      %p775 = scmp.eq.s32.totalorder %s123, 1
      %p776 = scmp.ne.s32.totalorder %s771, %s773
      %p777 = scmp.eq.s32.totalorder %s123, 0
      %p778 = por %p776, %p777
      %p779 = scmp.ne.s32.totalorder %s771, %s773
      %p780 = scmp.eq.s32.totalorder %s128, 1
      %p781 = por %p779, %p780
      %p782 = scmp.ne.s32.totalorder %s773, %s774
      %p783 = scmp.eq.s32.totalorder %s128, 0
      %p784 = por %p782, %p783
      %p785 = scmp.ne.s32.totalorder %s773, %s774
      %p786 = scmp.eq.s32.totalorder %s129, 1
      %p787 = por %p785, %p786
      %p789 = scmp.ne.s32.totalorder %s774, %s788
      %p790 = scmp.eq.s32.totalorder %s129, 0
      %p791 = por %p789, %p790
      %s793 = sadd.s32 %s792, 1
      %p796 = scmp.eq.s32.totalorder %s123, 1
      %p797 = scmp.ne.s32.totalorder %s792, %s794
      %p798 = scmp.eq.s32.totalorder %s123, 0
      %p799 = por %p797, %p798
      %p800 = scmp.ne.s32.totalorder %s792, %s794
      %p801 = scmp.eq.s32.totalorder %s128, 1
      %p802 = por %p800, %p801
      %p803 = scmp.ne.s32.totalorder %s794, %s795
      %p804 = scmp.eq.s32.totalorder %s128, 0
      %p805 = por %p803, %p804
      %p806 = scmp.ne.s32.totalorder %s794, %s795
      %p807 = scmp.eq.s32.totalorder %s129, 1
      %p808 = por %p806, %p807
      %p810 = scmp.ne.s32.totalorder %s795, %s809
      %p811 = scmp.eq.s32.totalorder %s129, 0
      %p812 = por %p810, %p811
      %s814 = sadd.s32 %s813, 1
      %p817 = scmp.eq.s32.totalorder %s123, 1
      %p818 = scmp.ne.s32.totalorder %s813, %s815
      %p819 = scmp.eq.s32.totalorder %s123, 0
      %p820 = por %p818, %p819
      %p821 = scmp.ne.s32.totalorder %s813, %s815
      %p822 = scmp.eq.s32.totalorder %s128, 1
      %p823 = por %p821, %p822
      %p824 = scmp.ne.s32.totalorder %s815, %s816
      %p825 = scmp.eq.s32.totalorder %s128, 0
      %p826 = por %p824, %p825
      %p827 = scmp.ne.s32.totalorder %s815, %s816
      %p828 = scmp.eq.s32.totalorder %s129, 1
      %p829 = por %p827, %p828
      %p831 = scmp.ne.s32.totalorder %s816, %s830
      %p832 = scmp.eq.s32.totalorder %s129, 0
      %p833 = por %p831, %p832
      %s835 = sadd.s32 %s834, 1
      %p838 = scmp.eq.s32.totalorder %s123, 1
      %p839 = scmp.ne.s32.totalorder %s834, %s836
      %p840 = scmp.eq.s32.totalorder %s123, 0
      %p841 = por %p839, %p840
      %p842 = scmp.ne.s32.totalorder %s834, %s836
      %p843 = scmp.eq.s32.totalorder %s128, 1
      %p844 = por %p842, %p843
      %p845 = scmp.ne.s32.totalorder %s836, %s837
      %p846 = scmp.eq.s32.totalorder %s128, 0
      %p847 = por %p845, %p846
      %p848 = scmp.ne.s32.totalorder %s836, %s837
      %p849 = scmp.eq.s32.totalorder %s129, 1
      %p850 = por %p848, %p849
      %p852 = scmp.ne.s32.totalorder %s837, %s851
      %p853 = scmp.eq.s32.totalorder %s129, 0
      %p854 = por %p852, %p853
      %s856 = sadd.s32 %s855, 1
      %p859 = scmp.eq.s32.totalorder %s123, 1
      %p860 = scmp.ne.s32.totalorder %s855, %s857
      %p861 = scmp.eq.s32.totalorder %s123, 0
      %p862 = por %p860, %p861
      %p863 = scmp.ne.s32.totalorder %s855, %s857
      %p864 = scmp.eq.s32.totalorder %s128, 1
      %p865 = por %p863, %p864
      %p866 = scmp.ne.s32.totalorder %s857, %s858
      %p867 = scmp.eq.s32.totalorder %s128, 0
      %p868 = por %p866, %p867
      %p869 = scmp.ne.s32.totalorder %s857, %s858
      %p870 = scmp.eq.s32.totalorder %s129, 1
      %p871 = por %p869, %p870
      %p873 = scmp.ne.s32.totalorder %s858, %s872
      %p874 = scmp.eq.s32.totalorder %s129, 0
      %p875 = por %p873, %p874
      %s877 = sadd.s32 %s876, 1
      %p880 = scmp.eq.s32.totalorder %s123, 1
      %p881 = scmp.ne.s32.totalorder %s876, %s878
      %p882 = scmp.eq.s32.totalorder %s123, 0
      %p883 = por %p881, %p882
      %p884 = scmp.ne.s32.totalorder %s876, %s878
      %p885 = scmp.eq.s32.totalorder %s128, 1
      %p886 = por %p884, %p885
      %p887 = scmp.ne.s32.totalorder %s878, %s879
      %p888 = scmp.eq.s32.totalorder %s128, 0
      %p889 = por %p887, %p888
      %p890 = scmp.ne.s32.totalorder %s878, %s879
      %p891 = scmp.eq.s32.totalorder %s129, 1
      %p892 = por %p890, %p891
      %p894 = scmp.ne.s32.totalorder %s879, %s893
      %p895 = scmp.eq.s32.totalorder %s129, 0
      %p896 = por %p894, %p895
      %s898 = sadd.s32 %s897, 1
      %p901 = scmp.eq.s32.totalorder %s123, 1
      %p902 = scmp.ne.s32.totalorder %s897, %s899
      %p903 = scmp.eq.s32.totalorder %s123, 0
      %p904 = por %p902, %p903
      %p905 = scmp.ne.s32.totalorder %s897, %s899
      %p906 = scmp.eq.s32.totalorder %s128, 1
      %p907 = por %p905, %p906
      %p908 = scmp.ne.s32.totalorder %s899, %s900
      %p909 = scmp.eq.s32.totalorder %s128, 0
      %p910 = por %p908, %p909
      %p911 = scmp.ne.s32.totalorder %s899, %s900
      %p912 = scmp.eq.s32.totalorder %s129, 1
      %p913 = por %p911, %p912
      %p915 = scmp.ne.s32.totalorder %s900, %s914
      %p916 = scmp.eq.s32.totalorder %s129, 0
      %p917 = por %p915, %p916
      %s919 = sadd.s32 %s918, 1
      %p922 = scmp.eq.s32.totalorder %s123, 1
      %p923 = scmp.ne.s32.totalorder %s918, %s920
      %p924 = scmp.eq.s32.totalorder %s123, 0
      %p925 = por %p923, %p924
      %p926 = scmp.ne.s32.totalorder %s918, %s920
      %p927 = scmp.eq.s32.totalorder %s128, 1
      %p928 = por %p926, %p927
      %p929 = scmp.ne.s32.totalorder %s920, %s921
      %p930 = scmp.eq.s32.totalorder %s128, 0
      %p931 = por %p929, %p930
      %p932 = scmp.ne.s32.totalorder %s920, %s921
      %p933 = scmp.eq.s32.totalorder %s129, 1
      %p934 = por %p932, %p933
      %p936 = scmp.ne.s32.totalorder %s921, %s935
      %p937 = scmp.eq.s32.totalorder %s129, 0
      %p938 = por %p936, %p937
      %s940 = sadd.s32 %s939, 1
      %p943 = scmp.eq.s32.totalorder %s123, 1
      %p944 = scmp.ne.s32.totalorder %s939, %s941
      %p945 = scmp.eq.s32.totalorder %s123, 0
      %p946 = por %p944, %p945
      %p947 = scmp.ne.s32.totalorder %s939, %s941
      %p948 = scmp.eq.s32.totalorder %s128, 1
      %p949 = por %p947, %p948
      %p950 = scmp.ne.s32.totalorder %s941, %s942
      %p951 = scmp.eq.s32.totalorder %s128, 0
      %p952 = por %p950, %p951
      %p953 = scmp.ne.s32.totalorder %s941, %s942
      %p954 = scmp.eq.s32.totalorder %s129, 1
      %p955 = por %p953, %p954
      %p957 = scmp.ne.s32.totalorder %s942, %s956
      %p958 = scmp.eq.s32.totalorder %s129, 0
      %p959 = por %p957, %p958
      %s961 = sadd.s32 %s960, 1
      %p964 = scmp.eq.s32.totalorder %s123, 1
      %p965 = scmp.ne.s32.totalorder %s960, %s962
      %p966 = scmp.eq.s32.totalorder %s123, 0
      %p967 = por %p965, %p966
      %p968 = scmp.ne.s32.totalorder %s960, %s962
      %p969 = scmp.eq.s32.totalorder %s128, 1
      %p970 = por %p968, %p969
      %p971 = scmp.ne.s32.totalorder %s962, %s963
      %p972 = scmp.eq.s32.totalorder %s128, 0
      %p973 = por %p971, %p972
      %p974 = scmp.ne.s32.totalorder %s962, %s963
      %p975 = scmp.eq.s32.totalorder %s129, 1
      %p976 = por %p974, %p975
      %p978 = scmp.ne.s32.totalorder %s963, %s977
      %p979 = scmp.eq.s32.totalorder %s129, 0
      %p980 = por %p978, %p979
      %s982 = sadd.s32 %s981, 1
      %p985 = scmp.eq.s32.totalorder %s123, 1
      %p986 = scmp.ne.s32.totalorder %s981, %s983
      %p987 = scmp.eq.s32.totalorder %s123, 0
      %p988 = por %p986, %p987
      %p989 = scmp.ne.s32.totalorder %s981, %s983
      %p990 = scmp.eq.s32.totalorder %s128, 1
      %p991 = por %p989, %p990
      %p992 = scmp.ne.s32.totalorder %s983, %s984
      %p993 = scmp.eq.s32.totalorder %s128, 0
      %p994 = por %p992, %p993
      %p995 = scmp.ne.s32.totalorder %s983, %s984
      %p996 = scmp.eq.s32.totalorder %s129, 1
      %p997 = por %p995, %p996
      %p999 = scmp.ne.s32.totalorder %s984, %s998
      %p1000 = scmp.eq.s32.totalorder %s129, 0
      %p1001 = por %p999, %p1000
      %s1003 = sadd.s32 %s1002, 1
      %p1006 = scmp.eq.s32.totalorder %s123, 1
      %p1007 = scmp.ne.s32.totalorder %s1002, %s1004
      %p1008 = scmp.eq.s32.totalorder %s123, 0
      %p1009 = por %p1007, %p1008
      %p1010 = scmp.ne.s32.totalorder %s1002, %s1004
      %p1011 = scmp.eq.s32.totalorder %s128, 1
      %p1012 = por %p1010, %p1011
      %p1013 = scmp.ne.s32.totalorder %s1004, %s1005
      %p1014 = scmp.eq.s32.totalorder %s128, 0
      %p1015 = por %p1013, %p1014
      %p1016 = scmp.ne.s32.totalorder %s1004, %s1005
      %p1017 = scmp.eq.s32.totalorder %s129, 1
      %p1018 = por %p1016, %p1017
      %p1020 = scmp.ne.s32.totalorder %s1005, %s1019
      %p1021 = scmp.eq.s32.totalorder %s129, 0
      %p1022 = por %p1020, %p1021
      %s1024 = sadd.s32 %s1023, 1
      %p1027 = scmp.eq.s32.totalorder %s123, 1
      %p1028 = scmp.ne.s32.totalorder %s1023, %s1025
      %p1029 = scmp.eq.s32.totalorder %s123, 0
      %p1030 = por %p1028, %p1029
      %p1031 = scmp.ne.s32.totalorder %s1023, %s1025
      %p1032 = scmp.eq.s32.totalorder %s128, 1
      %p1033 = por %p1031, %p1032
      %p1034 = scmp.ne.s32.totalorder %s1025, %s1026
      %p1035 = scmp.eq.s32.totalorder %s128, 0
      %p1036 = por %p1034, %p1035
      %p1037 = scmp.ne.s32.totalorder %s1025, %s1026
      %p1038 = scmp.eq.s32.totalorder %s129, 1
      %p1039 = por %p1037, %p1038
      %p1041 = scmp.ne.s32.totalorder %s1026, %s1040
      %p1042 = scmp.eq.s32.totalorder %s129, 0
      %p1043 = por %p1041, %p1042
      %s1045 = sadd.s32 %s1044, 1
      %p1048 = scmp.eq.s32.totalorder %s123, 1
      %p1049 = scmp.ne.s32.totalorder %s1044, %s1046
      %p1050 = scmp.eq.s32.totalorder %s123, 0
      %p1051 = por %p1049, %p1050
      %p1052 = scmp.ne.s32.totalorder %s1044, %s1046
      %p1053 = scmp.eq.s32.totalorder %s128, 1
      %p1054 = por %p1052, %p1053
      %p1055 = scmp.ne.s32.totalorder %s1046, %s1047
      %p1056 = scmp.eq.s32.totalorder %s128, 0
      %p1057 = por %p1055, %p1056
      %p1058 = scmp.ne.s32.totalorder %s1046, %s1047
      %p1059 = scmp.eq.s32.totalorder %s129, 1
      %p1060 = por %p1058, %p1059
      %p1062 = scmp.ne.s32.totalorder %s1047, %s1061
      %p1063 = scmp.eq.s32.totalorder %s129, 0
      %p1064 = por %p1062, %p1063
      %s1066 = sadd.s32 %s1065, 1
      %p1069 = scmp.eq.s32.totalorder %s123, 1
      %p1070 = scmp.ne.s32.totalorder %s1065, %s1067
      %p1071 = scmp.eq.s32.totalorder %s123, 0
      %p1072 = por %p1070, %p1071
      %p1073 = scmp.ne.s32.totalorder %s1065, %s1067
      %p1074 = scmp.eq.s32.totalorder %s128, 1
      %p1075 = por %p1073, %p1074
      %p1076 = scmp.ne.s32.totalorder %s1067, %s1068
      %p1077 = scmp.eq.s32.totalorder %s128, 0
      %p1078 = por %p1076, %p1077
      %p1079 = scmp.ne.s32.totalorder %s1067, %s1068
      %p1080 = scmp.eq.s32.totalorder %s129, 1
      %p1081 = por %p1079, %p1080
      %p1083 = scmp.ne.s32.totalorder %s1068, %s1082
      %p1084 = scmp.eq.s32.totalorder %s129, 0
      %p1085 = por %p1083, %p1084
      %s1086 = ssub.s32 %s123, %s130
      %p1087 = scmp.eq.s32.totalorder %s1086, 0
      %s1089 = sadd.s32 %s1088, 1
      %s1090 = scalar_select %p1087, %s1088, %s1089
      %p1093 = pneg %p1087
      %p1094 = scmp.eq.s32.totalorder %s123, 1
      %p1095 = por %p1093, %p1094
      %p1096 = scmp.ne.s32.totalorder %s1088, %s1091
      %p1097 = scmp.eq.s32.totalorder %s123, 0
      %p1098 = por %p1096, %p1097
      %p1099 = scmp.ne.s32.totalorder %s1088, %s1091
      %p1100 = scmp.eq.s32.totalorder %s128, 1
      %p1101 = por %p1099, %p1100
      %p1102 = scmp.ne.s32.totalorder %s1091, %s1092
      %p1103 = scmp.eq.s32.totalorder %s128, 0
      %p1104 = por %p1102, %p1103
      %p1105 = scmp.ne.s32.totalorder %s1091, %s1092
      %p1106 = scmp.eq.s32.totalorder %s129, 1
      %p1107 = por %p1105, %p1106
      %p1109 = scmp.ne.s32.totalorder %s1092, %s1108
      %p1110 = scmp.eq.s32.totalorder %s129, 0
      %p1111 = por %p1109, %p1110
      %p1112 = scmp.le.s32.totalorder 1, %s123
      %p1113 = scmp.lt.s32.totalorder %s123, 3
      %p1114 = pnand %p1112, %p1113
      %p1115 = pneg %p1114
      // Predicated region
      $region9: #{decoder_forward.1} parent=5 // pred_check
        _
      $region10: #{decoder_forward.1} parent=5 // pred_check_branch
        %1117 = sbr.rel (%p1114) target = $region12
      $region11: #{decoder_forward.1} parent=5 // pred_region
        %s1118 = ssub.s32 %s123, 1
        // Predicated region
        $region13: #{decoder_forward.1} parent=11 // pred_check
          %p1119 = pneg %p196
        $region14: #{decoder_forward.1} parent=11 // pred_check_branch
          %1121 = sbr.rel (%p1119) target = $region16
        $region15: #{decoder_forward.1} parent=11 // pred_region
          %1123 = vsyncadd [#allocation5], 0
          %s1124 = sshll.u32 %s7, 4
          %s1125 = int_to_ptr.hbm [resolvable:$true] %s1124
          %s1126 = sshll.u32 [#allocation4], 4
          %s1127 = int_to_ptr.vmem [resolvable:$true] %s1126
          %1132 = dma.hbm_to_vmem [thread:$0]  %s1125, 128, %s1127, [#allocation5], 64, 64, 4
        $region16: #{decoder_forward.1} parent=11 // pred_fallthru
          _
        // Predicated region
        $region17: #{decoder_forward.1} parent=11 // pred_check
          %p1133 = pneg %p217
        $region18: #{decoder_forward.1} parent=11 // pred_check_branch
          %1135 = sbr.rel (%p1133) target = $region20
        $region19: #{decoder_forward.1} parent=11 // pred_region
          _
        $region20: #{decoder_forward.1} parent=11 // pred_fallthru
          _
        // Predicated region
        $region21: #{decoder_forward.1} parent=11 // pred_check
          %p1136 = pneg %p238
        $region22: #{decoder_forward.1} parent=11 // pred_check_branch
          %1138 = sbr.rel (%p1136) target = $region24
        $region23: #{decoder_forward.1} parent=11 // pred_region
          _
        $region24: #{decoder_forward.1} parent=11 // pred_fallthru
          _
        // Predicated region
        $region25: #{decoder_forward.1} parent=11 // pred_check
          %p1139 = pneg %p259
        $region26: #{decoder_forward.1} parent=11 // pred_check_branch
          %1141 = sbr.rel (%p1139) target = $region28
        $region27: #{decoder_forward.1} parent=11 // pred_region
          _
        $region28: #{decoder_forward.1} parent=11 // pred_fallthru
          _
        // Predicated region
        $region29: #{decoder_forward.1} parent=11 // pred_check
          %p1142 = pneg %p280
        $region30: #{decoder_forward.1} parent=11 // pred_check_branch
          %1144 = sbr.rel (%p1142) target = $region32
        $region31: #{decoder_forward.1} parent=11 // pred_region
          _
        $region32: #{decoder_forward.1} parent=11 // pred_fallthru
          _
        // Predicated region
        $region33: #{decoder_forward.1} parent=11 // pred_check
          %p1145 = pneg %p301
        $region34: #{decoder_forward.1} parent=11 // pred_check_branch
          %1147 = sbr.rel (%p1145) target = $region36
        $region35: #{decoder_forward.1} parent=11 // pred_region
          %1149 = vsyncadd [#allocation8], 0
          %s1151 = sshll.u32 %s17, 4
          %s1152 = int_to_ptr.hbm [resolvable:$true] %s1151
          %s1153 = sshll.u32 [#allocation7], 4
          %s1154 = int_to_ptr.vmem [resolvable:$true] %s1153
          %1156 = dma.hbm_to_vmem [thread:$0]  %s1152, 16, %s1154, [#allocation8]
        $region36: #{decoder_forward.1} parent=11 // pred_fallthru
          _
        // Predicated region
        $region37: #{decoder_forward.1} parent=11 // pred_check
          %p1157 = pneg %p322
        $region38: #{decoder_forward.1} parent=11 // pred_check_branch
          %1159 = sbr.rel (%p1157) target = $region40
        $region39: #{decoder_forward.1} parent=11 // pred_region
          %1161 = vsyncadd [#allocation8], 0
          %s1163 = sshll.u32 %s19, 4
          %s1164 = int_to_ptr.hbm [resolvable:$true] %s1163
          %s1165 = sshll.u32 [#allocation9], 4
          %s1166 = int_to_ptr.vmem [resolvable:$true] %s1165
          %1168 = dma.hbm_to_vmem [thread:$0]  %s1164, 16, %s1166, [#allocation8]
        $region40: #{decoder_forward.1} parent=11 // pred_fallthru
          _
        // Predicated region
        $region41: #{decoder_forward.1} parent=11 // pred_check
          %p1169 = pneg %p343
        $region42: #{decoder_forward.1} parent=11 // pred_check_branch
          %1171 = sbr.rel (%p1169) target = $region44
        $region43: #{decoder_forward.1} parent=11 // pred_region
          _
        $region44: #{decoder_forward.1} parent=11 // pred_fallthru
          _
        // Predicated region
        $region45: #{decoder_forward.1} parent=11 // pred_check
          %p1172 = pneg %p364
        $region46: #{decoder_forward.1} parent=11 // pred_check_branch
          %1174 = sbr.rel (%p1172) target = $region48
        $region47: #{decoder_forward.1} parent=11 // pred_region
          %1176 = vsyncadd [#allocation11], 0
          %s1178 = sshll.u32 %s23, 4
          %s1179 = int_to_ptr.hbm [resolvable:$true] %s1178
          %s1180 = sshll.u32 [#allocation10], 4
          %s1181 = int_to_ptr.vmem [resolvable:$true] %s1180
          %1183 = dma.hbm_to_vmem [thread:$0]  %s1179, 16, %s1181, [#allocation11]
        $region48: #{decoder_forward.1} parent=11 // pred_fallthru
          _
        // Predicated region
        $region49: #{decoder_forward.1} parent=11 // pred_check
          %p1184 = pneg %p385
        $region50: #{decoder_forward.1} parent=11 // pred_check_branch
          %1186 = sbr.rel (%p1184) target = $region52
        $region51: #{decoder_forward.1} parent=11 // pred_region
          _
        $region52: #{decoder_forward.1} parent=11 // pred_fallthru
          _
        // Predicated region
        $region53: #{decoder_forward.1} parent=11 // pred_check
          %p1187 = pneg %p406
        $region54: #{decoder_forward.1} parent=11 // pred_check_branch
          %1189 = sbr.rel (%p1187) target = $region56
        $region55: #{decoder_forward.1} parent=11 // pred_region
          %1191 = vsyncadd [#allocation11], 0
          %s1193 = sshll.u32 %s27, 4
          %s1194 = int_to_ptr.hbm [resolvable:$true] %s1193
          %s1195 = sshll.u32 [#allocation12], 4
          %s1196 = int_to_ptr.vmem [resolvable:$true] %s1195
          %1198 = dma.hbm_to_vmem [thread:$0]  %s1194, 16, %s1196, [#allocation11]
        $region56: #{decoder_forward.1} parent=11 // pred_fallthru
          _
        // Predicated region
        $region57: #{decoder_forward.1} parent=11 // pred_check
          %p1199 = pneg %p427
        $region58: #{decoder_forward.1} parent=11 // pred_check_branch
          %1201 = sbr.rel (%p1199) target = $region60
        $region59: #{decoder_forward.1} parent=11 // pred_region
          _
        $region60: #{decoder_forward.1} parent=11 // pred_fallthru
          _
        // Predicated region
        $region61: #{decoder_forward.1} parent=11 // pred_check
          %p1202 = pneg %p448
        $region62: #{decoder_forward.1} parent=11 // pred_check_branch
          %1204 = sbr.rel (%p1202) target = $region64
        $region63: #{decoder_forward.1} parent=11 // pred_region
          %1206 = vsyncadd [#allocation14], 0
          %s1208 = sshll.u32 %s31, 4
          %s1209 = int_to_ptr.hbm [resolvable:$true] %s1208
          %s1210 = sshll.u32 [#allocation13], 4
          %s1211 = int_to_ptr.vmem [resolvable:$true] %s1210
          %1213 = dma.hbm_to_vmem [thread:$0]  %s1209, 16, %s1211, [#allocation14]
        $region64: #{decoder_forward.1} parent=11 // pred_fallthru
          _
        // Predicated region
        $region65: #{decoder_forward.1} parent=11 // pred_check
          %p1214 = pneg %p469
        $region66: #{decoder_forward.1} parent=11 // pred_check_branch
          %1216 = sbr.rel (%p1214) target = $region68
        $region67: #{decoder_forward.1} parent=11 // pred_region
          %1218 = vsyncadd [#allocation14], 0
          %s1220 = sshll.u32 %s33, 4
          %s1221 = int_to_ptr.hbm [resolvable:$true] %s1220
          %s1222 = sshll.u32 [#allocation15], 4
          %s1223 = int_to_ptr.vmem [resolvable:$true] %s1222
          %1225 = dma.hbm_to_vmem [thread:$0]  %s1221, 16, %s1223, [#allocation14]
        $region68: #{decoder_forward.1} parent=11 // pred_fallthru
          _
        // Predicated region
        $region69: #{decoder_forward.1} parent=11 // pred_check
          %p1226 = pneg %p490
        $region70: #{decoder_forward.1} parent=11 // pred_check_branch
          %1228 = sbr.rel (%p1226) target = $region72
        $region71: #{decoder_forward.1} parent=11 // pred_region
          %1230 = vsyncadd [#allocation17], 0
          %s1232 = sshll.u32 %s35, 4
          %s1233 = int_to_ptr.hbm [resolvable:$true] %s1232
          %s1234 = sshll.u32 [#allocation16], 4
          %s1235 = int_to_ptr.vmem [resolvable:$true] %s1234
          %1237 = dma.hbm_to_vmem [thread:$0]  %s1233, 16, %s1235, [#allocation17]
        $region72: #{decoder_forward.1} parent=11 // pred_fallthru
          _
        // Predicated region
        $region73: #{decoder_forward.1} parent=11 // pred_check
          %p1238 = pneg %p511
        $region74: #{decoder_forward.1} parent=11 // pred_check_branch
          %1240 = sbr.rel (%p1238) target = $region76
        $region75: #{decoder_forward.1} parent=11 // pred_region
          _
        $region76: #{decoder_forward.1} parent=11 // pred_fallthru
          _
        // Predicated region
        $region77: #{decoder_forward.1} parent=11 // pred_check
          %p1241 = pneg %p532
        $region78: #{decoder_forward.1} parent=11 // pred_check_branch
          %1243 = sbr.rel (%p1241) target = $region80
        $region79: #{decoder_forward.1} parent=11 // pred_region
          %1245 = vsyncadd [#allocation17], 0
          %s1247 = sshll.u32 %s39, 4
          %s1248 = int_to_ptr.hbm [resolvable:$true] %s1247
          %s1249 = sshll.u32 [#allocation18], 4
          %s1250 = int_to_ptr.vmem [resolvable:$true] %s1249
          %1252 = dma.hbm_to_vmem [thread:$0]  %s1248, 16, %s1250, [#allocation17]
        $region80: #{decoder_forward.1} parent=11 // pred_fallthru
          _
        // Predicated region
        $region81: #{decoder_forward.1} parent=11 // pred_check
          %p1253 = pneg %p553
        $region82: #{decoder_forward.1} parent=11 // pred_check_branch
          %1255 = sbr.rel (%p1253) target = $region84
        $region83: #{decoder_forward.1} parent=11 // pred_region
          _
        $region84: #{decoder_forward.1} parent=11 // pred_fallthru
          _
        // Predicated region
        $region85: #{decoder_forward.1} parent=11 // pred_check
          %p1256 = pneg %p574
        $region86: #{decoder_forward.1} parent=11 // pred_check_branch
          %1258 = sbr.rel (%p1256) target = $region88
        $region87: #{decoder_forward.1} parent=11 // pred_region
          %1260 = vsyncadd [#allocation20], 0
          %s1262 = sshll.u32 %s43, 4
          %s1263 = int_to_ptr.hbm [resolvable:$true] %s1262
          %s1264 = sshll.u32 [#allocation19], 4
          %s1265 = int_to_ptr.vmem [resolvable:$true] %s1264
          %1267 = dma.hbm_to_vmem [thread:$0]  %s1263, 16, %s1265, [#allocation20]
        $region88: #{decoder_forward.1} parent=11 // pred_fallthru
          _
        // Predicated region
        $region89: #{decoder_forward.1} parent=11 // pred_check
          %p1268 = pneg %p595
        $region90: #{decoder_forward.1} parent=11 // pred_check_branch
          %1270 = sbr.rel (%p1268) target = $region92
        $region91: #{decoder_forward.1} parent=11 // pred_region
          _
        $region92: #{decoder_forward.1} parent=11 // pred_fallthru
          _
        // Predicated region
        $region93: #{decoder_forward.1} parent=11 // pred_check
          %p1271 = pneg %p616
        $region94: #{decoder_forward.1} parent=11 // pred_check_branch
          %1273 = sbr.rel (%p1271) target = $region96
        $region95: #{decoder_forward.1} parent=11 // pred_region
          %1275 = vsyncadd [#allocation20], 0
          %s1277 = sshll.u32 %s47, 4
          %s1278 = int_to_ptr.hbm [resolvable:$true] %s1277
          %s1279 = sshll.u32 [#allocation21], 4
          %s1280 = int_to_ptr.vmem [resolvable:$true] %s1279
          %1282 = dma.hbm_to_vmem [thread:$0]  %s1278, 16, %s1280, [#allocation20]
        $region96: #{decoder_forward.1} parent=11 // pred_fallthru
          _
        // Predicated region
        $region97: #{decoder_forward.1} parent=11 // pred_check
          %p1283 = pneg %p637
        $region98: #{decoder_forward.1} parent=11 // pred_check_branch
          %1285 = sbr.rel (%p1283) target = $region100
        $region99: #{decoder_forward.1} parent=11 // pred_region
          _
        $region100: #{decoder_forward.1} parent=11 // pred_fallthru
          _
        // Predicated region
        $region101: #{decoder_forward.1} parent=11 // pred_check
          %p1286 = pneg %p658
        $region102: #{decoder_forward.1} parent=11 // pred_check_branch
          %1288 = sbr.rel (%p1286) target = $region104
        $region103: #{decoder_forward.1} parent=11 // pred_region
          _
        $region104: #{decoder_forward.1} parent=11 // pred_fallthru
          _
        // Predicated region
        $region105: #{decoder_forward.1} parent=11 // pred_check
          %p1289 = pneg %p679
        $region106: #{decoder_forward.1} parent=11 // pred_check_branch
          %1291 = sbr.rel (%p1289) target = $region108
        $region107: #{decoder_forward.1} parent=11 // pred_region
          _
        $region108: #{decoder_forward.1} parent=11 // pred_fallthru
          _
        // Predicated region
        $region109: #{decoder_forward.1} parent=11 // pred_check
          %p1292 = pneg %p700
        $region110: #{decoder_forward.1} parent=11 // pred_check_branch
          %1294 = sbr.rel (%p1292) target = $region112
        $region111: #{decoder_forward.1} parent=11 // pred_region
          _
        $region112: #{decoder_forward.1} parent=11 // pred_fallthru
          _
        // Predicated region
        $region113: #{decoder_forward.1} parent=11 // pred_check
          %p1295 = pneg %p721
        $region114: #{decoder_forward.1} parent=11 // pred_check_branch
          %1297 = sbr.rel (%p1295) target = $region116
        $region115: #{decoder_forward.1} parent=11 // pred_region
          _
        $region116: #{decoder_forward.1} parent=11 // pred_fallthru
          _
        // Predicated region
        $region117: #{decoder_forward.1} parent=11 // pred_check
          %p1298 = pneg %p742
        $region118: #{decoder_forward.1} parent=11 // pred_check_branch
          %1300 = sbr.rel (%p1298) target = $region120
        $region119: #{decoder_forward.1} parent=11 // pred_region
          %1302 = vsyncadd [#allocation23], 0
          %s1304 = sshll.u32 %s59, 4
          %s1305 = int_to_ptr.hbm [resolvable:$true] %s1304
          %s1306 = sshll.u32 [#allocation22], 4
          %s1307 = int_to_ptr.vmem [resolvable:$true] %s1306
          %1309 = dma.hbm_to_vmem [thread:$0]  %s1305, 16, %s1307, [#allocation23]
        $region120: #{decoder_forward.1} parent=11 // pred_fallthru
          _
        // Predicated region
        $region121: #{decoder_forward.1} parent=11 // pred_check
          %p1310 = pneg %p763
        $region122: #{decoder_forward.1} parent=11 // pred_check_branch
          %1312 = sbr.rel (%p1310) target = $region124
        $region123: #{decoder_forward.1} parent=11 // pred_region
          _
        $region124: #{decoder_forward.1} parent=11 // pred_fallthru
          _
        // Predicated region
        $region125: #{decoder_forward.1} parent=11 // pred_check
          %p1313 = pneg %p784
        $region126: #{decoder_forward.1} parent=11 // pred_check_branch
          %1315 = sbr.rel (%p1313) target = $region128
        $region127: #{decoder_forward.1} parent=11 // pred_region
          %1317 = vsyncadd [#allocation23], 0
          %s1319 = sshll.u32 %s63, 4
          %s1320 = int_to_ptr.hbm [resolvable:$true] %s1319
          %s1321 = sshll.u32 [#allocation24], 4
          %s1322 = int_to_ptr.vmem [resolvable:$true] %s1321
          %1324 = dma.hbm_to_vmem [thread:$0]  %s1320, 16, %s1322, [#allocation23]
        $region128: #{decoder_forward.1} parent=11 // pred_fallthru
          _
        // Predicated region
        $region129: #{decoder_forward.1} parent=11 // pred_check
          %p1325 = pneg %p805
        $region130: #{decoder_forward.1} parent=11 // pred_check_branch
          %1327 = sbr.rel (%p1325) target = $region132
        $region131: #{decoder_forward.1} parent=11 // pred_region
          _
        $region132: #{decoder_forward.1} parent=11 // pred_fallthru
          _
        // Predicated region
        $region133: #{decoder_forward.1} parent=11 // pred_check
          %p1328 = pneg %p826
        $region134: #{decoder_forward.1} parent=11 // pred_check_branch
          %1330 = sbr.rel (%p1328) target = $region136
        $region135: #{decoder_forward.1} parent=11 // pred_region
          %1332 = vsyncadd [#allocation26], 0
          %s1334 = sshll.u32 %s67, 4
          %s1335 = int_to_ptr.hbm [resolvable:$true] %s1334
          %s1336 = sshll.u32 [#allocation25], 4
          %s1337 = int_to_ptr.vmem [resolvable:$true] %s1336
          %1339 = dma.hbm_to_vmem [thread:$0]  %s1335, 16, %s1337, [#allocation26]
        $region136: #{decoder_forward.1} parent=11 // pred_fallthru
          _
        // Predicated region
        $region137: #{decoder_forward.1} parent=11 // pred_check
          %p1340 = pneg %p847
        $region138: #{decoder_forward.1} parent=11 // pred_check_branch
          %1342 = sbr.rel (%p1340) target = $region140
        $region139: #{decoder_forward.1} parent=11 // pred_region
          _
        $region140: #{decoder_forward.1} parent=11 // pred_fallthru
          _
        // Predicated region
        $region141: #{decoder_forward.1} parent=11 // pred_check
          %p1343 = pneg %p868
        $region142: #{decoder_forward.1} parent=11 // pred_check_branch
          %1345 = sbr.rel (%p1343) target = $region144
        $region143: #{decoder_forward.1} parent=11 // pred_region
          %1347 = vsyncadd [#allocation26], 0
          %s1349 = sshll.u32 %s71, 4
          %s1350 = int_to_ptr.hbm [resolvable:$true] %s1349
          %s1351 = sshll.u32 [#allocation27], 4
          %s1352 = int_to_ptr.vmem [resolvable:$true] %s1351
          %1354 = dma.hbm_to_vmem [thread:$0]  %s1350, 16, %s1352, [#allocation26]
        $region144: #{decoder_forward.1} parent=11 // pred_fallthru
          _
        // Predicated region
        $region145: #{decoder_forward.1} parent=11 // pred_check
          %p1355 = pneg %p889
        $region146: #{decoder_forward.1} parent=11 // pred_check_branch
          %1357 = sbr.rel (%p1355) target = $region148
        $region147: #{decoder_forward.1} parent=11 // pred_region
          %1359 = vsyncadd [#allocation29], 0
          %s1361 = sshll.u32 %s73, 4
          %s1362 = int_to_ptr.hbm [resolvable:$true] %s1361
          %s1363 = sshll.u32 [#allocation28], 4
          %s1364 = int_to_ptr.vmem [resolvable:$true] %s1363
          %1366 = dma.hbm_to_vmem [thread:$0]  %s1362, 16, %s1364, [#allocation29]
        $region148: #{decoder_forward.1} parent=11 // pred_fallthru
          _
        // Predicated region
        $region149: #{decoder_forward.1} parent=11 // pred_check
          %p1367 = pneg %p910
        $region150: #{decoder_forward.1} parent=11 // pred_check_branch
          %1369 = sbr.rel (%p1367) target = $region152
        $region151: #{decoder_forward.1} parent=11 // pred_region
          %1371 = vsyncadd [#allocation29], 0
          %s1373 = sshll.u32 %s75, 4
          %s1374 = int_to_ptr.hbm [resolvable:$true] %s1373
          %s1375 = sshll.u32 [#allocation30], 4
          %s1376 = int_to_ptr.vmem [resolvable:$true] %s1375
          %1378 = dma.hbm_to_vmem [thread:$0]  %s1374, 16, %s1376, [#allocation29]
        $region152: #{decoder_forward.1} parent=11 // pred_fallthru
          _
        // Predicated region
        $region153: #{decoder_forward.1} parent=11 // pred_check
          %p1379 = pneg %p931
        $region154: #{decoder_forward.1} parent=11 // pred_check_branch
          %1381 = sbr.rel (%p1379) target = $region156
        $region155: #{decoder_forward.1} parent=11 // pred_region
          %1383 = vsyncadd [#allocation32], 0
          %s1384 = sshll.u32 %s77, 4
          %s1385 = int_to_ptr.hbm [resolvable:$true] %s1384
          %s1386 = sshll.u32 [#allocation31], 4
          %s1387 = int_to_ptr.vmem [resolvable:$true] %s1386
          %1392 = dma.hbm_to_vmem [thread:$0]  %s1385, 256, %s1387, [#allocation32], 64, 64, 4
        $region156: #{decoder_forward.1} parent=11 // pred_fallthru
          _
        // Predicated region
        $region157: #{decoder_forward.1} parent=11 // pred_check
          %p1393 = pneg %p952
        $region158: #{decoder_forward.1} parent=11 // pred_check_branch
          %1395 = sbr.rel (%p1393) target = $region160
        $region159: #{decoder_forward.1} parent=11 // pred_region
          %1397 = vsyncadd [#allocation32], 0
          %s1399 = sshll.u32 %s79, 4
          %s1400 = int_to_ptr.hbm [resolvable:$true] %s1399
          %s1401 = sshll.u32 [#allocation33], 4
          %s1402 = int_to_ptr.vmem [resolvable:$true] %s1401
          %1404 = dma.hbm_to_vmem [thread:$0]  %s1400, 16, %s1402, [#allocation32]
        $region160: #{decoder_forward.1} parent=11 // pred_fallthru
          _
        // Predicated region
        $region161: #{decoder_forward.1} parent=11 // pred_check
          %p1405 = pneg %p973
        $region162: #{decoder_forward.1} parent=11 // pred_check_branch
          %1407 = sbr.rel (%p1405) target = $region164
        $region163: #{decoder_forward.1} parent=11 // pred_region
          _
        $region164: #{decoder_forward.1} parent=11 // pred_fallthru
          _
        // Predicated region
        $region165: #{decoder_forward.1} parent=11 // pred_check
          %p1408 = pneg %p994
        $region166: #{decoder_forward.1} parent=11 // pred_check_branch
          %1410 = sbr.rel (%p1408) target = $region168
        $region167: #{decoder_forward.1} parent=11 // pred_region
          %1412 = vsyncadd [#allocation35], 0
          %s1414 = sshll.u32 %s83, 4
          %s1415 = int_to_ptr.hbm [resolvable:$true] %s1414
          %s1416 = sshll.u32 [#allocation34], 4
          %s1417 = int_to_ptr.vmem [resolvable:$true] %s1416
          %1419 = dma.hbm_to_vmem [thread:$0]  %s1415, 16, %s1417, [#allocation35]
        $region168: #{decoder_forward.1} parent=11 // pred_fallthru
          _
        // Predicated region
        $region169: #{decoder_forward.1} parent=11 // pred_check
          %p1420 = pneg %p1015
        $region170: #{decoder_forward.1} parent=11 // pred_check_branch
          %1422 = sbr.rel (%p1420) target = $region172
        $region171: #{decoder_forward.1} parent=11 // pred_region
          %1424 = vsyncadd [#allocation35], 0
          %s1426 = sshll.u32 %s85, 4
          %s1427 = int_to_ptr.hbm [resolvable:$true] %s1426
          %s1428 = sshll.u32 [#allocation36], 4
          %s1429 = int_to_ptr.vmem [resolvable:$true] %s1428
          %1431 = dma.hbm_to_vmem [thread:$0]  %s1427, 16, %s1429, [#allocation35]
        $region172: #{decoder_forward.1} parent=11 // pred_fallthru
          _
        // Predicated region
        $region173: #{decoder_forward.1} parent=11 // pred_check
          %p1432 = pneg %p1036
        $region174: #{decoder_forward.1} parent=11 // pred_check_branch
          %1434 = sbr.rel (%p1432) target = $region176
        $region175: #{decoder_forward.1} parent=11 // pred_region
          %1436 = vsyncadd [#allocation38], 0
          %s1438 = sshll.u32 %s87, 4
          %s1439 = int_to_ptr.hbm [resolvable:$true] %s1438
          %s1440 = sshll.u32 [#allocation37], 4
          %s1441 = int_to_ptr.vmem [resolvable:$true] %s1440
          %1443 = dma.hbm_to_vmem [thread:$0]  %s1439, 16, %s1441, [#allocation38]
        $region176: #{decoder_forward.1} parent=11 // pred_fallthru
          _
        // Predicated region
        $region177: #{decoder_forward.1} parent=11 // pred_check
          %p1444 = pneg %p1057
        $region178: #{decoder_forward.1} parent=11 // pred_check_branch
          %1446 = sbr.rel (%p1444) target = $region180
        $region179: #{decoder_forward.1} parent=11 // pred_region
          %1448 = vsyncadd [#allocation38], 0
          %s1449 = sshll.u32 %s89, 4
          %s1450 = int_to_ptr.hbm [resolvable:$true] %s1449
          %s1451 = sshll.u32 [#allocation39], 4
          %s1452 = int_to_ptr.vmem [resolvable:$true] %s1451
          %1457 = dma.hbm_to_vmem [thread:$0]  %s1450, 256, %s1452, [#allocation38], 64, 64, 4
        $region180: #{decoder_forward.1} parent=11 // pred_fallthru
          _
        // Predicated region
        $region181: #{decoder_forward.1} parent=11 // pred_check
          %p1458 = pneg %p1078
        $region182: #{decoder_forward.1} parent=11 // pred_check_branch
          %1460 = sbr.rel (%p1458) target = $region184
        $region183: #{decoder_forward.1} parent=11 // pred_region
          %1462 = vsyncadd [#allocation41], 0
          %s1464 = sshll.u32 %s91, 4
          %s1465 = int_to_ptr.hbm [resolvable:$true] %s1464
          %s1466 = sshll.u32 [#allocation40], 4
          %s1467 = int_to_ptr.vmem [resolvable:$true] %s1466
          %1469 = dma.hbm_to_vmem [thread:$0]  %s1465, 16, %s1467, [#allocation41]
        $region184: #{decoder_forward.1} parent=11 // pred_fallthru
          _
      $region12: #{decoder_forward.1} parent=5 // pred_fallthru
        _
      %p1470 = scmp.lt.s32.totalorder %s123, 2
      // Predicated region
      $region185: #{decoder_forward.1} parent=5 // pred_check
        %p1471 = pneg %p1470
      $region186: #{decoder_forward.1} parent=5 // pred_check_branch
        %1473 = sbr.rel (%p1471) target = $region188
      $region187: #{decoder_forward.1} parent=5 // pred_region
        // Predicated region
        $region189: #{decoder_forward.1} parent=187 // pred_check
          %p1474 = pneg %p143
        $region190: #{decoder_forward.1} parent=187 // pred_check_branch
          %1476 = sbr.rel (%p1474) target = $region192
        $region191: #{decoder_forward.1} parent=187 // pred_region
          %p1477 = scmp.lt.s32.totalorder %s123, 1
          %s1478 = scalar_select %p1477, %s123, 1
          %s1479 = smul.addr %s1478, 8
          %s1480 = scalar_lea.vmem %s3, %s1479
        $region192: #{decoder_forward.1} parent=187 // pred_fallthru
          _
        // Predicated region
        $region193: #{decoder_forward.1} parent=187 // pred_check
          %p1481 = pneg %p169
        $region194: #{decoder_forward.1} parent=187 // pred_check_branch
          %1483 = sbr.rel (%p1481) target = $region196
        $region195: #{decoder_forward.1} parent=187 // pred_region
          %p1484 = scmp.lt.s32.totalorder %s123, 1
          %s1485 = scalar_select %p1484, %s123, 1
          %s1486 = smul.addr %s1485, 4
          %s1487 = scalar_lea.vmem %s5, %s1486
        $region196: #{decoder_forward.1} parent=187 // pred_fallthru
          _
      $region188: #{decoder_forward.1} parent=5 // pred_fallthru
        _
      %p1488 = scmp.le.s32.totalorder 1, %s123
      %p1489 = scmp.lt.s32.totalorder %s123, 3
      %p1490 = pnand %p1488, %p1489
      %p1491 = pneg %p1490
      // Predicated region
      $region197: #{decoder_forward.1} parent=5 // pred_check
        _
      $region198: #{decoder_forward.1} parent=5 // pred_check_branch
        %1493 = sbr.rel (%p1490) target = $region200
      $region199: #{decoder_forward.1} parent=5 // pred_region
        %s1494 = ssub.s32 %s123, 1
        // Predicated region
        $region201: #{decoder_forward.1} parent=199 // pred_check
          %p1495 = pneg %p196
        $region202: #{decoder_forward.1} parent=199 // pred_check_branch
          %1497 = sbr.rel (%p1495) target = $region204
        $region203: #{decoder_forward.1} parent=199 // pred_region
          %1499 = dma.done [#allocation5], 128
        $region204: #{decoder_forward.1} parent=199 // pred_fallthru
          _
        // Predicated region
        $region205: #{decoder_forward.1} parent=199 // pred_check
          %p1500 = pneg %p301
        $region206: #{decoder_forward.1} parent=199 // pred_check_branch
          %1502 = sbr.rel (%p1500) target = $region208
        $region207: #{decoder_forward.1} parent=199 // pred_region
          %1504 = dma.done [#allocation8], 16
        $region208: #{decoder_forward.1} parent=199 // pred_fallthru
          _
        // Predicated region
        $region209: #{decoder_forward.1} parent=199 // pred_check
          %p1505 = pneg %p322
        $region210: #{decoder_forward.1} parent=199 // pred_check_branch
          %1507 = sbr.rel (%p1505) target = $region212
        $region211: #{decoder_forward.1} parent=199 // pred_region
          %1509 = dma.done [#allocation8], 16
        $region212: #{decoder_forward.1} parent=199 // pred_fallthru
          _
        // Predicated region
        $region213: #{decoder_forward.1} parent=199 // pred_check
          %p1510 = pneg %p364
        $region214: #{decoder_forward.1} parent=199 // pred_check_branch
          %1512 = sbr.rel (%p1510) target = $region216
        $region215: #{decoder_forward.1} parent=199 // pred_region
          %1514 = dma.done [#allocation11], 16
        $region216: #{decoder_forward.1} parent=199 // pred_fallthru
          _
        // Predicated region
        $region217: #{decoder_forward.1} parent=199 // pred_check
          %p1515 = pneg %p406
        $region218: #{decoder_forward.1} parent=199 // pred_check_branch
          %1517 = sbr.rel (%p1515) target = $region220
        $region219: #{decoder_forward.1} parent=199 // pred_region
          %1519 = dma.done [#allocation11], 16
        $region220: #{decoder_forward.1} parent=199 // pred_fallthru
          _
        // Predicated region
        $region221: #{decoder_forward.1} parent=199 // pred_check
          %p1520 = pneg %p448
        $region222: #{decoder_forward.1} parent=199 // pred_check_branch
          %1522 = sbr.rel (%p1520) target = $region224
        $region223: #{decoder_forward.1} parent=199 // pred_region
          %1524 = dma.done [#allocation14], 16
        $region224: #{decoder_forward.1} parent=199 // pred_fallthru
          _
        // Predicated region
        $region225: #{decoder_forward.1} parent=199 // pred_check
          %p1525 = pneg %p469
        $region226: #{decoder_forward.1} parent=199 // pred_check_branch
          %1527 = sbr.rel (%p1525) target = $region228
        $region227: #{decoder_forward.1} parent=199 // pred_region
          %1529 = dma.done [#allocation14], 16
        $region228: #{decoder_forward.1} parent=199 // pred_fallthru
          _
        // Predicated region
        $region229: #{decoder_forward.1} parent=199 // pred_check
          %p1530 = pneg %p490
        $region230: #{decoder_forward.1} parent=199 // pred_check_branch
          %1532 = sbr.rel (%p1530) target = $region232
        $region231: #{decoder_forward.1} parent=199 // pred_region
          %1534 = dma.done [#allocation17], 16
        $region232: #{decoder_forward.1} parent=199 // pred_fallthru
          _
        // Predicated region
        $region233: #{decoder_forward.1} parent=199 // pred_check
          %p1535 = pneg %p532
        $region234: #{decoder_forward.1} parent=199 // pred_check_branch
          %1537 = sbr.rel (%p1535) target = $region236
        $region235: #{decoder_forward.1} parent=199 // pred_region
          %1539 = dma.done [#allocation17], 16
        $region236: #{decoder_forward.1} parent=199 // pred_fallthru
          _
        // Predicated region
        $region237: #{decoder_forward.1} parent=199 // pred_check
          %p1540 = pneg %p574
        $region238: #{decoder_forward.1} parent=199 // pred_check_branch
          %1542 = sbr.rel (%p1540) target = $region240
        $region239: #{decoder_forward.1} parent=199 // pred_region
          %1544 = dma.done [#allocation20], 16
        $region240: #{decoder_forward.1} parent=199 // pred_fallthru
          _
        // Predicated region
        $region241: #{decoder_forward.1} parent=199 // pred_check
          %p1545 = pneg %p616
        $region242: #{decoder_forward.1} parent=199 // pred_check_branch
          %1547 = sbr.rel (%p1545) target = $region244
        $region243: #{decoder_forward.1} parent=199 // pred_region
          %1549 = dma.done [#allocation20], 16
        $region244: #{decoder_forward.1} parent=199 // pred_fallthru
          _
        // Predicated region
        $region245: #{decoder_forward.1} parent=199 // pred_check
          %p1550 = pneg %p742
        $region246: #{decoder_forward.1} parent=199 // pred_check_branch
          %1552 = sbr.rel (%p1550) target = $region248
        $region247: #{decoder_forward.1} parent=199 // pred_region
          %1554 = dma.done [#allocation23], 16
        $region248: #{decoder_forward.1} parent=199 // pred_fallthru
          _
        // Predicated region
        $region249: #{decoder_forward.1} parent=199 // pred_check
          %p1555 = pneg %p784
        $region250: #{decoder_forward.1} parent=199 // pred_check_branch
          %1557 = sbr.rel (%p1555) target = $region252
        $region251: #{decoder_forward.1} parent=199 // pred_region
          %1559 = dma.done [#allocation23], 16
        $region252: #{decoder_forward.1} parent=199 // pred_fallthru
          _
        // Predicated region
        $region253: #{decoder_forward.1} parent=199 // pred_check
          %p1560 = pneg %p826
        $region254: #{decoder_forward.1} parent=199 // pred_check_branch
          %1562 = sbr.rel (%p1560) target = $region256
        $region255: #{decoder_forward.1} parent=199 // pred_region
          %1564 = dma.done [#allocation26], 16
        $region256: #{decoder_forward.1} parent=199 // pred_fallthru
          _
        // Predicated region
        $region257: #{decoder_forward.1} parent=199 // pred_check
          %p1565 = pneg %p868
        $region258: #{decoder_forward.1} parent=199 // pred_check_branch
          %1567 = sbr.rel (%p1565) target = $region260
        $region259: #{decoder_forward.1} parent=199 // pred_region
          %1569 = dma.done [#allocation26], 16
        $region260: #{decoder_forward.1} parent=199 // pred_fallthru
          _
        // Predicated region
        $region261: #{decoder_forward.1} parent=199 // pred_check
          %p1570 = pneg %p889
        $region262: #{decoder_forward.1} parent=199 // pred_check_branch
          %1572 = sbr.rel (%p1570) target = $region264
        $region263: #{decoder_forward.1} parent=199 // pred_region
          %1574 = dma.done [#allocation29], 16
        $region264: #{decoder_forward.1} parent=199 // pred_fallthru
          _
        // Predicated region
        $region265: #{decoder_forward.1} parent=199 // pred_check
          %p1575 = pneg %p910
        $region266: #{decoder_forward.1} parent=199 // pred_check_branch
          %1577 = sbr.rel (%p1575) target = $region268
        $region267: #{decoder_forward.1} parent=199 // pred_region
          %1579 = dma.done [#allocation29], 16
        $region268: #{decoder_forward.1} parent=199 // pred_fallthru
          _
        // Predicated region
        $region269: #{decoder_forward.1} parent=199 // pred_check
          %p1580 = pneg %p931
        $region270: #{decoder_forward.1} parent=199 // pred_check_branch
          %1582 = sbr.rel (%p1580) target = $region272
        $region271: #{decoder_forward.1} parent=199 // pred_region
          %1584 = dma.done [#allocation32], 256
        $region272: #{decoder_forward.1} parent=199 // pred_fallthru
          _
        // Predicated region
        $region273: #{decoder_forward.1} parent=199 // pred_check
          %p1585 = pneg %p952
        $region274: #{decoder_forward.1} parent=199 // pred_check_branch
          %1587 = sbr.rel (%p1585) target = $region276
        $region275: #{decoder_forward.1} parent=199 // pred_region
          %1589 = dma.done [#allocation32], 16
        $region276: #{decoder_forward.1} parent=199 // pred_fallthru
          _
        // Predicated region
        $region277: #{decoder_forward.1} parent=199 // pred_check
          %p1590 = pneg %p994
        $region278: #{decoder_forward.1} parent=199 // pred_check_branch
          %1592 = sbr.rel (%p1590) target = $region280
        $region279: #{decoder_forward.1} parent=199 // pred_region
          %1594 = dma.done [#allocation35], 16
        $region280: #{decoder_forward.1} parent=199 // pred_fallthru
          _
        // Predicated region
        $region281: #{decoder_forward.1} parent=199 // pred_check
          %p1595 = pneg %p1015
        $region282: #{decoder_forward.1} parent=199 // pred_check_branch
          %1597 = sbr.rel (%p1595) target = $region284
        $region283: #{decoder_forward.1} parent=199 // pred_region
          %1599 = dma.done [#allocation35], 16
        $region284: #{decoder_forward.1} parent=199 // pred_fallthru
          _
        // Predicated region
        $region285: #{decoder_forward.1} parent=199 // pred_check
          %p1600 = pneg %p1036
        $region286: #{decoder_forward.1} parent=199 // pred_check_branch
          %1602 = sbr.rel (%p1600) target = $region288
        $region287: #{decoder_forward.1} parent=199 // pred_region
          %1604 = dma.done [#allocation38], 16
        $region288: #{decoder_forward.1} parent=199 // pred_fallthru
          _
        // Predicated region
        $region289: #{decoder_forward.1} parent=199 // pred_check
          %p1605 = pneg %p1057
        $region290: #{decoder_forward.1} parent=199 // pred_check_branch
          %1607 = sbr.rel (%p1605) target = $region292
        $region291: #{decoder_forward.1} parent=199 // pred_region
          %1609 = dma.done [#allocation38], 256
        $region292: #{decoder_forward.1} parent=199 // pred_fallthru
          _
        // Predicated region
        $region293: #{decoder_forward.1} parent=199 // pred_check
          %p1610 = pneg %p1078
        $region294: #{decoder_forward.1} parent=199 // pred_check_branch
          %1612 = sbr.rel (%p1610) target = $region296
        $region295: #{decoder_forward.1} parent=199 // pred_region
          %1614 = dma.done [#allocation41], 16
        $region296: #{decoder_forward.1} parent=199 // pred_fallthru
          _
        %p1615 = scmp.lt.s32.totalorder %s128, 1
        %s1616 = scalar_select %p1615, %s128, 1
        %s1617 = smul.addr %s1616, 8
        %s1618 = scalar_lea.vmem %s3, %s1617
        %p1619 = pneg %p149
        %p1620 = pneg %p146
        %p1621 = scmp.lt.s32.totalorder %s128, 1
        %s1622 = scalar_select %p1621, %s128, 1
        %s1623 = smul.addr %s1622, 4
        %s1624 = scalar_lea.vmem %s5, %s1623
        %p1625 = pneg %p175
        %p1626 = pneg %p172
        %p1627 = pneg %p196
        %p1628 = pneg %p193
        %p1629 = pneg %p217
        %p1630 = pneg %p214
        %p1631 = pneg %p238
        %p1632 = pneg %p235
        %p1633 = pneg %p259
        %p1634 = pneg %p256
        %p1635 = pneg %p280
        %p1636 = pneg %p277
        %p1637 = pneg %p301
        %p1638 = pneg %p298
        %p1639 = pneg %p322
        %p1640 = pneg %p319
        %p1641 = pneg %p343
        %p1642 = pneg %p340
        %p1643 = pneg %p364
        %p1644 = pneg %p361
        %p1645 = pneg %p385
        %p1646 = pneg %p382
        %p1647 = pneg %p406
        %p1648 = pneg %p403
        %p1649 = pneg %p427
        %p1650 = pneg %p424
        %p1651 = pneg %p448
        %p1652 = pneg %p445
        %p1653 = pneg %p469
        %p1654 = pneg %p466
        %p1655 = pneg %p490
        %p1656 = pneg %p487
        %p1657 = pneg %p511
        %p1658 = pneg %p508
        %p1659 = pneg %p532
        %p1660 = pneg %p529
        %p1661 = pneg %p553
        %p1662 = pneg %p550
        %p1663 = pneg %p574
        %p1664 = pneg %p571
        %p1665 = pneg %p595
        %p1666 = pneg %p592
        %p1667 = pneg %p616
        %p1668 = pneg %p613
        %p1669 = pneg %p637
        %p1670 = pneg %p634
        %p1671 = pneg %p658
        %p1672 = pneg %p655
        %p1673 = pneg %p679
        %p1674 = pneg %p676
        %p1675 = pneg %p700
        %p1676 = pneg %p697
        %p1677 = pneg %p721
        %p1678 = pneg %p718
        %p1679 = pneg %p742
        %p1680 = pneg %p739
        %p1681 = pneg %p763
        %p1682 = pneg %p760
        %p1683 = pneg %p784
        %p1684 = pneg %p781
        %p1685 = pneg %p805
        %p1686 = pneg %p802
        %p1687 = pneg %p826
        %p1688 = pneg %p823
        %p1689 = pneg %p847
        %p1690 = pneg %p844
        %p1691 = pneg %p868
        %p1692 = pneg %p865
        %p1693 = pneg %p889
        %p1694 = pneg %p886
        %p1695 = pneg %p910
        %p1696 = pneg %p907
        %p1697 = pneg %p931
        %p1698 = pneg %p928
        %p1699 = pneg %p952
        %p1700 = pneg %p949
        %p1701 = pneg %p973
        %p1702 = pneg %p970
        %p1703 = pneg %p994
        %p1704 = pneg %p991
        %p1705 = pneg %p1015
        %p1706 = pneg %p1012
        %p1707 = pneg %p1036
        %p1708 = pneg %p1033
        %p1709 = pneg %p1057
        %p1710 = pneg %p1054
        %p1711 = pneg %p1078
        %p1712 = pneg %p1075
        %p1713 = pneg %p1104
        %p1714 = pneg %p1101
        %s1715 = sand.u32 %s1091, 1
        %s1716 = scalar_lea.sflag [#allocation6], %s1715
        %s1717 = sand.u32 %s1091, 1
        %s1718 = smul.addr %s1717, 8
        %s1719 = scalar_lea.vmem [#allocation42], %s1718
        %p1720 = scmp.lt.s32.totalorder %s128, 1
        %s1721 = scalar_select %p1720, %s128, 1
        %s1722 = smul.addr %s1721, 8
        %s1723 = scalar_lea.vmem %s3, %s1722
        %p1724 = scmp.lt.s32.totalorder %s128, 1
        %s1725 = scalar_select %p1724, %s128, 1
        %s1726 = smul.addr %s1725, 4
        %s1727 = scalar_lea.vmem %s5, %s1726
        %s1729 = sld [smem:[#allocation3 + %s128]]
        %v1730 = vld [vmem:[%s1723] sm:$0xff]
        %v1731 = vld [vmem:[%s1727] sm:$0xf]
        %v1732 = vlaneseq
        %v1733 = vand.u32 %v1732, 127
        %1734 = vset.pattern.permute.xlu0 0
        %1735 = vperm.xlu0 %1734, %v1730
        %v1736 = vpop.permute.xlu0 %1735
        %vm1737 = vcmp.eq.s32.totalorder %v1736, %v1733
        %v1738 = vsel %vm1737, 1.0, 0.0
        %v1739 = vpack.c.bf16 %v1738, %v1738
        %v1740 = vld [vmem:[#allocation4] sm:$0xf]
        %v1741 = vld [vmem:[#allocation4 + $0x4] sm:$0xf]
        %v1744 = vunpack.c.l.b16 %v1740
        %v1745 = vunpack.c.l.b16 %v1741
        %v1746 = vpack.c.b16 %v1745, %v1744
        %vm1748 = vcmask 130048
        %v1750 = vsel %vm1748, %v1739, 0
        %1752 = vmatpush.bf16.msra.mxu0 0
        %1753 = vmatpush.bf16.msra.mxu0 0
        %1754 = vmatpush.bf16.msra.mxu0 0
        %1755 = vmatpush.bf16.msra.mxu0 0
        %1756 = vmatpush.bf16.msra.mxu0 0
        %1757 = vmatpush.bf16.msra.mxu0 0
        %1758 = vmatpush.bf16.msra.mxu0 0
        %1759 = vmatpush.bf16.msra.mxu0 %v1746
        %1760 = vmatmul.bf16.gmra.mxu0 %v1750
        %v1761 = vpop.f32.mrf.mxu0
        %v1762 = vadd.f32 0.0, %v1761
        %v1763 = vpop.f32.mrf.mxu0
        %1764 = vdwg.mxu0
        %v1765 = vlaneseq
        %v1766 = vshrl.u32 %v1765, 7
        %vm1767 = vcmp.le.s32.totalorder %v1733, %v1766
        %v1768 = vstv %s1729
        %vm1769 = vcmp.lt.s32.totalorder %v1733, %v1768
        %v1770 = vpack.c.bf16 %v1762, %v1762
        %v1771 = vld [vmem:[%s9] sm:$0xf]
        %v1772 = vld [vmem:[%s9 + $0x4] sm:$0xf]
        %v1773 = vld [vmem:[%s9 + $0x8] sm:$0xf]
        %v1774 = vld [vmem:[%s9 + $0xc] sm:$0xf]
        %v1775 = vld [vmem:[%s11] sm:$0x1]
        %v1777 = vperm.slane %v1775, 0
        %v1783 = vunpack.c.l.b16 %v1771
        %v1784 = vunpack.c.l.b16 %v1772
        %v1785 = vunpack.c.l.b16 %v1773
        %v1786 = vunpack.c.l.b16 %v1774
        %v1787 = vpack.c.b16 %v1784, %v1783
        %v1788 = vpack.c.b16 %v1786, %v1785
        %vm1791 = vcmask 261120
        %v1793 = vsel %vm1791, %v1770, 0
        %1795 = vmatpush.bf16.msra.mxu0 0
        %1796 = vmatpush.bf16.msra.mxu0 0
        %1797 = vmatpush.bf16.msra.mxu0 0
        %1798 = vmatpush.bf16.msra.mxu0 0
        %1799 = vmatpush.bf16.msra.mxu0 0
        %1800 = vmatpush.bf16.msra.mxu0 0
        %1801 = vmatpush.bf16.msra.mxu0 %v1788
        %1802 = vmatpush.bf16.msra.mxu0 %v1787
        %1803 = vmatmul.bf16.gmra.mxu0 %v1793
        %v1804 = vpop.f32.mrf.mxu0
        %v1805 = vadd.f32 %v1777, %v1804
        %v1806 = vpop.f32.mrf.mxu0
        %1807 = vdwg.mxu0
        %1809 = vrot.lane.b32.xlu0 %v1805, 96
        %v1810 = vpop.permute.xlu0 %1809
        %vm1811 = vcmask 64512
        %v1812 = vsel %vm1811, %v1805, 0
        %v1814 = vsel %vm1811, %v1810, 0
        %1816 = vmatpush.xpose.msra.mxu0 0.0
        %1817 = vmatpush.xpose.msra.mxu0 0.0
        %1818 = vmatpush.xpose.msra.mxu0 0.0
        %1819 = vmatpush.xpose.msra.mxu0 0.0
        %1820 = vmatpush.xpose.msra.mxu0 0.0
        %1821 = vmatpush.xpose.msra.mxu0 0.0
        %1822 = vmatpush.xpose.msra.mxu0 0.0
        %1823 = vmatpush.xpose.msra.mxu0 0.0
        %1824 = vmatpush.xpose.msra.mxu0 0.0
        %1825 = vmatpush.xpose.msra.mxu0 0.0
        %1826 = vmatpush.xpose.msra.mxu0 0.0
        %1827 = vmatpush.xpose.msra.mxu0 0.0
        %1828 = vmatpush.xpose.msra.mxu0 0.0
        %1829 = vmatpush.xpose.msra.mxu0 0.0
        %1830 = vmatpush.xpose.msra.mxu0 0.0
        %1831 = vmatpush.xpose.msra.mxu0 %v1814
        %1832 = vmatmul.f32.gmra.mxu0 %v1812
        %v1833 = vpop.f32.mrf.mxu0
        %v1834 = vadd.f32 0.0, %v1833
        %1835 = vdwg.mxu0
        %v1836 = vmul.f32 %v1834, 0.35355338
        %v1837 = vsel %vm1767, %v1836, -1e+30
        %v1838 = vsel %vm1811, %v1837, -inf
        %1839 = vmax.xlane.f32.xlu0 %v1838
        %v1840 = vpop.xlane.xlu0 %1839
        %v1841 = vsub.f32 %v1837, %v1840
        %v1842 = vmul.f32 %v1841, 1.442695
        %v1843 = vpow.pop %v1842
        %v1844 = vsel %vm1811, %v1843, 0.0
        %1845 = vadd.xlane.f32.xlu0 %v1844
        %v1846 = vpop.xlane.xlu0 %1845
        %v1847 = vrcp.pop %v1846
        %v1848 = vmul.f32 %v1843, %v1847
        %1849 = vrot.lane.b32.xlu0 %v1805, 64
        %v1850 = vpop.permute.xlu0 %1849
        %v1853 = vsel %vm1811, %v1848, 0
        %1855 = vmatpush.msra.mxu0 0.0
        %1856 = vmatpush.msra.mxu0 0.0
        %1857 = vmatpush.msra.mxu0 0.0
        %1858 = vmatpush.msra.mxu0 0.0
        %1859 = vmatpush.msra.mxu0 0.0
        %1860 = vmatpush.msra.mxu0 0.0
        %1861 = vmatpush.msra.mxu0 0.0
        %1862 = vmatpush.msra.mxu0 0.0
        %1863 = vmatpush.msra.mxu0 0.0
        %1864 = vmatpush.msra.mxu0 0.0
        %1865 = vmatpush.msra.mxu0 0.0
        %1866 = vmatpush.msra.mxu0 0.0
        %1867 = vmatpush.msra.mxu0 0.0
        %1868 = vmatpush.msra.mxu0 0.0
        %1869 = vmatpush.msra.mxu0 0.0
        %1870 = vmatpush.msra.mxu0 %v1850
        %1871 = vmatmul.f32.gmra.mxu0 %v1853
        %v1872 = vpop.f32.mrf.mxu0
        %v1873 = vadd.f32 0.0, %v1872
        %1874 = vdwg.mxu0
        %1875 = vrot.lane.b32.xlu0 %v1805, 120
        %v1876 = vpop.permute.xlu0 %1875
        %1877 = vrot.lane.b32.xlu0 %v1805, 88
        %v1878 = vpop.permute.xlu0 %1877
        %v1879 = vsel %vm1811, %v1876, 0
        %v1881 = vsel %vm1811, %v1878, 0
        %1883 = vmatpush.xpose.msra.mxu0 0.0
        %1884 = vmatpush.xpose.msra.mxu0 0.0
        %1885 = vmatpush.xpose.msra.mxu0 0.0
        %1886 = vmatpush.xpose.msra.mxu0 0.0
        %1887 = vmatpush.xpose.msra.mxu0 0.0
        %1888 = vmatpush.xpose.msra.mxu0 0.0
        %1889 = vmatpush.xpose.msra.mxu0 0.0
        %1890 = vmatpush.xpose.msra.mxu0 0.0
        %1891 = vmatpush.xpose.msra.mxu0 0.0
        %1892 = vmatpush.xpose.msra.mxu0 0.0
        %1893 = vmatpush.xpose.msra.mxu0 0.0
        %1894 = vmatpush.xpose.msra.mxu0 0.0
        %1895 = vmatpush.xpose.msra.mxu0 0.0
        %1896 = vmatpush.xpose.msra.mxu0 0.0
        %1897 = vmatpush.xpose.msra.mxu0 0.0
        %1898 = vmatpush.xpose.msra.mxu0 %v1881
        %1899 = vmatmul.f32.gmra.mxu0 %v1879
        %v1900 = vpop.f32.mrf.mxu0
        %v1901 = vadd.f32 0.0, %v1900
        %1902 = vdwg.mxu0
        %v1903 = vmul.f32 %v1901, 0.35355338
        %v1904 = vsel %vm1767, %v1903, -1e+30
        %v1905 = vsel %vm1811, %v1904, -inf
        %1906 = vmax.xlane.f32.xlu0 %v1905
        %v1907 = vpop.xlane.xlu0 %1906
        %v1908 = vsub.f32 %v1904, %v1907
        %v1909 = vmul.f32 %v1908, 1.442695
        %v1910 = vpow.pop %v1909
        %v1911 = vsel %vm1811, %v1910, 0.0
        %1912 = vadd.xlane.f32.xlu0 %v1911
        %v1913 = vpop.xlane.xlu0 %1912
        %v1914 = vrcp.pop %v1913
        %v1915 = vmul.f32 %v1910, %v1914
        %1916 = vrot.lane.b32.xlu0 %v1805, 56
        %v1917 = vpop.permute.xlu0 %1916
        %v1920 = vsel %vm1811, %v1915, 0
        %1922 = vmatpush.msra.mxu0 0.0
        %1923 = vmatpush.msra.mxu0 0.0
        %1924 = vmatpush.msra.mxu0 0.0
        %1925 = vmatpush.msra.mxu0 0.0
        %1926 = vmatpush.msra.mxu0 0.0
        %1927 = vmatpush.msra.mxu0 0.0
        %1928 = vmatpush.msra.mxu0 0.0
        %1929 = vmatpush.msra.mxu0 0.0
        %1930 = vmatpush.msra.mxu0 0.0
        %1931 = vmatpush.msra.mxu0 0.0
        %1932 = vmatpush.msra.mxu0 0.0
        %1933 = vmatpush.msra.mxu0 0.0
        %1934 = vmatpush.msra.mxu0 0.0
        %1935 = vmatpush.msra.mxu0 0.0
        %1936 = vmatpush.msra.mxu0 0.0
        %1937 = vmatpush.msra.mxu0 %v1917
        %1938 = vmatmul.f32.gmra.mxu0 %v1920
        %v1939 = vpop.f32.mrf.mxu0
        %v1940 = vadd.f32 0.0, %v1939
        %1941 = vdwg.mxu0
        %1942 = vrot.lane.b32.xlu0 %v1805, 112
        %v1943 = vpop.permute.xlu0 %1942
        %1944 = vrot.lane.b32.xlu0 %v1805, 80
        %v1945 = vpop.permute.xlu0 %1944
        %v1946 = vsel %vm1811, %v1943, 0
        %v1948 = vsel %vm1811, %v1945, 0
        %1950 = vmatpush.xpose.msra.mxu0 0.0
        %1951 = vmatpush.xpose.msra.mxu0 0.0
        %1952 = vmatpush.xpose.msra.mxu0 0.0
        %1953 = vmatpush.xpose.msra.mxu0 0.0
        %1954 = vmatpush.xpose.msra.mxu0 0.0
        %1955 = vmatpush.xpose.msra.mxu0 0.0
        %1956 = vmatpush.xpose.msra.mxu0 0.0
        %1957 = vmatpush.xpose.msra.mxu0 0.0
        %1958 = vmatpush.xpose.msra.mxu0 0.0
        %1959 = vmatpush.xpose.msra.mxu0 0.0
        %1960 = vmatpush.xpose.msra.mxu0 0.0
        %1961 = vmatpush.xpose.msra.mxu0 0.0
        %1962 = vmatpush.xpose.msra.mxu0 0.0
        %1963 = vmatpush.xpose.msra.mxu0 0.0
        %1964 = vmatpush.xpose.msra.mxu0 0.0
        %1965 = vmatpush.xpose.msra.mxu0 %v1948
        %1966 = vmatmul.f32.gmra.mxu0 %v1946
        %v1967 = vpop.f32.mrf.mxu0
        %v1968 = vadd.f32 0.0, %v1967
        %1969 = vdwg.mxu0
        %v1970 = vmul.f32 %v1968, 0.35355338
        %v1971 = vsel %vm1767, %v1970, -1e+30
        %v1972 = vsel %vm1811, %v1971, -inf
        %1973 = vmax.xlane.f32.xlu0 %v1972
        %v1974 = vpop.xlane.xlu0 %1973
        %v1975 = vsub.f32 %v1971, %v1974
        %v1976 = vmul.f32 %v1975, 1.442695
        %v1977 = vpow.pop %v1976
        %v1978 = vsel %vm1811, %v1977, 0.0
        %1979 = vadd.xlane.f32.xlu0 %v1978
        %v1980 = vpop.xlane.xlu0 %1979
        %v1981 = vrcp.pop %v1980
        %v1982 = vmul.f32 %v1977, %v1981
        %1983 = vrot.lane.b32.xlu0 %v1805, 48
        %v1984 = vpop.permute.xlu0 %1983
        %v1987 = vsel %vm1811, %v1982, 0
        %1989 = vmatpush.msra.mxu0 0.0
        %1990 = vmatpush.msra.mxu0 0.0
        %1991 = vmatpush.msra.mxu0 0.0
        %1992 = vmatpush.msra.mxu0 0.0
        %1993 = vmatpush.msra.mxu0 0.0
        %1994 = vmatpush.msra.mxu0 0.0
        %1995 = vmatpush.msra.mxu0 0.0
        %1996 = vmatpush.msra.mxu0 0.0
        %1997 = vmatpush.msra.mxu0 0.0
        %1998 = vmatpush.msra.mxu0 0.0
        %1999 = vmatpush.msra.mxu0 0.0
        %2000 = vmatpush.msra.mxu0 0.0
        %2001 = vmatpush.msra.mxu0 0.0
        %2002 = vmatpush.msra.mxu0 0.0
        %2003 = vmatpush.msra.mxu0 0.0
        %2004 = vmatpush.msra.mxu0 %v1984
        %2005 = vmatmul.f32.gmra.mxu0 %v1987
        %v2006 = vpop.f32.mrf.mxu0
        %v2007 = vadd.f32 0.0, %v2006
        %2008 = vdwg.mxu0
        %2009 = vrot.lane.b32.xlu0 %v1805, 104
        %v2010 = vpop.permute.xlu0 %2009
        %2011 = vrot.lane.b32.xlu0 %v1805, 72
        %v2012 = vpop.permute.xlu0 %2011
        %v2013 = vsel %vm1811, %v2010, 0
        %v2015 = vsel %vm1811, %v2012, 0
        %2017 = vmatpush.xpose.msra.mxu0 0.0
        %2018 = vmatpush.xpose.msra.mxu0 0.0
        %2019 = vmatpush.xpose.msra.mxu0 0.0
        %2020 = vmatpush.xpose.msra.mxu0 0.0
        %2021 = vmatpush.xpose.msra.mxu0 0.0
        %2022 = vmatpush.xpose.msra.mxu0 0.0
        %2023 = vmatpush.xpose.msra.mxu0 0.0
        %2024 = vmatpush.xpose.msra.mxu0 0.0
        %2025 = vmatpush.xpose.msra.mxu0 0.0
        %2026 = vmatpush.xpose.msra.mxu0 0.0
        %2027 = vmatpush.xpose.msra.mxu0 0.0
        %2028 = vmatpush.xpose.msra.mxu0 0.0
        %2029 = vmatpush.xpose.msra.mxu0 0.0
        %2030 = vmatpush.xpose.msra.mxu0 0.0
        %2031 = vmatpush.xpose.msra.mxu0 0.0
        %2032 = vmatpush.xpose.msra.mxu0 %v2015
        %2033 = vmatmul.f32.gmra.mxu0 %v2013
        %v2034 = vpop.f32.mrf.mxu0
        %v2035 = vadd.f32 0.0, %v2034
        %2036 = vdwg.mxu0
        %v2037 = vmul.f32 %v2035, 0.35355338
        %v2038 = vsel %vm1767, %v2037, -1e+30
        %v2039 = vsel %vm1811, %v2038, -inf
        %2040 = vmax.xlane.f32.xlu0 %v2039
        %v2041 = vpop.xlane.xlu0 %2040
        %v2042 = vsub.f32 %v2038, %v2041
        %v2043 = vmul.f32 %v2042, 1.442695
        %v2044 = vpow.pop %v2043
        %v2045 = vsel %vm1811, %v2044, 0.0
        %2046 = vadd.xlane.f32.xlu0 %v2045
        %v2047 = vpop.xlane.xlu0 %2046
        %v2048 = vrcp.pop %v2047
        %v2049 = vmul.f32 %v2044, %v2048
        %2050 = vrot.lane.b32.xlu0 %v1805, 40
        %v2051 = vpop.permute.xlu0 %2050
        %v2054 = vsel %vm1811, %v2049, 0
        %2056 = vmatpush.msra.mxu0 0.0
        %2057 = vmatpush.msra.mxu0 0.0
        %2058 = vmatpush.msra.mxu0 0.0
        %2059 = vmatpush.msra.mxu0 0.0
        %2060 = vmatpush.msra.mxu0 0.0
        %2061 = vmatpush.msra.mxu0 0.0
        %2062 = vmatpush.msra.mxu0 0.0
        %2063 = vmatpush.msra.mxu0 0.0
        %2064 = vmatpush.msra.mxu0 0.0
        %2065 = vmatpush.msra.mxu0 0.0
        %2066 = vmatpush.msra.mxu0 0.0
        %2067 = vmatpush.msra.mxu0 0.0
        %2068 = vmatpush.msra.mxu0 0.0
        %2069 = vmatpush.msra.mxu0 0.0
        %2070 = vmatpush.msra.mxu0 0.0
        %2071 = vmatpush.msra.mxu0 %v2051
        %2072 = vmatmul.f32.gmra.mxu0 %v2054
        %v2073 = vpop.f32.mrf.mxu0
        %v2074 = vadd.f32 0.0, %v2073
        %2075 = vdwg.mxu0
        %2077 = vrot.lane.b32.xlu0 %v1940, 8
        %v2078 = vpop.permute.xlu0 %2077
        %2081 = vrot.lane.b32.xlu0 %v2007, 16
        %v2082 = vpop.permute.xlu0 %2081
        %2085 = vrot.lane.b32.xlu0 %v2074, 24
        %v2086 = vpop.permute.xlu0 %2085
        %v2088 = vsel %vm1811, %v1873, %v2078
        %v2089 = vsel %vm1748, %v2088, %v2082
        %vm2090 = vcmask 195584
        %v2091 = vsel %vm2090, %v2089, %v2086
        %v2092 = vpack.c.bf16 %v2091, %v2091
        %v2093 = vld [vmem:[%s13] sm:$0xf]
        %v2094 = vld [vmem:[%s13 + $0x4] sm:$0xf]
        %v2095 = vld [vmem:[%s13 + $0x8] sm:$0xf]
        %v2096 = vld [vmem:[%s13 + $0xc] sm:$0xf]
        %v2097 = vld [vmem:[%s15] sm:$0x1]
        %v2099 = vperm.slane %v2097, 0
        %v2105 = vunpack.c.l.b16 %v2093
        %v2106 = vunpack.c.l.b16 %v2094
        %v2107 = vunpack.c.l.b16 %v2095
        %v2108 = vunpack.c.l.b16 %v2096
        %v2109 = vpack.c.b16 %v2106, %v2105
        %v2110 = vpack.c.b16 %v2108, %v2107
        %v2114 = vsel %vm1791, %v2092, 0
        %2116 = vmatpush.bf16.msra.mxu0 0
        %2117 = vmatpush.bf16.msra.mxu0 0
        %2118 = vmatpush.bf16.msra.mxu0 0
        %2119 = vmatpush.bf16.msra.mxu0 0
        %2120 = vmatpush.bf16.msra.mxu0 0
        %2121 = vmatpush.bf16.msra.mxu0 0
        %2122 = vmatpush.bf16.msra.mxu0 %v2110
        %2123 = vmatpush.bf16.msra.mxu0 %v2109
        %2124 = vmatmul.bf16.gmra.mxu0 %v2114
        %v2125 = vpop.f32.mrf.mxu0
        %v2126 = vadd.f32 %v2099, %v2125
        %v2127 = vpop.f32.mrf.mxu0
        %2128 = vdwg.mxu0
        %v2129 = vadd.f32 %v1762, %v2126
        %v2130 = vld [vmem:[#allocation7] sm:$0x1]
        %v2131 = vld [vmem:[#allocation9] sm:$0x1]
        %v2132 = vsel %vm1791, %v2129, 0.0
        %2133 = vadd.xlane.f32.xlu0 %v2132
        %v2134 = vpop.xlane.xlu0 %2133
        %v2135 = vrcp.pop 32.0
        %v2136 = vmul.f32 32.0, %v2135
        %v2137 = vsub.f32 1.0, %v2136
        %v2138 = vmul.f32 %v2135, %v2137
        %v2139 = vadd.f32 %v2135, %v2138
        %vm2140 = vweird.f32 %v2135
        %v2141 = vsel %vm2140, %v2135, %v2139
        %v2142 = vmul.f32 %v2134, %v2141
        %v2143 = vsub.f32 %v2129, %v2142
        %v2144 = vmul.f32 %v2143, %v2143
        %v2145 = vsel %vm1791, %v2144, 0.0
        %2146 = vadd.xlane.f32.xlu0 %v2145
        %v2147 = vpop.xlane.xlu0 %2146
        %v2148 = vmul.f32 %v2147, %v2141
        %v2149 = vadd.f32 %v2148, 1e-05
        %v2150 = vrsqrt.pop %v2149
        %v2151 = vmul.f32 %v2150, %v2149
        %v2152 = vmul.f32 %v2151, %v2150
        %v2153 = vmul.f32 0.5, %v2152
        %v2154 = vsub.f32 1.5, %v2153
        %v2155 = vmul.f32 %v2150, %v2154
        %vm2156 = vweird.f32 %v2149
        %vm2157 = vweird.f32 %v2150
        %vm2158 = vmor %vm2156, %vm2157
        %v2159 = vsel %vm2158, %v2150, %v2155
        %v2160 = vmul.f32 %v2143, %v2159
        %v2162 = vperm.slane %v2130, 0
        %v2164 = vmul.f32 %v2160, %v2162
        %v2166 = vperm.slane %v2131, 0
        %v2168 = vadd.f32 %v2164, %v2166
        %v2169 = vpack.c.bf16 %v2168, %v2168
        %v2170 = vld [vmem:[%s21] sm:$0xf]
        %v2171 = vld [vmem:[%s21 + $0x4] sm:$0xf]
        %v2172 = vld [vmem:[%s21 + $0x8] sm:$0xf]
        %v2173 = vld [vmem:[%s21 + $0xc] sm:$0xf]
        %v2174 = vld [vmem:[#allocation10] sm:$0x1]
        %v2176 = vperm.slane %v2174, 0
        %v2182 = vunpack.c.l.b16 %v2170
        %v2183 = vunpack.c.l.b16 %v2171
        %v2184 = vunpack.c.l.b16 %v2172
        %v2185 = vunpack.c.l.b16 %v2173
        %v2186 = vpack.c.b16 %v2183, %v2182
        %v2187 = vpack.c.b16 %v2185, %v2184
        %v2191 = vsel %vm1791, %v2169, 0
        %2193 = vmatpush.bf16.msra.mxu0 0
        %2194 = vmatpush.bf16.msra.mxu0 0
        %2195 = vmatpush.bf16.msra.mxu0 0
        %2196 = vmatpush.bf16.msra.mxu0 0
        %2197 = vmatpush.bf16.msra.mxu0 0
        %2198 = vmatpush.bf16.msra.mxu0 0
        %2199 = vmatpush.bf16.msra.mxu0 %v2187
        %2200 = vmatpush.bf16.msra.mxu0 %v2186
        %2201 = vmatmul.bf16.gmra.mxu0 %v2191
        %v2202 = vpop.f32.mrf.mxu0
        %v2203 = vadd.f32 %v2176, %v2202
        %v2204 = vpop.f32.mrf.mxu0
        %2205 = vdwg.mxu0
        %v2206 = vld [vmem:[%s25] sm:$0xf]
        %v2207 = vld [vmem:[%s25 + $0x4] sm:$0xf]
        %v2208 = vld [vmem:[%s25 + $0x8] sm:$0xf]
        %v2209 = vld [vmem:[%s25 + $0xc] sm:$0xf]
        %v2210 = vld [vmem:[#allocation12] sm:$0x1]
        %v2212 = vperm.slane %v2210, 0
        %v2218 = vunpack.c.l.b16 %v2206
        %v2219 = vunpack.c.l.b16 %v2207
        %v2220 = vunpack.c.l.b16 %v2208
        %v2221 = vunpack.c.l.b16 %v2209
        %v2222 = vpack.c.b16 %v2219, %v2218
        %v2223 = vpack.c.b16 %v2221, %v2220
        %v2227 = vsel %vm1791, %v1731, 0
        %2229 = vmatpush.bf16.msra.mxu0 0
        %2230 = vmatpush.bf16.msra.mxu0 0
        %2231 = vmatpush.bf16.msra.mxu0 0
        %2232 = vmatpush.bf16.msra.mxu0 0
        %2233 = vmatpush.bf16.msra.mxu0 0
        %2234 = vmatpush.bf16.msra.mxu0 0
        %2235 = vmatpush.bf16.msra.mxu0 %v2223
        %2236 = vmatpush.bf16.msra.mxu0 %v2222
        %2237 = vmatmul.bf16.gmra.mxu0 %v2227
        %v2238 = vpop.f32.mrf.mxu0
        %v2239 = vadd.f32 %v2212, %v2238
        %v2240 = vpop.f32.mrf.mxu0
        %2241 = vdwg.mxu0
        %v2243 = vsel %vm1811, %v2203, 0
        %v2246 = vsel %vm1811, %v2239, 0
        %2248 = vmatpush.xpose.msra.mxu0 0.0
        %2249 = vmatpush.xpose.msra.mxu0 0.0
        %2250 = vmatpush.xpose.msra.mxu0 0.0
        %2251 = vmatpush.xpose.msra.mxu0 0.0
        %2252 = vmatpush.xpose.msra.mxu0 0.0
        %2253 = vmatpush.xpose.msra.mxu0 0.0
        %2254 = vmatpush.xpose.msra.mxu0 0.0
        %2255 = vmatpush.xpose.msra.mxu0 0.0
        %2256 = vmatpush.xpose.msra.mxu0 0.0
        %2257 = vmatpush.xpose.msra.mxu0 0.0
        %2258 = vmatpush.xpose.msra.mxu0 0.0
        %2259 = vmatpush.xpose.msra.mxu0 0.0
        %2260 = vmatpush.xpose.msra.mxu0 0.0
        %2261 = vmatpush.xpose.msra.mxu0 0.0
        %2262 = vmatpush.xpose.msra.mxu0 0.0
        %2263 = vmatpush.xpose.msra.mxu0 %v2246
        %2264 = vmatmul.f32.gmra.mxu0 %v2243
        %v2265 = vpop.f32.mrf.mxu0
        %v2266 = vadd.f32 0.0, %v2265
        %2267 = vdwg.mxu0
        %v2268 = vmul.f32 %v2266, 0.35355338
        %v2269 = vsel %vm1769, %v2268, -1e+30
        %v2270 = vsel %vm1811, %v2269, -inf
        %2271 = vmax.xlane.f32.xlu0 %v2270
        %v2272 = vpop.xlane.xlu0 %2271
        %v2273 = vsub.f32 %v2269, %v2272
        %v2274 = vmul.f32 %v2273, 1.442695
        %v2275 = vpow.pop %v2274
        %v2276 = vsel %vm1811, %v2275, 0.0
        %2277 = vadd.xlane.f32.xlu0 %v2276
        %v2278 = vpop.xlane.xlu0 %2277
        %v2279 = vrcp.pop %v2278
        %v2280 = vmul.f32 %v2275, %v2279
        %2281 = vrot.lane.b32.xlu0 %v2239, 96
        %v2282 = vpop.permute.xlu0 %2281
        %v2285 = vsel %vm1811, %v2280, 0
        %2287 = vmatpush.msra.mxu0 0.0
        %2288 = vmatpush.msra.mxu0 0.0
        %2289 = vmatpush.msra.mxu0 0.0
        %2290 = vmatpush.msra.mxu0 0.0
        %2291 = vmatpush.msra.mxu0 0.0
        %2292 = vmatpush.msra.mxu0 0.0
        %2293 = vmatpush.msra.mxu0 0.0
        %2294 = vmatpush.msra.mxu0 0.0
        %2295 = vmatpush.msra.mxu0 0.0
        %2296 = vmatpush.msra.mxu0 0.0
        %2297 = vmatpush.msra.mxu0 0.0
        %2298 = vmatpush.msra.mxu0 0.0
        %2299 = vmatpush.msra.mxu0 0.0
        %2300 = vmatpush.msra.mxu0 0.0
        %2301 = vmatpush.msra.mxu0 0.0
        %2302 = vmatpush.msra.mxu0 %v2282
        %2303 = vmatmul.f32.gmra.mxu0 %v2285
        %v2304 = vpop.f32.mrf.mxu0
        %v2305 = vadd.f32 0.0, %v2304
        %2306 = vdwg.mxu0
        %2307 = vrot.lane.b32.xlu0 %v2203, 120
        %v2308 = vpop.permute.xlu0 %2307
        %2309 = vrot.lane.b32.xlu0 %v2239, 120
        %v2310 = vpop.permute.xlu0 %2309
        %v2311 = vsel %vm1811, %v2308, 0
        %v2313 = vsel %vm1811, %v2310, 0
        %2315 = vmatpush.xpose.msra.mxu0 0.0
        %2316 = vmatpush.xpose.msra.mxu0 0.0
        %2317 = vmatpush.xpose.msra.mxu0 0.0
        %2318 = vmatpush.xpose.msra.mxu0 0.0
        %2319 = vmatpush.xpose.msra.mxu0 0.0
        %2320 = vmatpush.xpose.msra.mxu0 0.0
        %2321 = vmatpush.xpose.msra.mxu0 0.0
        %2322 = vmatpush.xpose.msra.mxu0 0.0
        %2323 = vmatpush.xpose.msra.mxu0 0.0
        %2324 = vmatpush.xpose.msra.mxu0 0.0
        %2325 = vmatpush.xpose.msra.mxu0 0.0
        %2326 = vmatpush.xpose.msra.mxu0 0.0
        %2327 = vmatpush.xpose.msra.mxu0 0.0
        %2328 = vmatpush.xpose.msra.mxu0 0.0
        %2329 = vmatpush.xpose.msra.mxu0 0.0
        %2330 = vmatpush.xpose.msra.mxu0 %v2313
        %2331 = vmatmul.f32.gmra.mxu0 %v2311
        %v2332 = vpop.f32.mrf.mxu0
        %v2333 = vadd.f32 0.0, %v2332
        %2334 = vdwg.mxu0
        %v2335 = vmul.f32 %v2333, 0.35355338
        %v2336 = vsel %vm1769, %v2335, -1e+30
        %v2337 = vsel %vm1811, %v2336, -inf
        %2338 = vmax.xlane.f32.xlu0 %v2337
        %v2339 = vpop.xlane.xlu0 %2338
        %v2340 = vsub.f32 %v2336, %v2339
        %v2341 = vmul.f32 %v2340, 1.442695
        %v2342 = vpow.pop %v2341
        %v2343 = vsel %vm1811, %v2342, 0.0
        %2344 = vadd.xlane.f32.xlu0 %v2343
        %v2345 = vpop.xlane.xlu0 %2344
        %v2346 = vrcp.pop %v2345
        %v2347 = vmul.f32 %v2342, %v2346
        %2348 = vrot.lane.b32.xlu0 %v2239, 88
        %v2349 = vpop.permute.xlu0 %2348
        %v2352 = vsel %vm1811, %v2347, 0
        %2354 = vmatpush.msra.mxu0 0.0
        %2355 = vmatpush.msra.mxu0 0.0
        %2356 = vmatpush.msra.mxu0 0.0
        %2357 = vmatpush.msra.mxu0 0.0
        %2358 = vmatpush.msra.mxu0 0.0
        %2359 = vmatpush.msra.mxu0 0.0
        %2360 = vmatpush.msra.mxu0 0.0
        %2361 = vmatpush.msra.mxu0 0.0
        %2362 = vmatpush.msra.mxu0 0.0
        %2363 = vmatpush.msra.mxu0 0.0
        %2364 = vmatpush.msra.mxu0 0.0
        %2365 = vmatpush.msra.mxu0 0.0
        %2366 = vmatpush.msra.mxu0 0.0
        %2367 = vmatpush.msra.mxu0 0.0
        %2368 = vmatpush.msra.mxu0 0.0
        %2369 = vmatpush.msra.mxu0 %v2349
        %2370 = vmatmul.f32.gmra.mxu0 %v2352
        %v2371 = vpop.f32.mrf.mxu0
        %v2372 = vadd.f32 0.0, %v2371
        %2373 = vdwg.mxu0
        %2374 = vrot.lane.b32.xlu0 %v2203, 112
        %v2375 = vpop.permute.xlu0 %2374
        %2376 = vrot.lane.b32.xlu0 %v2239, 112
        %v2377 = vpop.permute.xlu0 %2376
        %v2378 = vsel %vm1811, %v2375, 0
        %v2380 = vsel %vm1811, %v2377, 0
        %2382 = vmatpush.xpose.msra.mxu0 0.0
        %2383 = vmatpush.xpose.msra.mxu0 0.0
        %2384 = vmatpush.xpose.msra.mxu0 0.0
        %2385 = vmatpush.xpose.msra.mxu0 0.0
        %2386 = vmatpush.xpose.msra.mxu0 0.0
        %2387 = vmatpush.xpose.msra.mxu0 0.0
        %2388 = vmatpush.xpose.msra.mxu0 0.0
        %2389 = vmatpush.xpose.msra.mxu0 0.0
        %2390 = vmatpush.xpose.msra.mxu0 0.0
        %2391 = vmatpush.xpose.msra.mxu0 0.0
        %2392 = vmatpush.xpose.msra.mxu0 0.0
        %2393 = vmatpush.xpose.msra.mxu0 0.0
        %2394 = vmatpush.xpose.msra.mxu0 0.0
        %2395 = vmatpush.xpose.msra.mxu0 0.0
        %2396 = vmatpush.xpose.msra.mxu0 0.0
        %2397 = vmatpush.xpose.msra.mxu0 %v2380
        %2398 = vmatmul.f32.gmra.mxu0 %v2378
        %v2399 = vpop.f32.mrf.mxu0
        %v2400 = vadd.f32 0.0, %v2399
        %2401 = vdwg.mxu0
        %v2402 = vmul.f32 %v2400, 0.35355338
        %v2403 = vsel %vm1769, %v2402, -1e+30
        %v2404 = vsel %vm1811, %v2403, -inf
        %2405 = vmax.xlane.f32.xlu0 %v2404
        %v2406 = vpop.xlane.xlu0 %2405
        %v2407 = vsub.f32 %v2403, %v2406
        %v2408 = vmul.f32 %v2407, 1.442695
        %v2409 = vpow.pop %v2408
        %v2410 = vsel %vm1811, %v2409, 0.0
        %2411 = vadd.xlane.f32.xlu0 %v2410
        %v2412 = vpop.xlane.xlu0 %2411
        %v2413 = vrcp.pop %v2412
        %v2414 = vmul.f32 %v2409, %v2413
        %2415 = vrot.lane.b32.xlu0 %v2239, 80
        %v2416 = vpop.permute.xlu0 %2415
        %v2419 = vsel %vm1811, %v2414, 0
        %2421 = vmatpush.msra.mxu0 0.0
        %2422 = vmatpush.msra.mxu0 0.0
        %2423 = vmatpush.msra.mxu0 0.0
        %2424 = vmatpush.msra.mxu0 0.0
        %2425 = vmatpush.msra.mxu0 0.0
        %2426 = vmatpush.msra.mxu0 0.0
        %2427 = vmatpush.msra.mxu0 0.0
        %2428 = vmatpush.msra.mxu0 0.0
        %2429 = vmatpush.msra.mxu0 0.0
        %2430 = vmatpush.msra.mxu0 0.0
        %2431 = vmatpush.msra.mxu0 0.0
        %2432 = vmatpush.msra.mxu0 0.0
        %2433 = vmatpush.msra.mxu0 0.0
        %2434 = vmatpush.msra.mxu0 0.0
        %2435 = vmatpush.msra.mxu0 0.0
        %2436 = vmatpush.msra.mxu0 %v2416
        %2437 = vmatmul.f32.gmra.mxu0 %v2419
        %v2438 = vpop.f32.mrf.mxu0
        %v2439 = vadd.f32 0.0, %v2438
        %2440 = vdwg.mxu0
        %2441 = vrot.lane.b32.xlu0 %v2203, 104
        %v2442 = vpop.permute.xlu0 %2441
        %2443 = vrot.lane.b32.xlu0 %v2239, 104
        %v2444 = vpop.permute.xlu0 %2443
        %v2445 = vsel %vm1811, %v2442, 0
        %v2447 = vsel %vm1811, %v2444, 0
        %2449 = vmatpush.xpose.msra.mxu0 0.0
        %2450 = vmatpush.xpose.msra.mxu0 0.0
        %2451 = vmatpush.xpose.msra.mxu0 0.0
        %2452 = vmatpush.xpose.msra.mxu0 0.0
        %2453 = vmatpush.xpose.msra.mxu0 0.0
        %2454 = vmatpush.xpose.msra.mxu0 0.0
        %2455 = vmatpush.xpose.msra.mxu0 0.0
        %2456 = vmatpush.xpose.msra.mxu0 0.0
        %2457 = vmatpush.xpose.msra.mxu0 0.0
        %2458 = vmatpush.xpose.msra.mxu0 0.0
        %2459 = vmatpush.xpose.msra.mxu0 0.0
        %2460 = vmatpush.xpose.msra.mxu0 0.0
        %2461 = vmatpush.xpose.msra.mxu0 0.0
        %2462 = vmatpush.xpose.msra.mxu0 0.0
        %2463 = vmatpush.xpose.msra.mxu0 0.0
        %2464 = vmatpush.xpose.msra.mxu0 %v2447
        %2465 = vmatmul.f32.gmra.mxu0 %v2445
        %v2466 = vpop.f32.mrf.mxu0
        %v2467 = vadd.f32 0.0, %v2466
        %2468 = vdwg.mxu0
        %v2469 = vmul.f32 %v2467, 0.35355338
        %v2470 = vsel %vm1769, %v2469, -1e+30
        %v2471 = vsel %vm1811, %v2470, -inf
        %2472 = vmax.xlane.f32.xlu0 %v2471
        %v2473 = vpop.xlane.xlu0 %2472
        %v2474 = vsub.f32 %v2470, %v2473
        %v2475 = vmul.f32 %v2474, 1.442695
        %v2476 = vpow.pop %v2475
        %v2477 = vsel %vm1811, %v2476, 0.0
        %2478 = vadd.xlane.f32.xlu0 %v2477
        %v2479 = vpop.xlane.xlu0 %2478
        %v2480 = vrcp.pop %v2479
        %v2481 = vmul.f32 %v2476, %v2480
        %2482 = vrot.lane.b32.xlu0 %v2239, 72
        %v2483 = vpop.permute.xlu0 %2482
        %v2486 = vsel %vm1811, %v2481, 0
        %2488 = vmatpush.msra.mxu0 0.0
        %2489 = vmatpush.msra.mxu0 0.0
        %2490 = vmatpush.msra.mxu0 0.0
        %2491 = vmatpush.msra.mxu0 0.0
        %2492 = vmatpush.msra.mxu0 0.0
        %2493 = vmatpush.msra.mxu0 0.0
        %2494 = vmatpush.msra.mxu0 0.0
        %2495 = vmatpush.msra.mxu0 0.0
        %2496 = vmatpush.msra.mxu0 0.0
        %2497 = vmatpush.msra.mxu0 0.0
        %2498 = vmatpush.msra.mxu0 0.0
        %2499 = vmatpush.msra.mxu0 0.0
        %2500 = vmatpush.msra.mxu0 0.0
        %2501 = vmatpush.msra.mxu0 0.0
        %2502 = vmatpush.msra.mxu0 0.0
        %2503 = vmatpush.msra.mxu0 %v2483
        %2504 = vmatmul.f32.gmra.mxu0 %v2486
        %v2505 = vpop.f32.mrf.mxu0
        %v2506 = vadd.f32 0.0, %v2505
        %2507 = vdwg.mxu0
        %2509 = vrot.lane.b32.xlu0 %v2372, 8
        %v2510 = vpop.permute.xlu0 %2509
        %2513 = vrot.lane.b32.xlu0 %v2439, 16
        %v2514 = vpop.permute.xlu0 %2513
        %2517 = vrot.lane.b32.xlu0 %v2506, 24
        %v2518 = vpop.permute.xlu0 %2517
        %v2520 = vsel %vm1811, %v2305, %v2510
        %v2521 = vsel %vm1748, %v2520, %v2514
        %v2522 = vsel %vm2090, %v2521, %v2518
        %v2523 = vpack.c.bf16 %v2522, %v2522
        %v2524 = vld [vmem:[%s29] sm:$0xf]
        %v2525 = vld [vmem:[%s29 + $0x4] sm:$0xf]
        %v2526 = vld [vmem:[%s29 + $0x8] sm:$0xf]
        %v2527 = vld [vmem:[%s29 + $0xc] sm:$0xf]
        %v2528 = vld [vmem:[#allocation13] sm:$0x1]
        %v2530 = vperm.slane %v2528, 0
        %v2536 = vunpack.c.l.b16 %v2524
        %v2537 = vunpack.c.l.b16 %v2525
        %v2538 = vunpack.c.l.b16 %v2526
        %v2539 = vunpack.c.l.b16 %v2527
        %v2540 = vpack.c.b16 %v2537, %v2536
        %v2541 = vpack.c.b16 %v2539, %v2538
        %v2545 = vsel %vm1791, %v2523, 0
        %2547 = vmatpush.bf16.msra.mxu0 0
        %2548 = vmatpush.bf16.msra.mxu0 0
        %2549 = vmatpush.bf16.msra.mxu0 0
        %2550 = vmatpush.bf16.msra.mxu0 0
        %2551 = vmatpush.bf16.msra.mxu0 0
        %2552 = vmatpush.bf16.msra.mxu0 0
        %2553 = vmatpush.bf16.msra.mxu0 %v2541
        %2554 = vmatpush.bf16.msra.mxu0 %v2540
        %2555 = vmatmul.bf16.gmra.mxu0 %v2545
        %v2556 = vpop.f32.mrf.mxu0
        %v2557 = vadd.f32 %v2530, %v2556
        %v2558 = vpop.f32.mrf.mxu0
        %2559 = vdwg.mxu0
        %v2560 = vadd.f32 %v2168, %v2557
        %v2561 = vld [vmem:[#allocation15] sm:$0x1]
        %v2562 = vld [vmem:[#allocation16] sm:$0x1]
        %v2563 = vsel %vm1791, %v2560, 0.0
        %2564 = vadd.xlane.f32.xlu0 %v2563
        %v2565 = vpop.xlane.xlu0 %2564
        %v2566 = vmul.f32 %v2565, %v2141
        %v2567 = vsub.f32 %v2560, %v2566
        %v2568 = vmul.f32 %v2567, %v2567
        %v2569 = vsel %vm1791, %v2568, 0.0
        %2570 = vadd.xlane.f32.xlu0 %v2569
        %v2571 = vpop.xlane.xlu0 %2570
        %v2572 = vmul.f32 %v2571, %v2141
        %v2573 = vadd.f32 %v2572, 1e-05
        %v2574 = vrsqrt.pop %v2573
        %v2575 = vmul.f32 %v2574, %v2573
        %v2576 = vmul.f32 %v2575, %v2574
        %v2577 = vmul.f32 0.5, %v2576
        %v2578 = vsub.f32 1.5, %v2577
        %v2579 = vmul.f32 %v2574, %v2578
        %vm2580 = vweird.f32 %v2573
        %vm2581 = vweird.f32 %v2574
        %vm2582 = vmor %vm2580, %vm2581
        %v2583 = vsel %vm2582, %v2574, %v2579
        %v2584 = vmul.f32 %v2567, %v2583
        %v2586 = vperm.slane %v2561, 0
        %v2588 = vmul.f32 %v2584, %v2586
        %v2590 = vperm.slane %v2562, 0
        %v2592 = vadd.f32 %v2588, %v2590
        %v2593 = vpack.c.bf16 %v2592, %v2592
        %v2594 = vld [vmem:[%s37] sm:$0xf]
        %v2595 = vld [vmem:[%s37 + $0x4] sm:$0xf]
        %v2596 = vld [vmem:[%s37 + $0x8] sm:$0xf]
        %v2597 = vld [vmem:[%s37 + $0xc] sm:$0xf]
        %v2598 = vld [vmem:[#allocation18] sm:$0x1]
        %v2600 = vperm.slane %v2598, 0
        %v2606 = vunpack.c.l.b16 %v2594
        %v2607 = vunpack.c.l.b16 %v2595
        %v2608 = vunpack.c.l.b16 %v2596
        %v2609 = vunpack.c.l.b16 %v2597
        %v2610 = vpack.c.b16 %v2607, %v2606
        %v2611 = vpack.c.b16 %v2609, %v2608
        %v2615 = vsel %vm1791, %v2593, 0
        %2617 = vmatpush.bf16.msra.mxu0 0
        %2618 = vmatpush.bf16.msra.mxu0 0
        %2619 = vmatpush.bf16.msra.mxu0 0
        %2620 = vmatpush.bf16.msra.mxu0 0
        %2621 = vmatpush.bf16.msra.mxu0 0
        %2622 = vmatpush.bf16.msra.mxu0 0
        %2623 = vmatpush.bf16.msra.mxu0 %v2611
        %2624 = vmatpush.bf16.msra.mxu0 %v2610
        %2625 = vmatmul.bf16.gmra.mxu0 %v2615
        %v2626 = vpop.f32.mrf.mxu0
        %v2627 = vadd.f32 %v2600, %v2626
        %v2628 = vpop.f32.mrf.mxu0
        %2629 = vdwg.mxu0
        %v2630 = vmax.f32 %v2627, 0.0
        %v2631 = vpack.c.bf16 %v2630, %v2630
        %v2632 = vld [vmem:[%s41] sm:$0xf]
        %v2633 = vld [vmem:[%s41 + $0x4] sm:$0xf]
        %v2634 = vld [vmem:[%s41 + $0x8] sm:$0xf]
        %v2635 = vld [vmem:[%s41 + $0xc] sm:$0xf]
        %v2636 = vld [vmem:[%s41 + $0x10] sm:$0xf]
        %v2637 = vld [vmem:[%s41 + $0x14] sm:$0xf]
        %v2638 = vld [vmem:[%s41 + $0x18] sm:$0xf]
        %v2639 = vld [vmem:[%s41 + $0x1c] sm:$0xf]
        %v2640 = vld [vmem:[%s41 + $0x20] sm:$0xf]
        %v2641 = vld [vmem:[%s41 + $0x24] sm:$0xf]
        %v2642 = vld [vmem:[%s41 + $0x28] sm:$0xf]
        %v2643 = vld [vmem:[%s41 + $0x2c] sm:$0xf]
        %v2644 = vld [vmem:[%s41 + $0x30] sm:$0xf]
        %v2645 = vld [vmem:[%s41 + $0x34] sm:$0xf]
        %v2646 = vld [vmem:[%s41 + $0x38] sm:$0xf]
        %v2647 = vld [vmem:[%s41 + $0x3c] sm:$0xf]
        %v2648 = vld [vmem:[#allocation19] sm:$0x1]
        %v2650 = vperm.slane %v2648, 0
        %v2668 = vunpack.c.l.b16 %v2632
        %v2669 = vunpack.c.l.b16 %v2633
        %v2670 = vunpack.c.l.b16 %v2634
        %v2671 = vunpack.c.l.b16 %v2635
        %v2672 = vunpack.c.l.b16 %v2636
        %v2673 = vunpack.c.l.b16 %v2637
        %v2674 = vunpack.c.l.b16 %v2638
        %v2675 = vunpack.c.l.b16 %v2639
        %v2676 = vunpack.c.l.b16 %v2640
        %v2677 = vunpack.c.l.b16 %v2641
        %v2678 = vunpack.c.l.b16 %v2642
        %v2679 = vunpack.c.l.b16 %v2643
        %v2680 = vunpack.c.l.b16 %v2644
        %v2681 = vunpack.c.l.b16 %v2645
        %v2682 = vunpack.c.l.b16 %v2646
        %v2683 = vunpack.c.l.b16 %v2647
        %v2684 = vpack.c.b16 %v2669, %v2668
        %v2685 = vpack.c.b16 %v2671, %v2670
        %v2686 = vpack.c.b16 %v2673, %v2672
        %v2687 = vpack.c.b16 %v2675, %v2674
        %v2688 = vpack.c.b16 %v2677, %v2676
        %v2689 = vpack.c.b16 %v2679, %v2678
        %v2690 = vpack.c.b16 %v2681, %v2680
        %v2691 = vpack.c.b16 %v2683, %v2682
        %2700 = vmatpush.bf16.msra.mxu0 %v2691
        %2701 = vmatpush.bf16.msra.mxu0 %v2690
        %2702 = vmatpush.bf16.msra.mxu0 %v2689
        %2703 = vmatpush.bf16.msra.mxu0 %v2688
        %2704 = vmatpush.bf16.msra.mxu0 %v2687
        %2705 = vmatpush.bf16.msra.mxu0 %v2686
        %2706 = vmatpush.bf16.msra.mxu0 %v2685
        %2707 = vmatpush.bf16.msra.mxu0 %v2684
        %2708 = vmatmul.bf16.gmra.mxu0 %v2631
        %v2709 = vpop.f32.mrf.mxu0
        %v2710 = vadd.f32 %v2650, %v2709
        %v2711 = vpop.f32.mrf.mxu0
        %2712 = vdwg.mxu0
        %v2713 = vadd.f32 %v2592, %v2710
        %v2714 = vld [vmem:[%s45] sm:$0x1]
        %v2715 = vld [vmem:[#allocation21] sm:$0x1]
        %v2716 = vsel %vm1791, %v2713, 0.0
        %2717 = vadd.xlane.f32.xlu0 %v2716
        %v2718 = vpop.xlane.xlu0 %2717
        %v2719 = vmul.f32 %v2718, %v2141
        %v2720 = vsub.f32 %v2713, %v2719
        %v2721 = vmul.f32 %v2720, %v2720
        %v2722 = vsel %vm1791, %v2721, 0.0
        %2723 = vadd.xlane.f32.xlu0 %v2722
        %v2724 = vpop.xlane.xlu0 %2723
        %v2725 = vmul.f32 %v2724, %v2141
        %v2726 = vadd.f32 %v2725, 1e-05
        %v2727 = vrsqrt.pop %v2726
        %v2728 = vmul.f32 %v2727, %v2726
        %v2729 = vmul.f32 %v2728, %v2727
        %v2730 = vmul.f32 0.5, %v2729
        %v2731 = vsub.f32 1.5, %v2730
        %v2732 = vmul.f32 %v2727, %v2731
        %vm2733 = vweird.f32 %v2726
        %vm2734 = vweird.f32 %v2727
        %vm2735 = vmor %vm2733, %vm2734
        %v2736 = vsel %vm2735, %v2727, %v2732
        %v2737 = vmul.f32 %v2720, %v2736
        %v2739 = vperm.slane %v2714, 0
        %v2741 = vmul.f32 %v2737, %v2739
        %v2743 = vperm.slane %v2715, 0
        %v2745 = vadd.f32 %v2741, %v2743
        %v2746 = vpack.c.bf16 %v2745, %v2745
        %v2747 = vld [vmem:[%s49] sm:$0xf]
        %v2748 = vld [vmem:[%s49 + $0x4] sm:$0xf]
        %v2749 = vld [vmem:[%s49 + $0x8] sm:$0xf]
        %v2750 = vld [vmem:[%s49 + $0xc] sm:$0xf]
        %v2751 = vld [vmem:[%s51] sm:$0x1]
        %v2753 = vperm.slane %v2751, 0
        %v2759 = vunpack.c.l.b16 %v2747
        %v2760 = vunpack.c.l.b16 %v2748
        %v2761 = vunpack.c.l.b16 %v2749
        %v2762 = vunpack.c.l.b16 %v2750
        %v2763 = vpack.c.b16 %v2760, %v2759
        %v2764 = vpack.c.b16 %v2762, %v2761
        %v2768 = vsel %vm1791, %v2746, 0
        %2770 = vmatpush.bf16.msra.mxu0 0
        %2771 = vmatpush.bf16.msra.mxu0 0
        %2772 = vmatpush.bf16.msra.mxu0 0
        %2773 = vmatpush.bf16.msra.mxu0 0
        %2774 = vmatpush.bf16.msra.mxu0 0
        %2775 = vmatpush.bf16.msra.mxu0 0
        %2776 = vmatpush.bf16.msra.mxu0 %v2764
        %2777 = vmatpush.bf16.msra.mxu0 %v2763
        %2778 = vmatmul.bf16.gmra.mxu0 %v2768
        %v2779 = vpop.f32.mrf.mxu0
        %v2780 = vadd.f32 %v2753, %v2779
        %v2781 = vpop.f32.mrf.mxu0
        %2782 = vdwg.mxu0
        %2784 = vrot.lane.b32.xlu0 %v2780, 96
        %v2785 = vpop.permute.xlu0 %2784
        %v2786 = vsel %vm1811, %v2780, 0
        %v2788 = vsel %vm1811, %v2785, 0
        %2790 = vmatpush.xpose.msra.mxu0 0.0
        %2791 = vmatpush.xpose.msra.mxu0 0.0
        %2792 = vmatpush.xpose.msra.mxu0 0.0
        %2793 = vmatpush.xpose.msra.mxu0 0.0
        %2794 = vmatpush.xpose.msra.mxu0 0.0
        %2795 = vmatpush.xpose.msra.mxu0 0.0
        %2796 = vmatpush.xpose.msra.mxu0 0.0
        %2797 = vmatpush.xpose.msra.mxu0 0.0
        %2798 = vmatpush.xpose.msra.mxu0 0.0
        %2799 = vmatpush.xpose.msra.mxu0 0.0
        %2800 = vmatpush.xpose.msra.mxu0 0.0
        %2801 = vmatpush.xpose.msra.mxu0 0.0
        %2802 = vmatpush.xpose.msra.mxu0 0.0
        %2803 = vmatpush.xpose.msra.mxu0 0.0
        %2804 = vmatpush.xpose.msra.mxu0 0.0
        %2805 = vmatpush.xpose.msra.mxu0 %v2788
        %2806 = vmatmul.f32.gmra.mxu0 %v2786
        %v2807 = vpop.f32.mrf.mxu0
        %v2808 = vadd.f32 0.0, %v2807
        %2809 = vdwg.mxu0
        %v2810 = vmul.f32 %v2808, 0.35355338
        %v2811 = vsel %vm1767, %v2810, -1e+30
        %v2812 = vsel %vm1811, %v2811, -inf
        %2813 = vmax.xlane.f32.xlu0 %v2812
        %v2814 = vpop.xlane.xlu0 %2813
        %v2815 = vsub.f32 %v2811, %v2814
        %v2816 = vmul.f32 %v2815, 1.442695
        %v2817 = vpow.pop %v2816
        %v2818 = vsel %vm1811, %v2817, 0.0
        %2819 = vadd.xlane.f32.xlu0 %v2818
        %v2820 = vpop.xlane.xlu0 %2819
        %v2821 = vrcp.pop %v2820
        %v2822 = vmul.f32 %v2817, %v2821
        %2823 = vrot.lane.b32.xlu0 %v2780, 64
        %v2824 = vpop.permute.xlu0 %2823
        %v2827 = vsel %vm1811, %v2822, 0
        %2829 = vmatpush.msra.mxu0 0.0
        %2830 = vmatpush.msra.mxu0 0.0
        %2831 = vmatpush.msra.mxu0 0.0
        %2832 = vmatpush.msra.mxu0 0.0
        %2833 = vmatpush.msra.mxu0 0.0
        %2834 = vmatpush.msra.mxu0 0.0
        %2835 = vmatpush.msra.mxu0 0.0
        %2836 = vmatpush.msra.mxu0 0.0
        %2837 = vmatpush.msra.mxu0 0.0
        %2838 = vmatpush.msra.mxu0 0.0
        %2839 = vmatpush.msra.mxu0 0.0
        %2840 = vmatpush.msra.mxu0 0.0
        %2841 = vmatpush.msra.mxu0 0.0
        %2842 = vmatpush.msra.mxu0 0.0
        %2843 = vmatpush.msra.mxu0 0.0
        %2844 = vmatpush.msra.mxu0 %v2824
        %2845 = vmatmul.f32.gmra.mxu0 %v2827
        %v2846 = vpop.f32.mrf.mxu0
        %v2847 = vadd.f32 0.0, %v2846
        %2848 = vdwg.mxu0
        %2849 = vrot.lane.b32.xlu0 %v2780, 120
        %v2850 = vpop.permute.xlu0 %2849
        %2851 = vrot.lane.b32.xlu0 %v2780, 88
        %v2852 = vpop.permute.xlu0 %2851
        %v2853 = vsel %vm1811, %v2850, 0
        %v2855 = vsel %vm1811, %v2852, 0
        %2857 = vmatpush.xpose.msra.mxu0 0.0
        %2858 = vmatpush.xpose.msra.mxu0 0.0
        %2859 = vmatpush.xpose.msra.mxu0 0.0
        %2860 = vmatpush.xpose.msra.mxu0 0.0
        %2861 = vmatpush.xpose.msra.mxu0 0.0
        %2862 = vmatpush.xpose.msra.mxu0 0.0
        %2863 = vmatpush.xpose.msra.mxu0 0.0
        %2864 = vmatpush.xpose.msra.mxu0 0.0
        %2865 = vmatpush.xpose.msra.mxu0 0.0
        %2866 = vmatpush.xpose.msra.mxu0 0.0
        %2867 = vmatpush.xpose.msra.mxu0 0.0
        %2868 = vmatpush.xpose.msra.mxu0 0.0
        %2869 = vmatpush.xpose.msra.mxu0 0.0
        %2870 = vmatpush.xpose.msra.mxu0 0.0
        %2871 = vmatpush.xpose.msra.mxu0 0.0
        %2872 = vmatpush.xpose.msra.mxu0 %v2855
        %2873 = vmatmul.f32.gmra.mxu0 %v2853
        %v2874 = vpop.f32.mrf.mxu0
        %v2875 = vadd.f32 0.0, %v2874
        %2876 = vdwg.mxu0
        %v2877 = vmul.f32 %v2875, 0.35355338
        %v2878 = vsel %vm1767, %v2877, -1e+30
        %v2879 = vsel %vm1811, %v2878, -inf
        %2880 = vmax.xlane.f32.xlu0 %v2879
        %v2881 = vpop.xlane.xlu0 %2880
        %v2882 = vsub.f32 %v2878, %v2881
        %v2883 = vmul.f32 %v2882, 1.442695
        %v2884 = vpow.pop %v2883
        %v2885 = vsel %vm1811, %v2884, 0.0
        %2886 = vadd.xlane.f32.xlu0 %v2885
        %v2887 = vpop.xlane.xlu0 %2886
        %v2888 = vrcp.pop %v2887
        %v2889 = vmul.f32 %v2884, %v2888
        %2890 = vrot.lane.b32.xlu0 %v2780, 56
        %v2891 = vpop.permute.xlu0 %2890
        %v2894 = vsel %vm1811, %v2889, 0
        %2896 = vmatpush.msra.mxu0 0.0
        %2897 = vmatpush.msra.mxu0 0.0
        %2898 = vmatpush.msra.mxu0 0.0
        %2899 = vmatpush.msra.mxu0 0.0
        %2900 = vmatpush.msra.mxu0 0.0
        %2901 = vmatpush.msra.mxu0 0.0
        %2902 = vmatpush.msra.mxu0 0.0
        %2903 = vmatpush.msra.mxu0 0.0
        %2904 = vmatpush.msra.mxu0 0.0
        %2905 = vmatpush.msra.mxu0 0.0
        %2906 = vmatpush.msra.mxu0 0.0
        %2907 = vmatpush.msra.mxu0 0.0
        %2908 = vmatpush.msra.mxu0 0.0
        %2909 = vmatpush.msra.mxu0 0.0
        %2910 = vmatpush.msra.mxu0 0.0
        %2911 = vmatpush.msra.mxu0 %v2891
        %2912 = vmatmul.f32.gmra.mxu0 %v2894
        %v2913 = vpop.f32.mrf.mxu0
        %v2914 = vadd.f32 0.0, %v2913
        %2915 = vdwg.mxu0
        %2916 = vrot.lane.b32.xlu0 %v2780, 112
        %v2917 = vpop.permute.xlu0 %2916
        %2918 = vrot.lane.b32.xlu0 %v2780, 80
        %v2919 = vpop.permute.xlu0 %2918
        %v2920 = vsel %vm1811, %v2917, 0
        %v2922 = vsel %vm1811, %v2919, 0
        %2924 = vmatpush.xpose.msra.mxu0 0.0
        %2925 = vmatpush.xpose.msra.mxu0 0.0
        %2926 = vmatpush.xpose.msra.mxu0 0.0
        %2927 = vmatpush.xpose.msra.mxu0 0.0
        %2928 = vmatpush.xpose.msra.mxu0 0.0
        %2929 = vmatpush.xpose.msra.mxu0 0.0
        %2930 = vmatpush.xpose.msra.mxu0 0.0
        %2931 = vmatpush.xpose.msra.mxu0 0.0
        %2932 = vmatpush.xpose.msra.mxu0 0.0
        %2933 = vmatpush.xpose.msra.mxu0 0.0
        %2934 = vmatpush.xpose.msra.mxu0 0.0
        %2935 = vmatpush.xpose.msra.mxu0 0.0
        %2936 = vmatpush.xpose.msra.mxu0 0.0
        %2937 = vmatpush.xpose.msra.mxu0 0.0
        %2938 = vmatpush.xpose.msra.mxu0 0.0
        %2939 = vmatpush.xpose.msra.mxu0 %v2922
        %2940 = vmatmul.f32.gmra.mxu0 %v2920
        %v2941 = vpop.f32.mrf.mxu0
        %v2942 = vadd.f32 0.0, %v2941
        %2943 = vdwg.mxu0
        %v2944 = vmul.f32 %v2942, 0.35355338
        %v2945 = vsel %vm1767, %v2944, -1e+30
        %v2946 = vsel %vm1811, %v2945, -inf
        %2947 = vmax.xlane.f32.xlu0 %v2946
        %v2948 = vpop.xlane.xlu0 %2947
        %v2949 = vsub.f32 %v2945, %v2948
        %v2950 = vmul.f32 %v2949, 1.442695
        %v2951 = vpow.pop %v2950
        %v2952 = vsel %vm1811, %v2951, 0.0
        %2953 = vadd.xlane.f32.xlu0 %v2952
        %v2954 = vpop.xlane.xlu0 %2953
        %v2955 = vrcp.pop %v2954
        %v2956 = vmul.f32 %v2951, %v2955
        %2957 = vrot.lane.b32.xlu0 %v2780, 48
        %v2958 = vpop.permute.xlu0 %2957
        %v2961 = vsel %vm1811, %v2956, 0
        %2963 = vmatpush.msra.mxu0 0.0
        %2964 = vmatpush.msra.mxu0 0.0
        %2965 = vmatpush.msra.mxu0 0.0
        %2966 = vmatpush.msra.mxu0 0.0
        %2967 = vmatpush.msra.mxu0 0.0
        %2968 = vmatpush.msra.mxu0 0.0
        %2969 = vmatpush.msra.mxu0 0.0
        %2970 = vmatpush.msra.mxu0 0.0
        %2971 = vmatpush.msra.mxu0 0.0
        %2972 = vmatpush.msra.mxu0 0.0
        %2973 = vmatpush.msra.mxu0 0.0
        %2974 = vmatpush.msra.mxu0 0.0
        %2975 = vmatpush.msra.mxu0 0.0
        %2976 = vmatpush.msra.mxu0 0.0
        %2977 = vmatpush.msra.mxu0 0.0
        %2978 = vmatpush.msra.mxu0 %v2958
        %2979 = vmatmul.f32.gmra.mxu0 %v2961
        %v2980 = vpop.f32.mrf.mxu0
        %v2981 = vadd.f32 0.0, %v2980
        %2982 = vdwg.mxu0
        %2983 = vrot.lane.b32.xlu0 %v2780, 104
        %v2984 = vpop.permute.xlu0 %2983
        %2985 = vrot.lane.b32.xlu0 %v2780, 72
        %v2986 = vpop.permute.xlu0 %2985
        %v2987 = vsel %vm1811, %v2984, 0
        %v2989 = vsel %vm1811, %v2986, 0
        %2991 = vmatpush.xpose.msra.mxu0 0.0
        %2992 = vmatpush.xpose.msra.mxu0 0.0
        %2993 = vmatpush.xpose.msra.mxu0 0.0
        %2994 = vmatpush.xpose.msra.mxu0 0.0
        %2995 = vmatpush.xpose.msra.mxu0 0.0
        %2996 = vmatpush.xpose.msra.mxu0 0.0
        %2997 = vmatpush.xpose.msra.mxu0 0.0
        %2998 = vmatpush.xpose.msra.mxu0 0.0
        %2999 = vmatpush.xpose.msra.mxu0 0.0
        %3000 = vmatpush.xpose.msra.mxu0 0.0
        %3001 = vmatpush.xpose.msra.mxu0 0.0
        %3002 = vmatpush.xpose.msra.mxu0 0.0
        %3003 = vmatpush.xpose.msra.mxu0 0.0
        %3004 = vmatpush.xpose.msra.mxu0 0.0
        %3005 = vmatpush.xpose.msra.mxu0 0.0
        %3006 = vmatpush.xpose.msra.mxu0 %v2989
        %3007 = vmatmul.f32.gmra.mxu0 %v2987
        %v3008 = vpop.f32.mrf.mxu0
        %v3009 = vadd.f32 0.0, %v3008
        %3010 = vdwg.mxu0
        %v3011 = vmul.f32 %v3009, 0.35355338
        %v3012 = vsel %vm1767, %v3011, -1e+30
        %v3013 = vsel %vm1811, %v3012, -inf
        %3014 = vmax.xlane.f32.xlu0 %v3013
        %v3015 = vpop.xlane.xlu0 %3014
        %v3016 = vsub.f32 %v3012, %v3015
        %v3017 = vmul.f32 %v3016, 1.442695
        %v3018 = vpow.pop %v3017
        %v3019 = vsel %vm1811, %v3018, 0.0
        %3020 = vadd.xlane.f32.xlu0 %v3019
        %v3021 = vpop.xlane.xlu0 %3020
        %v3022 = vrcp.pop %v3021
        %v3023 = vmul.f32 %v3018, %v3022
        %3024 = vrot.lane.b32.xlu0 %v2780, 40
        %v3025 = vpop.permute.xlu0 %3024
        %v3028 = vsel %vm1811, %v3023, 0
        %3030 = vmatpush.msra.mxu0 0.0
        %3031 = vmatpush.msra.mxu0 0.0
        %3032 = vmatpush.msra.mxu0 0.0
        %3033 = vmatpush.msra.mxu0 0.0
        %3034 = vmatpush.msra.mxu0 0.0
        %3035 = vmatpush.msra.mxu0 0.0
        %3036 = vmatpush.msra.mxu0 0.0
        %3037 = vmatpush.msra.mxu0 0.0
        %3038 = vmatpush.msra.mxu0 0.0
        %3039 = vmatpush.msra.mxu0 0.0
        %3040 = vmatpush.msra.mxu0 0.0
        %3041 = vmatpush.msra.mxu0 0.0
        %3042 = vmatpush.msra.mxu0 0.0
        %3043 = vmatpush.msra.mxu0 0.0
        %3044 = vmatpush.msra.mxu0 0.0
        %3045 = vmatpush.msra.mxu0 %v3025
        %3046 = vmatmul.f32.gmra.mxu0 %v3028
        %v3047 = vpop.f32.mrf.mxu0
        %v3048 = vadd.f32 0.0, %v3047
        %3049 = vdwg.mxu0
        %3051 = vrot.lane.b32.xlu0 %v2914, 8
        %v3052 = vpop.permute.xlu0 %3051
        %3055 = vrot.lane.b32.xlu0 %v2981, 16
        %v3056 = vpop.permute.xlu0 %3055
        %3059 = vrot.lane.b32.xlu0 %v3048, 24
        %v3060 = vpop.permute.xlu0 %3059
        %v3062 = vsel %vm1811, %v2847, %v3052
        %v3063 = vsel %vm1748, %v3062, %v3056
        %v3064 = vsel %vm2090, %v3063, %v3060
        %v3065 = vpack.c.bf16 %v3064, %v3064
        %v3066 = vld [vmem:[%s53] sm:$0xf]
        %v3067 = vld [vmem:[%s53 + $0x4] sm:$0xf]
        %v3068 = vld [vmem:[%s53 + $0x8] sm:$0xf]
        %v3069 = vld [vmem:[%s53 + $0xc] sm:$0xf]
        %v3070 = vld [vmem:[%s55] sm:$0x1]
        %v3072 = vperm.slane %v3070, 0
        %v3078 = vunpack.c.l.b16 %v3066
        %v3079 = vunpack.c.l.b16 %v3067
        %v3080 = vunpack.c.l.b16 %v3068
        %v3081 = vunpack.c.l.b16 %v3069
        %v3082 = vpack.c.b16 %v3079, %v3078
        %v3083 = vpack.c.b16 %v3081, %v3080
        %v3087 = vsel %vm1791, %v3065, 0
        %3089 = vmatpush.bf16.msra.mxu0 0
        %3090 = vmatpush.bf16.msra.mxu0 0
        %3091 = vmatpush.bf16.msra.mxu0 0
        %3092 = vmatpush.bf16.msra.mxu0 0
        %3093 = vmatpush.bf16.msra.mxu0 0
        %3094 = vmatpush.bf16.msra.mxu0 0
        %3095 = vmatpush.bf16.msra.mxu0 %v3083
        %3096 = vmatpush.bf16.msra.mxu0 %v3082
        %3097 = vmatmul.bf16.gmra.mxu0 %v3087
        %v3098 = vpop.f32.mrf.mxu0
        %v3099 = vadd.f32 %v3072, %v3098
        %v3100 = vpop.f32.mrf.mxu0
        %3101 = vdwg.mxu0
        %v3102 = vadd.f32 %v2745, %v3099
        %v3103 = vld [vmem:[%s57] sm:$0x1]
        %v3104 = vld [vmem:[#allocation22] sm:$0x1]
        %v3105 = vsel %vm1791, %v3102, 0.0
        %3106 = vadd.xlane.f32.xlu0 %v3105
        %v3107 = vpop.xlane.xlu0 %3106
        %v3108 = vmul.f32 %v3107, %v2141
        %v3109 = vsub.f32 %v3102, %v3108
        %v3110 = vmul.f32 %v3109, %v3109
        %v3111 = vsel %vm1791, %v3110, 0.0
        %3112 = vadd.xlane.f32.xlu0 %v3111
        %v3113 = vpop.xlane.xlu0 %3112
        %v3114 = vmul.f32 %v3113, %v2141
        %v3115 = vadd.f32 %v3114, 1e-05
        %v3116 = vrsqrt.pop %v3115
        %v3117 = vmul.f32 %v3116, %v3115
        %v3118 = vmul.f32 %v3117, %v3116
        %v3119 = vmul.f32 0.5, %v3118
        %v3120 = vsub.f32 1.5, %v3119
        %v3121 = vmul.f32 %v3116, %v3120
        %vm3122 = vweird.f32 %v3115
        %vm3123 = vweird.f32 %v3116
        %vm3124 = vmor %vm3122, %vm3123
        %v3125 = vsel %vm3124, %v3116, %v3121
        %v3126 = vmul.f32 %v3109, %v3125
        %v3128 = vperm.slane %v3103, 0
        %v3130 = vmul.f32 %v3126, %v3128
        %v3132 = vperm.slane %v3104, 0
        %v3134 = vadd.f32 %v3130, %v3132
        %v3135 = vpack.c.bf16 %v3134, %v3134
        %v3136 = vld [vmem:[%s61] sm:$0xf]
        %v3137 = vld [vmem:[%s61 + $0x4] sm:$0xf]
        %v3138 = vld [vmem:[%s61 + $0x8] sm:$0xf]
        %v3139 = vld [vmem:[%s61 + $0xc] sm:$0xf]
        %v3140 = vld [vmem:[#allocation24] sm:$0x1]
        %v3142 = vperm.slane %v3140, 0
        %v3148 = vunpack.c.l.b16 %v3136
        %v3149 = vunpack.c.l.b16 %v3137
        %v3150 = vunpack.c.l.b16 %v3138
        %v3151 = vunpack.c.l.b16 %v3139
        %v3152 = vpack.c.b16 %v3149, %v3148
        %v3153 = vpack.c.b16 %v3151, %v3150
        %v3157 = vsel %vm1791, %v3135, 0
        %3159 = vmatpush.bf16.msra.mxu0 0
        %3160 = vmatpush.bf16.msra.mxu0 0
        %3161 = vmatpush.bf16.msra.mxu0 0
        %3162 = vmatpush.bf16.msra.mxu0 0
        %3163 = vmatpush.bf16.msra.mxu0 0
        %3164 = vmatpush.bf16.msra.mxu0 0
        %3165 = vmatpush.bf16.msra.mxu0 %v3153
        %3166 = vmatpush.bf16.msra.mxu0 %v3152
        %3167 = vmatmul.bf16.gmra.mxu0 %v3157
        %v3168 = vpop.f32.mrf.mxu0
        %v3169 = vadd.f32 %v3142, %v3168
        %v3170 = vpop.f32.mrf.mxu0
        %3171 = vdwg.mxu0
        %v3172 = vld [vmem:[%s65] sm:$0xf]
        %v3173 = vld [vmem:[%s65 + $0x4] sm:$0xf]
        %v3174 = vld [vmem:[%s65 + $0x8] sm:$0xf]
        %v3175 = vld [vmem:[%s65 + $0xc] sm:$0xf]
        %v3176 = vld [vmem:[#allocation25] sm:$0x1]
        %v3178 = vperm.slane %v3176, 0
        %v3184 = vunpack.c.l.b16 %v3172
        %v3185 = vunpack.c.l.b16 %v3173
        %v3186 = vunpack.c.l.b16 %v3174
        %v3187 = vunpack.c.l.b16 %v3175
        %v3188 = vpack.c.b16 %v3185, %v3184
        %v3189 = vpack.c.b16 %v3187, %v3186
        %3192 = vmatpush.bf16.msra.mxu0 0
        %3193 = vmatpush.bf16.msra.mxu0 0
        %3194 = vmatpush.bf16.msra.mxu0 0
        %3195 = vmatpush.bf16.msra.mxu0 0
        %3196 = vmatpush.bf16.msra.mxu0 0
        %3197 = vmatpush.bf16.msra.mxu0 0
        %3198 = vmatpush.bf16.msra.mxu0 %v3189
        %3199 = vmatpush.bf16.msra.mxu0 %v3188
        %3200 = vmatmul.bf16.gmra.mxu0 %v2227
        %v3201 = vpop.f32.mrf.mxu0
        %v3202 = vadd.f32 %v3178, %v3201
        %v3203 = vpop.f32.mrf.mxu0
        %3204 = vdwg.mxu0
        %v3206 = vsel %vm1811, %v3169, 0
        %v3209 = vsel %vm1811, %v3202, 0
        %3211 = vmatpush.xpose.msra.mxu0 0.0
        %3212 = vmatpush.xpose.msra.mxu0 0.0
        %3213 = vmatpush.xpose.msra.mxu0 0.0
        %3214 = vmatpush.xpose.msra.mxu0 0.0
        %3215 = vmatpush.xpose.msra.mxu0 0.0
        %3216 = vmatpush.xpose.msra.mxu0 0.0
        %3217 = vmatpush.xpose.msra.mxu0 0.0
        %3218 = vmatpush.xpose.msra.mxu0 0.0
        %3219 = vmatpush.xpose.msra.mxu0 0.0
        %3220 = vmatpush.xpose.msra.mxu0 0.0
        %3221 = vmatpush.xpose.msra.mxu0 0.0
        %3222 = vmatpush.xpose.msra.mxu0 0.0
        %3223 = vmatpush.xpose.msra.mxu0 0.0
        %3224 = vmatpush.xpose.msra.mxu0 0.0
        %3225 = vmatpush.xpose.msra.mxu0 0.0
        %3226 = vmatpush.xpose.msra.mxu0 %v3209
        %3227 = vmatmul.f32.gmra.mxu0 %v3206
        %v3228 = vpop.f32.mrf.mxu0
        %v3229 = vadd.f32 0.0, %v3228
        %3230 = vdwg.mxu0
        %v3231 = vmul.f32 %v3229, 0.35355338
        %v3232 = vsel %vm1769, %v3231, -1e+30
        %v3233 = vsel %vm1811, %v3232, -inf
        %3234 = vmax.xlane.f32.xlu0 %v3233
        %v3235 = vpop.xlane.xlu0 %3234
        %v3236 = vsub.f32 %v3232, %v3235
        %v3237 = vmul.f32 %v3236, 1.442695
        %v3238 = vpow.pop %v3237
        %v3239 = vsel %vm1811, %v3238, 0.0
        %3240 = vadd.xlane.f32.xlu0 %v3239
        %v3241 = vpop.xlane.xlu0 %3240
        %v3242 = vrcp.pop %v3241
        %v3243 = vmul.f32 %v3238, %v3242
        %3244 = vrot.lane.b32.xlu0 %v3202, 96
        %v3245 = vpop.permute.xlu0 %3244
        %v3248 = vsel %vm1811, %v3243, 0
        %3250 = vmatpush.msra.mxu0 0.0
        %3251 = vmatpush.msra.mxu0 0.0
        %3252 = vmatpush.msra.mxu0 0.0
        %3253 = vmatpush.msra.mxu0 0.0
        %3254 = vmatpush.msra.mxu0 0.0
        %3255 = vmatpush.msra.mxu0 0.0
        %3256 = vmatpush.msra.mxu0 0.0
        %3257 = vmatpush.msra.mxu0 0.0
        %3258 = vmatpush.msra.mxu0 0.0
        %3259 = vmatpush.msra.mxu0 0.0
        %3260 = vmatpush.msra.mxu0 0.0
        %3261 = vmatpush.msra.mxu0 0.0
        %3262 = vmatpush.msra.mxu0 0.0
        %3263 = vmatpush.msra.mxu0 0.0
        %3264 = vmatpush.msra.mxu0 0.0
        %3265 = vmatpush.msra.mxu0 %v3245
        %3266 = vmatmul.f32.gmra.mxu0 %v3248
        %v3267 = vpop.f32.mrf.mxu0
        %v3268 = vadd.f32 0.0, %v3267
        %3269 = vdwg.mxu0
        %3270 = vrot.lane.b32.xlu0 %v3169, 120
        %v3271 = vpop.permute.xlu0 %3270
        %3272 = vrot.lane.b32.xlu0 %v3202, 120
        %v3273 = vpop.permute.xlu0 %3272
        %v3274 = vsel %vm1811, %v3271, 0
        %v3276 = vsel %vm1811, %v3273, 0
        %3278 = vmatpush.xpose.msra.mxu0 0.0
        %3279 = vmatpush.xpose.msra.mxu0 0.0
        %3280 = vmatpush.xpose.msra.mxu0 0.0
        %3281 = vmatpush.xpose.msra.mxu0 0.0
        %3282 = vmatpush.xpose.msra.mxu0 0.0
        %3283 = vmatpush.xpose.msra.mxu0 0.0
        %3284 = vmatpush.xpose.msra.mxu0 0.0
        %3285 = vmatpush.xpose.msra.mxu0 0.0
        %3286 = vmatpush.xpose.msra.mxu0 0.0
        %3287 = vmatpush.xpose.msra.mxu0 0.0
        %3288 = vmatpush.xpose.msra.mxu0 0.0
        %3289 = vmatpush.xpose.msra.mxu0 0.0
        %3290 = vmatpush.xpose.msra.mxu0 0.0
        %3291 = vmatpush.xpose.msra.mxu0 0.0
        %3292 = vmatpush.xpose.msra.mxu0 0.0
        %3293 = vmatpush.xpose.msra.mxu0 %v3276
        %3294 = vmatmul.f32.gmra.mxu0 %v3274
        %v3295 = vpop.f32.mrf.mxu0
        %v3296 = vadd.f32 0.0, %v3295
        %3297 = vdwg.mxu0
        %v3298 = vmul.f32 %v3296, 0.35355338
        %v3299 = vsel %vm1769, %v3298, -1e+30
        %v3300 = vsel %vm1811, %v3299, -inf
        %3301 = vmax.xlane.f32.xlu0 %v3300
        %v3302 = vpop.xlane.xlu0 %3301
        %v3303 = vsub.f32 %v3299, %v3302
        %v3304 = vmul.f32 %v3303, 1.442695
        %v3305 = vpow.pop %v3304
        %v3306 = vsel %vm1811, %v3305, 0.0
        %3307 = vadd.xlane.f32.xlu0 %v3306
        %v3308 = vpop.xlane.xlu0 %3307
        %v3309 = vrcp.pop %v3308
        %v3310 = vmul.f32 %v3305, %v3309
        %3311 = vrot.lane.b32.xlu0 %v3202, 88
        %v3312 = vpop.permute.xlu0 %3311
        %v3315 = vsel %vm1811, %v3310, 0
        %3317 = vmatpush.msra.mxu0 0.0
        %3318 = vmatpush.msra.mxu0 0.0
        %3319 = vmatpush.msra.mxu0 0.0
        %3320 = vmatpush.msra.mxu0 0.0
        %3321 = vmatpush.msra.mxu0 0.0
        %3322 = vmatpush.msra.mxu0 0.0
        %3323 = vmatpush.msra.mxu0 0.0
        %3324 = vmatpush.msra.mxu0 0.0
        %3325 = vmatpush.msra.mxu0 0.0
        %3326 = vmatpush.msra.mxu0 0.0
        %3327 = vmatpush.msra.mxu0 0.0
        %3328 = vmatpush.msra.mxu0 0.0
        %3329 = vmatpush.msra.mxu0 0.0
        %3330 = vmatpush.msra.mxu0 0.0
        %3331 = vmatpush.msra.mxu0 0.0
        %3332 = vmatpush.msra.mxu0 %v3312
        %3333 = vmatmul.f32.gmra.mxu0 %v3315
        %v3334 = vpop.f32.mrf.mxu0
        %v3335 = vadd.f32 0.0, %v3334
        %3336 = vdwg.mxu0
        %3337 = vrot.lane.b32.xlu0 %v3169, 112
        %v3338 = vpop.permute.xlu0 %3337
        %3339 = vrot.lane.b32.xlu0 %v3202, 112
        %v3340 = vpop.permute.xlu0 %3339
        %v3341 = vsel %vm1811, %v3338, 0
        %v3343 = vsel %vm1811, %v3340, 0
        %3345 = vmatpush.xpose.msra.mxu0 0.0
        %3346 = vmatpush.xpose.msra.mxu0 0.0
        %3347 = vmatpush.xpose.msra.mxu0 0.0
        %3348 = vmatpush.xpose.msra.mxu0 0.0
        %3349 = vmatpush.xpose.msra.mxu0 0.0
        %3350 = vmatpush.xpose.msra.mxu0 0.0
        %3351 = vmatpush.xpose.msra.mxu0 0.0
        %3352 = vmatpush.xpose.msra.mxu0 0.0
        %3353 = vmatpush.xpose.msra.mxu0 0.0
        %3354 = vmatpush.xpose.msra.mxu0 0.0
        %3355 = vmatpush.xpose.msra.mxu0 0.0
        %3356 = vmatpush.xpose.msra.mxu0 0.0
        %3357 = vmatpush.xpose.msra.mxu0 0.0
        %3358 = vmatpush.xpose.msra.mxu0 0.0
        %3359 = vmatpush.xpose.msra.mxu0 0.0
        %3360 = vmatpush.xpose.msra.mxu0 %v3343
        %3361 = vmatmul.f32.gmra.mxu0 %v3341
        %v3362 = vpop.f32.mrf.mxu0
        %v3363 = vadd.f32 0.0, %v3362
        %3364 = vdwg.mxu0
        %v3365 = vmul.f32 %v3363, 0.35355338
        %v3366 = vsel %vm1769, %v3365, -1e+30
        %v3367 = vsel %vm1811, %v3366, -inf
        %3368 = vmax.xlane.f32.xlu0 %v3367
        %v3369 = vpop.xlane.xlu0 %3368
        %v3370 = vsub.f32 %v3366, %v3369
        %v3371 = vmul.f32 %v3370, 1.442695
        %v3372 = vpow.pop %v3371
        %v3373 = vsel %vm1811, %v3372, 0.0
        %3374 = vadd.xlane.f32.xlu0 %v3373
        %v3375 = vpop.xlane.xlu0 %3374
        %v3376 = vrcp.pop %v3375
        %v3377 = vmul.f32 %v3372, %v3376
        %3378 = vrot.lane.b32.xlu0 %v3202, 80
        %v3379 = vpop.permute.xlu0 %3378
        %v3382 = vsel %vm1811, %v3377, 0
        %3384 = vmatpush.msra.mxu0 0.0
        %3385 = vmatpush.msra.mxu0 0.0
        %3386 = vmatpush.msra.mxu0 0.0
        %3387 = vmatpush.msra.mxu0 0.0
        %3388 = vmatpush.msra.mxu0 0.0
        %3389 = vmatpush.msra.mxu0 0.0
        %3390 = vmatpush.msra.mxu0 0.0
        %3391 = vmatpush.msra.mxu0 0.0
        %3392 = vmatpush.msra.mxu0 0.0
        %3393 = vmatpush.msra.mxu0 0.0
        %3394 = vmatpush.msra.mxu0 0.0
        %3395 = vmatpush.msra.mxu0 0.0
        %3396 = vmatpush.msra.mxu0 0.0
        %3397 = vmatpush.msra.mxu0 0.0
        %3398 = vmatpush.msra.mxu0 0.0
        %3399 = vmatpush.msra.mxu0 %v3379
        %3400 = vmatmul.f32.gmra.mxu0 %v3382
        %v3401 = vpop.f32.mrf.mxu0
        %v3402 = vadd.f32 0.0, %v3401
        %3403 = vdwg.mxu0
        %3404 = vrot.lane.b32.xlu0 %v3169, 104
        %v3405 = vpop.permute.xlu0 %3404
        %3406 = vrot.lane.b32.xlu0 %v3202, 104
        %v3407 = vpop.permute.xlu0 %3406
        %v3408 = vsel %vm1811, %v3405, 0
        %v3410 = vsel %vm1811, %v3407, 0
        %3412 = vmatpush.xpose.msra.mxu0 0.0
        %3413 = vmatpush.xpose.msra.mxu0 0.0
        %3414 = vmatpush.xpose.msra.mxu0 0.0
        %3415 = vmatpush.xpose.msra.mxu0 0.0
        %3416 = vmatpush.xpose.msra.mxu0 0.0
        %3417 = vmatpush.xpose.msra.mxu0 0.0
        %3418 = vmatpush.xpose.msra.mxu0 0.0
        %3419 = vmatpush.xpose.msra.mxu0 0.0
        %3420 = vmatpush.xpose.msra.mxu0 0.0
        %3421 = vmatpush.xpose.msra.mxu0 0.0
        %3422 = vmatpush.xpose.msra.mxu0 0.0
        %3423 = vmatpush.xpose.msra.mxu0 0.0
        %3424 = vmatpush.xpose.msra.mxu0 0.0
        %3425 = vmatpush.xpose.msra.mxu0 0.0
        %3426 = vmatpush.xpose.msra.mxu0 0.0
        %3427 = vmatpush.xpose.msra.mxu0 %v3410
        %3428 = vmatmul.f32.gmra.mxu0 %v3408
        %v3429 = vpop.f32.mrf.mxu0
        %v3430 = vadd.f32 0.0, %v3429
        %3431 = vdwg.mxu0
        %v3432 = vmul.f32 %v3430, 0.35355338
        %v3433 = vsel %vm1769, %v3432, -1e+30
        %v3434 = vsel %vm1811, %v3433, -inf
        %3435 = vmax.xlane.f32.xlu0 %v3434
        %v3436 = vpop.xlane.xlu0 %3435
        %v3437 = vsub.f32 %v3433, %v3436
        %v3438 = vmul.f32 %v3437, 1.442695
        %v3439 = vpow.pop %v3438
        %v3440 = vsel %vm1811, %v3439, 0.0
        %3441 = vadd.xlane.f32.xlu0 %v3440
        %v3442 = vpop.xlane.xlu0 %3441
        %v3443 = vrcp.pop %v3442
        %v3444 = vmul.f32 %v3439, %v3443
        %3445 = vrot.lane.b32.xlu0 %v3202, 72
        %v3446 = vpop.permute.xlu0 %3445
        %v3449 = vsel %vm1811, %v3444, 0
        %3451 = vmatpush.msra.mxu0 0.0
        %3452 = vmatpush.msra.mxu0 0.0
        %3453 = vmatpush.msra.mxu0 0.0
        %3454 = vmatpush.msra.mxu0 0.0
        %3455 = vmatpush.msra.mxu0 0.0
        %3456 = vmatpush.msra.mxu0 0.0
        %3457 = vmatpush.msra.mxu0 0.0
        %3458 = vmatpush.msra.mxu0 0.0
        %3459 = vmatpush.msra.mxu0 0.0
        %3460 = vmatpush.msra.mxu0 0.0
        %3461 = vmatpush.msra.mxu0 0.0
        %3462 = vmatpush.msra.mxu0 0.0
        %3463 = vmatpush.msra.mxu0 0.0
        %3464 = vmatpush.msra.mxu0 0.0
        %3465 = vmatpush.msra.mxu0 0.0
        %3466 = vmatpush.msra.mxu0 %v3446
        %3467 = vmatmul.f32.gmra.mxu0 %v3449
        %v3468 = vpop.f32.mrf.mxu0
        %v3469 = vadd.f32 0.0, %v3468
        %3470 = vdwg.mxu0
        %3472 = vrot.lane.b32.xlu0 %v3335, 8
        %v3473 = vpop.permute.xlu0 %3472
        %3476 = vrot.lane.b32.xlu0 %v3402, 16
        %v3477 = vpop.permute.xlu0 %3476
        %3480 = vrot.lane.b32.xlu0 %v3469, 24
        %v3481 = vpop.permute.xlu0 %3480
        %v3483 = vsel %vm1811, %v3268, %v3473
        %v3484 = vsel %vm1748, %v3483, %v3477
        %v3485 = vsel %vm2090, %v3484, %v3481
        %v3486 = vpack.c.bf16 %v3485, %v3485
        %v3487 = vld [vmem:[%s69] sm:$0xf]
        %v3488 = vld [vmem:[%s69 + $0x4] sm:$0xf]
        %v3489 = vld [vmem:[%s69 + $0x8] sm:$0xf]
        %v3490 = vld [vmem:[%s69 + $0xc] sm:$0xf]
        %v3491 = vld [vmem:[#allocation27] sm:$0x1]
        %v3493 = vperm.slane %v3491, 0
        %v3499 = vunpack.c.l.b16 %v3487
        %v3500 = vunpack.c.l.b16 %v3488
        %v3501 = vunpack.c.l.b16 %v3489
        %v3502 = vunpack.c.l.b16 %v3490
        %v3503 = vpack.c.b16 %v3500, %v3499
        %v3504 = vpack.c.b16 %v3502, %v3501
        %v3508 = vsel %vm1791, %v3486, 0
        %3510 = vmatpush.bf16.msra.mxu0 0
        %3511 = vmatpush.bf16.msra.mxu0 0
        %3512 = vmatpush.bf16.msra.mxu0 0
        %3513 = vmatpush.bf16.msra.mxu0 0
        %3514 = vmatpush.bf16.msra.mxu0 0
        %3515 = vmatpush.bf16.msra.mxu0 0
        %3516 = vmatpush.bf16.msra.mxu0 %v3504
        %3517 = vmatpush.bf16.msra.mxu0 %v3503
        %3518 = vmatmul.bf16.gmra.mxu0 %v3508
        %v3519 = vpop.f32.mrf.mxu0
        %v3520 = vadd.f32 %v3493, %v3519
        %v3521 = vpop.f32.mrf.mxu0
        %3522 = vdwg.mxu0
        %v3523 = vadd.f32 %v3134, %v3520
        %v3524 = vld [vmem:[#allocation28] sm:$0x1]
        %v3525 = vld [vmem:[#allocation30] sm:$0x1]
        %v3526 = vsel %vm1791, %v3523, 0.0
        %3527 = vadd.xlane.f32.xlu0 %v3526
        %v3528 = vpop.xlane.xlu0 %3527
        %v3529 = vmul.f32 %v3528, %v2141
        %v3530 = vsub.f32 %v3523, %v3529
        %v3531 = vmul.f32 %v3530, %v3530
        %v3532 = vsel %vm1791, %v3531, 0.0
        %3533 = vadd.xlane.f32.xlu0 %v3532
        %v3534 = vpop.xlane.xlu0 %3533
        %v3535 = vmul.f32 %v3534, %v2141
        %v3536 = vadd.f32 %v3535, 1e-05
        %v3537 = vrsqrt.pop %v3536
        %v3538 = vmul.f32 %v3537, %v3536
        %v3539 = vmul.f32 %v3538, %v3537
        %v3540 = vmul.f32 0.5, %v3539
        %v3541 = vsub.f32 1.5, %v3540
        %v3542 = vmul.f32 %v3537, %v3541
        %vm3543 = vweird.f32 %v3536
        %vm3544 = vweird.f32 %v3537
        %vm3545 = vmor %vm3543, %vm3544
        %v3546 = vsel %vm3545, %v3537, %v3542
        %v3547 = vmul.f32 %v3530, %v3546
        %v3549 = vperm.slane %v3524, 0
        %v3551 = vmul.f32 %v3547, %v3549
        %v3553 = vperm.slane %v3525, 0
        %v3555 = vadd.f32 %v3551, %v3553
        %v3556 = vpack.c.bf16 %v3555, %v3555
        %v3557 = vld [vmem:[#allocation31] sm:$0xf]
        %v3558 = vld [vmem:[#allocation31 + $0x4] sm:$0xf]
        %v3559 = vld [vmem:[#allocation31 + $0x8] sm:$0xf]
        %v3560 = vld [vmem:[#allocation31 + $0xc] sm:$0xf]
        %v3561 = vld [vmem:[#allocation33] sm:$0x1]
        %v3563 = vperm.slane %v3561, 0
        %v3569 = vunpack.c.l.b16 %v3557
        %v3570 = vunpack.c.l.b16 %v3558
        %v3571 = vunpack.c.l.b16 %v3559
        %v3572 = vunpack.c.l.b16 %v3560
        %v3573 = vpack.c.b16 %v3570, %v3569
        %v3574 = vpack.c.b16 %v3572, %v3571
        %v3578 = vsel %vm1791, %v3556, 0
        %3580 = vmatpush.bf16.msra.mxu0 0
        %3581 = vmatpush.bf16.msra.mxu0 0
        %3582 = vmatpush.bf16.msra.mxu0 0
        %3583 = vmatpush.bf16.msra.mxu0 0
        %3584 = vmatpush.bf16.msra.mxu0 0
        %3585 = vmatpush.bf16.msra.mxu0 0
        %3586 = vmatpush.bf16.msra.mxu0 %v3574
        %3587 = vmatpush.bf16.msra.mxu0 %v3573
        %3588 = vmatmul.bf16.gmra.mxu0 %v3578
        %v3589 = vpop.f32.mrf.mxu0
        %v3590 = vadd.f32 %v3563, %v3589
        %v3591 = vpop.f32.mrf.mxu0
        %3592 = vdwg.mxu0
        %v3593 = vmax.f32 %v3590, 0.0
        %v3594 = vpack.c.bf16 %v3593, %v3593
        %v3595 = vld [vmem:[%s81] sm:$0xf]
        %v3596 = vld [vmem:[%s81 + $0x4] sm:$0xf]
        %v3597 = vld [vmem:[%s81 + $0x8] sm:$0xf]
        %v3598 = vld [vmem:[%s81 + $0xc] sm:$0xf]
        %v3599 = vld [vmem:[%s81 + $0x10] sm:$0xf]
        %v3600 = vld [vmem:[%s81 + $0x14] sm:$0xf]
        %v3601 = vld [vmem:[%s81 + $0x18] sm:$0xf]
        %v3602 = vld [vmem:[%s81 + $0x1c] sm:$0xf]
        %v3603 = vld [vmem:[%s81 + $0x20] sm:$0xf]
        %v3604 = vld [vmem:[%s81 + $0x24] sm:$0xf]
        %v3605 = vld [vmem:[%s81 + $0x28] sm:$0xf]
        %v3606 = vld [vmem:[%s81 + $0x2c] sm:$0xf]
        %v3607 = vld [vmem:[%s81 + $0x30] sm:$0xf]
        %v3608 = vld [vmem:[%s81 + $0x34] sm:$0xf]
        %v3609 = vld [vmem:[%s81 + $0x38] sm:$0xf]
        %v3610 = vld [vmem:[%s81 + $0x3c] sm:$0xf]
        %v3611 = vld [vmem:[#allocation34] sm:$0x1]
        %v3613 = vperm.slane %v3611, 0
        %v3631 = vunpack.c.l.b16 %v3595
        %v3632 = vunpack.c.l.b16 %v3596
        %v3633 = vunpack.c.l.b16 %v3597
        %v3634 = vunpack.c.l.b16 %v3598
        %v3635 = vunpack.c.l.b16 %v3599
        %v3636 = vunpack.c.l.b16 %v3600
        %v3637 = vunpack.c.l.b16 %v3601
        %v3638 = vunpack.c.l.b16 %v3602
        %v3639 = vunpack.c.l.b16 %v3603
        %v3640 = vunpack.c.l.b16 %v3604
        %v3641 = vunpack.c.l.b16 %v3605
        %v3642 = vunpack.c.l.b16 %v3606
        %v3643 = vunpack.c.l.b16 %v3607
        %v3644 = vunpack.c.l.b16 %v3608
        %v3645 = vunpack.c.l.b16 %v3609
        %v3646 = vunpack.c.l.b16 %v3610
        %v3647 = vpack.c.b16 %v3632, %v3631
        %v3648 = vpack.c.b16 %v3634, %v3633
        %v3649 = vpack.c.b16 %v3636, %v3635
        %v3650 = vpack.c.b16 %v3638, %v3637
        %v3651 = vpack.c.b16 %v3640, %v3639
        %v3652 = vpack.c.b16 %v3642, %v3641
        %v3653 = vpack.c.b16 %v3644, %v3643
        %v3654 = vpack.c.b16 %v3646, %v3645
        %3663 = vmatpush.bf16.msra.mxu0 %v3654
        %3664 = vmatpush.bf16.msra.mxu0 %v3653
        %3665 = vmatpush.bf16.msra.mxu0 %v3652
        %3666 = vmatpush.bf16.msra.mxu0 %v3651
        %3667 = vmatpush.bf16.msra.mxu0 %v3650
        %3668 = vmatpush.bf16.msra.mxu0 %v3649
        %3669 = vmatpush.bf16.msra.mxu0 %v3648
        %3670 = vmatpush.bf16.msra.mxu0 %v3647
        %3671 = vmatmul.bf16.gmra.mxu0 %v3594
        %v3672 = vpop.f32.mrf.mxu0
        %v3673 = vadd.f32 %v3613, %v3672
        %v3674 = vpop.f32.mrf.mxu0
        %3675 = vdwg.mxu0
        %v3676 = vadd.f32 %v3555, %v3673
        %v3677 = vld [vmem:[#allocation36] sm:$0x1]
        %v3678 = vld [vmem:[#allocation37] sm:$0x1]
        %v3679 = vsel %vm1791, %v3676, 0.0
        %3680 = vadd.xlane.f32.xlu0 %v3679
        %v3681 = vpop.xlane.xlu0 %3680
        %v3682 = vmul.f32 %v3681, %v2141
        %v3683 = vsub.f32 %v3676, %v3682
        %v3684 = vmul.f32 %v3683, %v3683
        %v3685 = vsel %vm1791, %v3684, 0.0
        %3686 = vadd.xlane.f32.xlu0 %v3685
        %v3687 = vpop.xlane.xlu0 %3686
        %v3688 = vmul.f32 %v3687, %v2141
        %v3689 = vadd.f32 %v3688, 1e-05
        %v3690 = vrsqrt.pop %v3689
        %v3691 = vmul.f32 %v3690, %v3689
        %v3692 = vmul.f32 %v3691, %v3690
        %v3693 = vmul.f32 0.5, %v3692
        %v3694 = vsub.f32 1.5, %v3693
        %v3695 = vmul.f32 %v3690, %v3694
        %vm3696 = vweird.f32 %v3689
        %vm3697 = vweird.f32 %v3690
        %vm3698 = vmor %vm3696, %vm3697
        %v3699 = vsel %vm3698, %v3690, %v3695
        %v3700 = vmul.f32 %v3683, %v3699
        %v3702 = vperm.slane %v3677, 0
        %v3704 = vmul.f32 %v3700, %v3702
        %v3706 = vperm.slane %v3678, 0
        %v3708 = vadd.f32 %v3704, %v3706
        %v3709 = vpack.c.bf16 %v3708, %v3708
        %v3710 = vld [vmem:[#allocation39] sm:$0xf]
        %v3711 = vld [vmem:[#allocation39 + $0x4] sm:$0xf]
        %v3712 = vld [vmem:[#allocation39 + $0x8] sm:$0xf]
        %v3713 = vld [vmem:[#allocation39 + $0xc] sm:$0xf]
        %v3714 = vld [vmem:[#allocation40] sm:$0x1]
        %v3716 = vperm.slane %v3714, 0
        %v3722 = vunpack.c.l.b16 %v3710
        %v3723 = vunpack.c.l.b16 %v3711
        %v3724 = vunpack.c.l.b16 %v3712
        %v3725 = vunpack.c.l.b16 %v3713
        %v3726 = vpack.c.b16 %v3723, %v3722
        %v3727 = vpack.c.b16 %v3725, %v3724
        %v3731 = vsel %vm1791, %v3709, 0
        %3733 = vmatpush.bf16.msra.mxu0 0
        %3734 = vmatpush.bf16.msra.mxu0 0
        %3735 = vmatpush.bf16.msra.mxu0 0
        %3736 = vmatpush.bf16.msra.mxu0 0
        %3737 = vmatpush.bf16.msra.mxu0 0
        %3738 = vmatpush.bf16.msra.mxu0 0
        %3739 = vmatpush.bf16.msra.mxu0 %v3727
        %3740 = vmatpush.bf16.msra.mxu0 %v3726
        %3741 = vmatmul.bf16.gmra.mxu0 %v3731
        %v3742 = vpop.f32.mrf.mxu0
        %v3743 = vadd.f32 %v3716, %v3742
        %v3744 = vpop.f32.mrf.mxu0
        %3745 = vdwg.mxu0
        %3746 = vst [vmem:[%s1719] sm:$0xff] %v3743
        %s3747 = sand.u32 %s1091, 1
        %s3748 = scalar_lea.sflag [#allocation6], %s3747
        %s3749 = sand.u32 %s1091, 1
        %s3750 = smul.addr %s3749, 8
        %s3751 = scalar_lea.vmem [#allocation42], %s3750
        // Predicated region
        $region297: #{decoder_forward.1} parent=199 // pred_check
          %p3752 = pneg %p1101
        $region298: #{decoder_forward.1} parent=199 // pred_check_branch
          %3754 = sbr.rel (%p3752) target = $region300
        $region299: #{decoder_forward.1} parent=199 // pred_region
          %3756 = vsyncadd %s3748, 0
          %s3757 = smul.addr %s128, 8
          %s3758 = scalar_lea.hbm %s93, %s3757
          %s3760 = sshll.u32 %s3751, 4
          %s3761 = int_to_ptr.vmem [resolvable:$true] %s3760
          %s3762 = sshll.u32 %s3758, 4
          %s3763 = int_to_ptr.hbm [resolvable:$true] %s3762
          %3765 = dma.vmem_to_hbm [thread:$0]  %s3761, 128, %s3763, %s3748
        $region300: #{decoder_forward.1} parent=199 // pred_fallthru
          _
      $region200: #{decoder_forward.1} parent=5 // pred_fallthru
        _
      %p3766 = scmp.le.s32.totalorder 2, %s123
      // Predicated region
      $region301: #{decoder_forward.1} parent=5 // pred_check
        %p3767 = pneg %p3766
      $region302: #{decoder_forward.1} parent=5 // pred_check_branch
        %3769 = sbr.rel (%p3767) target = $region304
      $region303: #{decoder_forward.1} parent=5 // pred_region
        %s3770 = ssub.s32 %s123, 2
        // Predicated region
        $region305: #{decoder_forward.1} parent=303 // pred_check
          %p3771 = pneg %p1107
        $region306: #{decoder_forward.1} parent=303 // pred_check_branch
          %3773 = sbr.rel (%p3771) target = $region308
        $region307: #{decoder_forward.1} parent=303 // pred_region
          %s3774 = sand.u32 %s1092, 1
          %s3775 = scalar_lea.sflag [#allocation6], %s3774
          %s3776 = sand.u32 %s1092, 1
          %s3777 = smul.addr %s3776, 8
          %s3778 = scalar_lea.vmem [#allocation42], %s3777
          %3780 = dma.done %s3775, 128
        $region308: #{decoder_forward.1} parent=303 // pred_fallthru
          _
      $region304: #{decoder_forward.1} parent=5 // pred_fallthru
        _
    $region6: #{decoder_forward.1} parent=1 // loop_footer
      %s127 = sadd.s32 1, %s123
    $region7: #{decoder_forward.1} parent=1 // loop_footer_branch
      %122 = sbr.rel target = $region3
    $region8: #{decoder_forward.1} parent=1 // loop_exit
      _
    %3781 = vsyncpa [#allocation5], 1
    %s3782 = scalar_lea.sflag [#allocation5], 1
    %3783 = vsyncpa %s3782, 1
    %3784 = vsyncpa [#allocation8], 1
    %3785 = vsyncpa [#allocation11], 1
    %3786 = vsyncpa [#allocation14], 1
    %3787 = vsyncpa [#allocation17], 1
    %3788 = vsyncpa [#allocation20], 1
    %3789 = vsyncpa [#allocation23], 1
    %3790 = vsyncpa [#allocation26], 1
    %3791 = vsyncpa [#allocation29], 1
    %3792 = vsyncpa [#allocation32], 1
    %3793 = vsyncpa [#allocation35], 1
    %3794 = vsyncpa [#allocation38], 1
    %3795 = vsyncpa [#allocation41], 1
    %3796 = vsyncpa [#allocation6], 1
    %s3797 = scalar_lea.sflag [#allocation6], 1
    %3798 = vsyncpa %s3797, 1

</llo_original>
